<compile_context>
chip_gen: v6e
topology: v6e:2x2x1
jax: 0.10.0
libtpu: 0.0.40
codegen_flags: <defaults>
</compile_context>

<pallas_src>
import math

import jax
import jax.numpy as jnp
from jax.experimental import pallas as pl
from jax.experimental.pallas import tpu as pltpu


def _round_up(x, m):
    return ((x + m - 1) // m) * m


# ------------------------- stage 1: support = X @ W -------------------------
def support_kernel(x_ref, w_ref, s_ref):
    s_ref[...] = jnp.dot(
        x_ref[...], w_ref[...], preferred_element_type=jnp.float32
    ).astype(s_ref.dtype)


def _compute_support(x_pad, w_pad, tm):
    n_pad, in_dim = x_pad.shape
    out_pad = w_pad.shape[1]
    return pl.pallas_call(
        support_kernel,
        out_shape=jax.ShapeDtypeStruct((n_pad, out_pad), jnp.float32),
        grid_spec=pltpu.PrefetchScalarGridSpec(
            num_scalar_prefetch=0,
            grid=(n_pad // tm,),
            in_specs=[
                pl.BlockSpec((tm, in_dim), lambda i: (i, 0)),
                pl.BlockSpec((in_dim, out_pad), lambda i: (0, 0)),
            ],
            out_specs=pl.BlockSpec((tm, out_pad), lambda i: (i, 0)),
        ),
        compiler_params=pltpu.CompilerParams(
            dimension_semantics=("parallel",),
        ),
    )(x_pad, w_pad)


# --------------------- stage 2: out = adj @ support + b ---------------------
def aggregate_kernel(adj_ref, s_ref, b_ref, out_ref, acc_ref):
    k = pl.program_id(1)

    @pl.when(k == 0)
    def _():
        acc_ref[...] = jnp.zeros_like(acc_ref)

    acc_ref[...] += jnp.dot(
        adj_ref[...], s_ref[...], preferred_element_type=jnp.float32
    )

    @pl.when(k == pl.num_programs(1) - 1)
    def _():
        # bias added exactly once, fused with the final cast/store
        out_ref[...] = (acc_ref[...] + b_ref[...]).astype(out_ref.dtype)


@jax.jit
def gcn_forward(x, adj, weight, bias):
    N, in_dim = x.shape
    out_dim = weight.shape[1]
    dtype = x.dtype

    # Lane-dense output: pad out_dim up to a multiple of 128.
    out_pad = _round_up(out_dim, 128)

    # Large tiles for HBM bandwidth (256-multiples for v6e/v7x MXU),
    # adapted down for small graphs.
    tm = tk = 512 if N >= 512 else _round_up(max(N, 8), 256)
    n_pad = _round_up(N, tm)

    # Zero-pad everything to tile boundaries (zeros contribute nothing to the
    # matmuls, so results for the real rows/cols are exact).
    x_p = jnp.zeros((n_pad, in_dim), dtype).at[:N, :].set(x)
    adj_p = jnp.zeros((n_pad, n_pad), dtype).at[:N, :N].set(adj)
    w_p = jnp.zeros((in_dim, out_pad), dtype).at[:, :out_dim].set(weight)
    b_p = jnp.zeros((1, out_pad), dtype).at[0, :out_dim].set(bias)

    # support = X @ W computed once, kept in HBM, streamed by tiles below.
    support = _compute_support(x_p, w_p, tm)

    out_p = pl.pallas_call(
        aggregate_kernel,
        out_shape=jax.ShapeDtypeStruct((n_pad, out_pad), dtype),
        grid_spec=pltpu.PrefetchScalarGridSpec(
            num_scalar_prefetch=0,
            grid=(n_pad // tm, n_pad // tk),
            in_specs=[
                pl.BlockSpec((tm, tk), lambda i, k: (i, k)),          # adj tile
                pl.BlockSpec((tk, out_pad), lambda i, k: (k, 0)),     # support
                pl.BlockSpec((1, out_pad), lambda i, k: (0, 0)),      # bias
            ],
            out_specs=pl.BlockSpec((tm, out_pad), lambda i, k: (i, 0)),
            scratch_shapes=[pltpu.VMEM((tm, out_pad), jnp.float32)],
        ),
        compiler_params=pltpu.CompilerParams(
            dimension_semantics=("parallel", "arbitrary"),
            vmem_limit_bytes=64 * 1024 * 1024,
        ),
    )(adj_p, support, b_p)

    # TODO(synk): optionally cast adj/support to bf16 for HBM bandwidth once
    # accuracy for row-normalized adjacency is validated; kept f32 here to
    # match the PyTorch FloatTensor semantics exactly.
    return out_p[:N, :out_dim]


if __name__ == "__main__":
    # Small shapes consistent with the module: N nodes, input_dim -> output_dim.
    # N deliberately not a tile multiple to exercise the padding path.
    N, input_dim, output_dim = 1000, 64, 32

    key = jax.random.PRNGKey(0)
    k_x, k_adj, k_w, k_b = jax.random.split(key, 4)

    # Parameter init mirroring reset_parameters(): U(-stdv, stdv), stdv = 1/sqrt(output_dim)
    stdv = 1.0 / math.sqrt(output_dim)
    weight = jax.random.uniform(k_w, (input_dim, output_dim),
                                minval=-stdv, maxval=stdv, dtype=jnp.float32)
    bias = jax.random.uniform(k_b, (output_dim,),
                              minval=-stdv, maxval=stdv, dtype=jnp.float32)

    # Deterministic example inputs
    x = jax.random.normal(k_x, (N, input_dim), dtype=jnp.float32)
    # Simple symmetric row-normalized adjacency-like matrix
    a = jax.random.uniform(k_adj, (N, N), dtype=jnp.float32)
    a = (a + a.T) * 0.5 + jnp.eye(N, dtype=jnp.float32)
    adj = a / jnp.sum(a, axis=1, keepdims=True)

    out = gcn_forward(x, adj, weight, bias)
    out = jax.block_until_ready(out)

    # Reference check in plain JAX
    ref = adj @ (x @ weight) + bias
    assert out.shape == (N, output_dim)
    assert jnp.allclose(out, ref, atol=1e-4, rtol=1e-4), "mismatch vs reference"

    print("KERNEL_OK")
</pallas_src>

<mosaic_0001>
module attributes {stable_mosaic.version = 11 : i64} {
  func.func @support_kernel(%arg0: i32, %arg1: memref<512x64xf32, #tpu.memory_space<vmem>>, %arg2: memref<64x128xf32, #tpu.memory_space<vmem>>, %arg3: memref<512x128xf32, #tpu.memory_space<vmem>>) attributes {dimension_semantics = [#tpu.dimension_semantics<parallel>], iteration_bounds = array<i64: 2>, scalar_prefetch = 0 : i64, scratch_operands = 0 : i64, tpu.core_type = #tpu.core_type<tc>, window_params = [{transform_indices = @transform_0, window_bounds = array<i64: 512, 64>}, {pipeline_mode = #tpu.pipeline_mode<synchronous>, transform_indices = @transform_1, window_bounds = array<i64: 64, 128>}, {transform_indices = @transform_2, window_bounds = array<i64: 512, 128>}]} {
    %c0 = arith.constant 0 : index
    %c0_0 = arith.constant 0 : index
    %0 = vector.load %arg1[%c0, %c0_0] : memref<512x64xf32, #tpu.memory_space<vmem>>, vector<512x64xf32>
    %c0_1 = arith.constant 0 : index
    %c0_2 = arith.constant 0 : index
    %1 = vector.load %arg2[%c0_1, %c0_2] : memref<64x128xf32, #tpu.memory_space<vmem>>, vector<64x128xf32>
    %cst = arith.constant dense<0.000000e+00> : vector<512x128xf32>
    %2 = tpu.matmul %0, %1, %cst {dimension_numbers = #tpu.dot_dimension_numbers<[1], [0], [0], [1], [0, 0, 1, 1], [], []>} : vector<512x64xf32>, vector<64x128xf32>, vector<512x128xf32> -> vector<512x128xf32>
    %c0_3 = arith.constant 0 : index
    %c0_4 = arith.constant 0 : index
    %3 = vector.load %arg3[%c0_3, %c0_4] : memref<512x128xf32, #tpu.memory_space<vmem>>, vector<512x128xf32>
    tpu.vector_store %arg3[%c0_3, %c0_4], %2 {strides = array<i32>} : memref<512x128xf32, #tpu.memory_space<vmem>>, vector<512x128xf32>,
    return
  }
  func.func @transform_0(%arg0: i32) -> (i32, i32) {
    %c0_i32 = arith.constant 0 : i32
    %c0_i32_0 = arith.constant 0 : i32
    return %arg0, %c0_i32 : i32, i32
  }
  func.func @transform_1(%arg0: i32) -> (i32, i32) {
    %c0_i32 = arith.constant 0 : i32
    %c0_i32_0 = arith.constant 0 : i32
    %c0_i32_1 = arith.constant 0 : i32
    return %c0_i32, %c0_i32_0 : i32, i32
  }
  func.func @transform_2(%arg0: i32) -> (i32, i32) {
    %c0_i32 = arith.constant 0 : i32
    %c0_i32_0 = arith.constant 0 : i32
    return %arg0, %c0_i32 : i32, i32
  }
}

module attributes {stable_mosaic.version = 11 : i64} {
  func.func @aggregate_kernel(%arg0: i32, %arg1: i32, %arg2: memref<512x512xf32, #tpu.memory_space<vmem>>, %arg3: memref<512x128xf32, #tpu.memory_space<vmem>>, %arg4: memref<1x128xf32, #tpu.memory_space<vmem>>, %arg5: memref<512x128xf32, #tpu.memory_space<vmem>>, %arg6: memref<512x128xf32, #tpu.memory_space<vmem>>) attributes {dimension_semantics = [#tpu.dimension_semantics<parallel>, #tpu.dimension_semantics<arbitrary>], iteration_bounds = array<i64: 2, 2>, scalar_prefetch = 0 : i64, scratch_operands = 1 : i64, tpu.core_type = #tpu.core_type<tc>, window_params = [{transform_indices = @transform_0, window_bounds = array<i64: 512, 512>}, {transform_indices = @transform_1, window_bounds = array<i64: 512, 128>}, {pipeline_mode = #tpu.pipeline_mode<synchronous>, transform_indices = @transform_2, window_bounds = array<i64: 1, 128>}, {transform_indices = @transform_3, window_bounds = array<i64: 512, 128>}]} {
    %c0_i32 = arith.constant 0 : i32
    %0 = arith.cmpi eq, %arg1, %c0_i32 : i32
    %1 = arith.extui %0 : i1 to i32
    %c0_i32_0 = arith.constant 0 : i32
    %2 = arith.cmpi ne, %1, %c0_i32_0 : i32
    scf.if %2 {
      %cst_9 = arith.constant 0.000000e+00 : f32
      %12 = vector.broadcast %cst_9 : f32 to vector<512x128xf32>
      %c0_10 = arith.constant 0 : index
      %c0_11 = arith.constant 0 : index
      %13 = vector.load %arg6[%c0_10, %c0_11] : memref<512x128xf32, #tpu.memory_space<vmem>>, vector<512x128xf32>
      tpu.vector_store %arg6[%c0_10, %c0_11], %12 {strides = array<i32>} : memref<512x128xf32, #tpu.memory_space<vmem>>, vector<512x128xf32>,
    } else {
    }
    %c0 = arith.constant 0 : index
    %c0_1 = arith.constant 0 : index
    %3 = vector.load %arg6[%c0, %c0_1] : memref<512x128xf32, #tpu.memory_space<vmem>>, vector<512x128xf32>
    %c0_2 = arith.constant 0 : index
    %c0_3 = arith.constant 0 : index
    %4 = vector.load %arg2[%c0_2, %c0_3] : memref<512x512xf32, #tpu.memory_space<vmem>>, vector<512x512xf32>
    %c0_4 = arith.constant 0 : index
    %c0_5 = arith.constant 0 : index
    %5 = vector.load %arg3[%c0_4, %c0_5] : memref<512x128xf32, #tpu.memory_space<vmem>>, vector<512x128xf32>
    %cst = arith.constant dense<0.000000e+00> : vector<512x128xf32>
    %6 = tpu.matmul %4, %5, %cst {dimension_numbers = #tpu.dot_dimension_numbers<[1], [0], [0], [1], [0, 0, 1, 1], [], []>} : vector<512x512xf32>, vector<512x128xf32>, vector<512x128xf32> -> vector<512x128xf32>
    %7 = arith.addf %3, %6 : vector<512x128xf32>
    %c0_6 = arith.constant 0 : index
    %c0_7 = arith.constant 0 : index
    %8 = vector.load %arg6[%c0_6, %c0_7] : memref<512x128xf32, #tpu.memory_space<vmem>>, vector<512x128xf32>
    tpu.vector_store %arg6[%c0_6, %c0_7], %7 {strides = array<i32>} : memref<512x128xf32, #tpu.memory_space<vmem>>, vector<512x128xf32>,
    %c1_i32 = arith.constant 1 : i32
    %9 = arith.cmpi eq, %arg1, %c1_i32 : i32
    %10 = arith.extui %9 : i1 to i32
    %c0_i32_8 = arith.constant 0 : i32
    %11 = arith.cmpi ne, %10, %c0_i32_8 : i32
    scf.if %11 {
      %c0_9 = arith.constant 0 : index
      %c0_10 = arith.constant 0 : index
      %12 = vector.load %arg6[%c0_9, %c0_10] : memref<512x128xf32, #tpu.memory_space<vmem>>, vector<512x128xf32>
      %c0_11 = arith.constant 0 : index
      %c0_12 = arith.constant 0 : index
      %13 = vector.load %arg4[%c0_11, %c0_12] : memref<1x128xf32, #tpu.memory_space<vmem>>, vector<1x128xf32>
      %14 = vector.broadcast %13 : vector<1x128xf32> to vector<512x128xf32>
      %15 = arith.addf %12, %14 : vector<512x128xf32>
      %c0_13 = arith.constant 0 : index
      %c0_14 = arith.constant 0 : index
      %16 = vector.load %arg5[%c0_13, %c0_14] : memref<512x128xf32, #tpu.memory_space<vmem>>, vector<512x128xf32>
      tpu.vector_store %arg5[%c0_13, %c0_14], %15 {strides = array<i32>} : memref<512x128xf32, #tpu.memory_space<vmem>>, vector<512x128xf32>,
    } else {
    }
    return
  }
  func.func @transform_0(%arg0: i32, %arg1: i32) -> (i32, i32) {
    %c0_i32 = arith.constant 0 : i32
    return %arg0, %arg1 : i32, i32
  }
  func.func @transform_1(%arg0: i32, %arg1: i32) -> (i32, i32) {
    %c0_i32 = arith.constant 0 : i32
    %c0_i32_0 = arith.constant 0 : i32
    return %arg1, %c0_i32 : i32, i32
  }
  func.func @transform_2(%arg0: i32, %arg1: i32) -> (i32, i32) {
    %c0_i32 = arith.constant 0 : i32
    %c0_i32_0 = arith.constant 0 : i32
    %c0_i32_1 = arith.constant 0 : i32
    return %c0_i32, %c0_i32_0 : i32, i32
  }
  func.func @transform_3(%arg0: i32, %arg1: i32) -> (i32, i32) {
    %c0_i32 = arith.constant 0 : i32
    %c0_i32_0 = arith.constant 0 : i32
    return %arg0, %c0_i32 : i32, i32
  }
}

</mosaic_0001>

<llo_original>
// kernel: gcn_forward.2
$region0: #{gcn_forward.2}
  #allocation0 [shape = 'u32[]', space=smem, size = 0x4, offset = 0x4, fixed_abs, tag = 'smem constant byte address 0x4 - core index']
  #allocation1 [shape = 'u32[144,128]{1,0:T(1,128)}', space=vmem, size = 0x12000, scoped, tag = 'internal scratch']
  %s0 = inlined_call_operand.vmem [shape: f32[1024,64], index: 0, kind: input, shape index: {}]
  %s1 = inlined_call_operand.vmem [shape: f32[64,128], index: 1, kind: input, shape index: {}]
  %s2 = inlined_call_operand.vmem [shape: f32[1024,128], index: 2, kind: output, shape index: {}]
  %s3 = sld [smem:[#allocation0]]
  $region41: #{gcn_forward.2} parent=0
    _
  %s5 = ssub.s32 1, %s3
  %s6 = scalar_select 0, %s5, %s3
  loop: start=0, step=1, limit=4
  $region2: #{gcn_forward.2} parent=0 // loop_pre_header
    _
  $region3: #{gcn_forward.2} parent=0 // loop_header
    %s8 = sphi 0, %s12
    %p9 = scmp.ge.s32.totalorder %s8, 4
    %s18 = sphi 0, %s20
    %s21 = sphi 0, %s18
    %s22 = sphi 0, %s21
    %s38 = sphi 0, %s22
    %s42 = sphi 0, %s42
    %s44 = sphi 0, %s42
    %s45 = sphi 0, %s44
    %s59 = sphi 0, %s45
    %s65 = sphi 0, %s67
    %s68 = sphi 0, %s65
    %s69 = sphi 0, %s68
    %s85 = sphi 0, %s69
  $region4: #{gcn_forward.2} parent=0 // loop_header_branch
    %11 = sbr.rel (%p9) target = $region8
  $region5: #{gcn_forward.2} parent=0 // loop_body
    %s13 = ssub.s32 %s8, 1
    %s14 = ssub.s32 %s8, 2
    %s15 = sadd.s32 %s8, 1
    %s16 = ssub.s32 %s8, %s15
    %p17 = scmp.eq.s32.totalorder %s16, 0
    %s19 = sadd.s32 %s18, 1
    %s20 = scalar_select %p17, %s18, %s19
    %p23 = pneg %p17
    %p24 = scmp.eq.s32.totalorder %s8, 1
    %p25 = por %p23, %p24
    %p26 = scmp.ne.s32.totalorder %s18, %s21
    %p27 = scmp.eq.s32.totalorder %s8, 0
    %p28 = por %p26, %p27
    %p29 = scmp.ne.s32.totalorder %s18, %s21
    %p30 = scmp.eq.s32.totalorder %s13, 1
    %p31 = por %p29, %p30
    %p32 = scmp.ne.s32.totalorder %s21, %s22
    %p33 = scmp.eq.s32.totalorder %s13, 0
    %p34 = por %p32, %p33
    %p35 = scmp.ne.s32.totalorder %s21, %s22
    %p36 = scmp.eq.s32.totalorder %s14, 1
    %p37 = por %p35, %p36
    %p39 = scmp.ne.s32.totalorder %s22, %s38
    %p40 = scmp.eq.s32.totalorder %s14, 0
    %p41 = por %p39, %p40
    %s43 = sadd.s32 %s42, 1
    %p46 = scmp.eq.s32.totalorder %s8, 1
    %p47 = scmp.ne.s32.totalorder %s42, %s44
    %p48 = scmp.eq.s32.totalorder %s8, 0
    %p49 = por %p47, %p48
    %p50 = scmp.ne.s32.totalorder %s42, %s44
    %p51 = scmp.eq.s32.totalorder %s13, 1
    %p52 = por %p50, %p51
    %p53 = scmp.ne.s32.totalorder %s44, %s45
    %p54 = scmp.eq.s32.totalorder %s13, 0
    %p55 = por %p53, %p54
    %p56 = scmp.ne.s32.totalorder %s44, %s45
    %p57 = scmp.eq.s32.totalorder %s14, 1
    %p58 = por %p56, %p57
    %p60 = scmp.ne.s32.totalorder %s45, %s59
    %p61 = scmp.eq.s32.totalorder %s14, 0
    %p62 = por %p60, %p61
    %s63 = ssub.s32 %s8, %s15
    %p64 = scmp.eq.s32.totalorder %s63, 0
    %s66 = sadd.s32 %s65, 1
    %s67 = scalar_select %p64, %s65, %s66
    %p70 = pneg %p64
    %p71 = scmp.eq.s32.totalorder %s8, 1
    %p72 = por %p70, %p71
    %p73 = scmp.ne.s32.totalorder %s65, %s68
    %p74 = scmp.eq.s32.totalorder %s8, 0
    %p75 = por %p73, %p74
    %p76 = scmp.ne.s32.totalorder %s65, %s68
    %p77 = scmp.eq.s32.totalorder %s13, 1
    %p78 = por %p76, %p77
    %p79 = scmp.ne.s32.totalorder %s68, %s69
    %p80 = scmp.eq.s32.totalorder %s13, 0
    %p81 = por %p79, %p80
    %p82 = scmp.ne.s32.totalorder %s68, %s69
    %p83 = scmp.eq.s32.totalorder %s14, 1
    %p84 = por %p82, %p83
    %p86 = scmp.ne.s32.totalorder %s69, %s85
    %p87 = scmp.eq.s32.totalorder %s14, 0
    %p88 = por %p86, %p87
    %p89 = scmp.le.s32.totalorder 1, %s8
    %p90 = scmp.lt.s32.totalorder %s8, 3
    %p91 = pnand %p89, %p90
    %p92 = pneg %p91
    // Predicated region
    $region9: #{gcn_forward.2} parent=5 // pred_check
      _
    $region10: #{gcn_forward.2} parent=5 // pred_check_branch
      %94 = sbr.rel (%p91) target = $region12
    $region11: #{gcn_forward.2} parent=5 // pred_region
      %s95 = ssub.s32 %s8, 1
      // Predicated region
      $region13: #{gcn_forward.2} parent=11 // pred_check
        %p96 = pneg %p55
      $region14: #{gcn_forward.2} parent=11 // pred_check_branch
        %98 = sbr.rel (%p96) target = $region16
      $region15: #{gcn_forward.2} parent=11 // pred_region
        _
      $region16: #{gcn_forward.2} parent=11 // pred_fallthru
        _
    $region12: #{gcn_forward.2} parent=5 // pred_fallthru
      _
    %p99 = scmp.lt.s32.totalorder %s8, 2
    // Predicated region
    $region17: #{gcn_forward.2} parent=5 // pred_check
      %p100 = pneg %p99
    $region18: #{gcn_forward.2} parent=5 // pred_check_branch
      %102 = sbr.rel (%p100) target = $region20
    $region19: #{gcn_forward.2} parent=5 // pred_region
      // Predicated region
      $region21: #{gcn_forward.2} parent=19 // pred_check
        %p103 = pneg %p28
      $region22: #{gcn_forward.2} parent=19 // pred_check_branch
        %105 = sbr.rel (%p103) target = $region24
      $region23: #{gcn_forward.2} parent=19 // pred_region
        %s106 = smul.u32 64, %s8
        %p107 = scmp.lt.s32.totalorder %s106, 127
        %s108 = scalar_select %p107, %s106, 127
        %s109 = smul.addr %s108, 8
        %s110 = scalar_lea.vmem %s0, %s109
        %s111 = smul.u32 64, %s8
      $region24: #{gcn_forward.2} parent=19 // pred_fallthru
        _
    $region20: #{gcn_forward.2} parent=5 // pred_fallthru
      _
    %p112 = scmp.le.s32.totalorder 1, %s8
    %p113 = scmp.lt.s32.totalorder %s8, 3
    %p114 = pnand %p112, %p113
    %p115 = pneg %p114
    // Predicated region
    $region25: #{gcn_forward.2} parent=5 // pred_check
      _
    $region26: #{gcn_forward.2} parent=5 // pred_check_branch
      %117 = sbr.rel (%p114) target = $region28
    $region27: #{gcn_forward.2} parent=5 // pred_region
      %s118 = ssub.s32 %s8, 1
      %s119 = smul.u32 64, %s13
      %p120 = scmp.lt.s32.totalorder %s119, 127
      %s121 = scalar_select %p120, %s119, 127
      %s122 = smul.addr %s121, 8
      %s123 = scalar_lea.vmem %s0, %s122
      %p124 = pneg %p34
      %p125 = pneg %p31
      %p126 = pneg %p55
      %p127 = pneg %p52
      %p128 = pneg %p81
      %p129 = pneg %p78
      %s130 = smul.u32 64, %s13
      %p131 = scmp.lt.s32.totalorder %s130, 127
      %s132 = scalar_select %p131, %s130, 127
      %s133 = smul.addr %s132, 8
      %s134 = scalar_lea.vmem %s2, %s133
      %s135 = smul.u32 64, %s13
      %p136 = scmp.lt.s32.totalorder %s135, 127
      %s137 = scalar_select %p136, %s135, 127
      %s138 = smul.addr %s137, 8
      %s139 = scalar_lea.vmem %s0, %s138
      %s140 = smul.u32 64, %s13
      %s141 = smul.u32 64, %s13
      %p142 = scmp.lt.s32.totalorder %s141, 127
      %s143 = scalar_select %p142, %s141, 127
      %s144 = smul.addr %s143, 8
      %s145 = scalar_lea.vmem %s2, %s144
      %s146 = smul.u32 64, %s13
      %v147 = vld [vmem:[%s139] sm:$0xff]
      %v148 = vld [vmem:[%s139 + $0x8] sm:$0xff]
      %v149 = vld [vmem:[%s139 + $0x10] sm:$0xff]
      %v150 = vld [vmem:[%s139 + $0x18] sm:$0xff]
      %v151 = vld [vmem:[%s139 + $0x20] sm:$0xff]
      %v152 = vld [vmem:[%s139 + $0x28] sm:$0xff]
      %v153 = vld [vmem:[%s139 + $0x30] sm:$0xff]
      %v154 = vld [vmem:[%s139 + $0x38] sm:$0xff]
      %v155 = vld [vmem:[%s139 + $0x40] sm:$0xff]
      %v156 = vld [vmem:[%s139 + $0x48] sm:$0xff]
      %v157 = vld [vmem:[%s139 + $0x50] sm:$0xff]
      %v158 = vld [vmem:[%s139 + $0x58] sm:$0xff]
      %v159 = vld [vmem:[%s139 + $0x60] sm:$0xff]
      %v160 = vld [vmem:[%s139 + $0x68] sm:$0xff]
      %v161 = vld [vmem:[%s139 + $0x70] sm:$0xff]
      %v162 = vld [vmem:[%s139 + $0x78] sm:$0xff]
      %v163 = vld [vmem:[%s139 + $0x80] sm:$0xff]
      %v164 = vld [vmem:[%s139 + $0x88] sm:$0xff]
      %v165 = vld [vmem:[%s139 + $0x90] sm:$0xff]
      %v166 = vld [vmem:[%s139 + $0x98] sm:$0xff]
      %v167 = vld [vmem:[%s139 + $0xa0] sm:$0xff]
      %v168 = vld [vmem:[%s139 + $0xa8] sm:$0xff]
      %v169 = vld [vmem:[%s139 + $0xb0] sm:$0xff]
      %v170 = vld [vmem:[%s139 + $0xb8] sm:$0xff]
      %v171 = vld [vmem:[%s139 + $0xc0] sm:$0xff]
      %v172 = vld [vmem:[%s139 + $0xc8] sm:$0xff]
      %v173 = vld [vmem:[%s139 + $0xd0] sm:$0xff]
      %v174 = vld [vmem:[%s139 + $0xd8] sm:$0xff]
      %v175 = vld [vmem:[%s139 + $0xe0] sm:$0xff]
      %v176 = vld [vmem:[%s139 + $0xe8] sm:$0xff]
      %v177 = vld [vmem:[%s139 + $0xf0] sm:$0xff]
      %v178 = vld [vmem:[%s139 + $0xf8] sm:$0xff]
      %v179 = vld [vmem:[%s139 + $0x100] sm:$0xff]
      %v180 = vld [vmem:[%s139 + $0x108] sm:$0xff]
      %v181 = vld [vmem:[%s139 + $0x110] sm:$0xff]
      %v182 = vld [vmem:[%s139 + $0x118] sm:$0xff]
      %v183 = vld [vmem:[%s139 + $0x120] sm:$0xff]
      %v184 = vld [vmem:[%s139 + $0x128] sm:$0xff]
      %v185 = vld [vmem:[%s139 + $0x130] sm:$0xff]
      %v186 = vld [vmem:[%s139 + $0x138] sm:$0xff]
      %v187 = vld [vmem:[%s139 + $0x140] sm:$0xff]
      %v188 = vld [vmem:[%s139 + $0x148] sm:$0xff]
      %v189 = vld [vmem:[%s139 + $0x150] sm:$0xff]
      %v190 = vld [vmem:[%s139 + $0x158] sm:$0xff]
      %v191 = vld [vmem:[%s139 + $0x160] sm:$0xff]
      %v192 = vld [vmem:[%s139 + $0x168] sm:$0xff]
      %v193 = vld [vmem:[%s139 + $0x170] sm:$0xff]
      %v194 = vld [vmem:[%s139 + $0x178] sm:$0xff]
      %v195 = vld [vmem:[%s139 + $0x180] sm:$0xff]
      %v196 = vld [vmem:[%s139 + $0x188] sm:$0xff]
      %v197 = vld [vmem:[%s139 + $0x190] sm:$0xff]
      %v198 = vld [vmem:[%s139 + $0x198] sm:$0xff]
      %v199 = vld [vmem:[%s139 + $0x1a0] sm:$0xff]
      %v200 = vld [vmem:[%s139 + $0x1a8] sm:$0xff]
      %v201 = vld [vmem:[%s139 + $0x1b0] sm:$0xff]
      %v202 = vld [vmem:[%s139 + $0x1b8] sm:$0xff]
      %v203 = vld [vmem:[%s139 + $0x1c0] sm:$0xff]
      %v204 = vld [vmem:[%s139 + $0x1c8] sm:$0xff]
      %v205 = vld [vmem:[%s139 + $0x1d0] sm:$0xff]
      %v206 = vld [vmem:[%s139 + $0x1d8] sm:$0xff]
      %v207 = vld [vmem:[%s139 + $0x1e0] sm:$0xff]
      %v208 = vld [vmem:[%s139 + $0x1e8] sm:$0xff]
      %v209 = vld [vmem:[%s139 + $0x1f0] sm:$0xff]
      %v210 = vld [vmem:[%s139 + $0x1f8] sm:$0xff]
      %v211 = vld [vmem:[%s1] sm:$0xff]
      %v212 = vld [vmem:[%s1 + $0x8] sm:$0xff]
      %v213 = vld [vmem:[%s1 + $0x10] sm:$0xff]
      %v214 = vld [vmem:[%s1 + $0x18] sm:$0xff]
      %v215 = vld [vmem:[%s1 + $0x20] sm:$0xff]
      %v216 = vld [vmem:[%s1 + $0x28] sm:$0xff]
      %v217 = vld [vmem:[%s1 + $0x30] sm:$0xff]
      %v218 = vld [vmem:[%s1 + $0x38] sm:$0xff]
      %vm219 = vcmask 523264
      %v221 = vsel %vm219, %v147, 0
      %v224 = vsel %vm219, %v148, 0
      %v227 = vsel %vm219, %v149, 0
      %v230 = vsel %vm219, %v150, 0
      %v233 = vsel %vm219, %v151, 0
      %v236 = vsel %vm219, %v152, 0
      %v239 = vsel %vm219, %v153, 0
      %v242 = vsel %vm219, %v154, 0
      %v245 = vsel %vm219, %v155, 0
      %v248 = vsel %vm219, %v156, 0
      %v251 = vsel %vm219, %v157, 0
      %v254 = vsel %vm219, %v158, 0
      %v257 = vsel %vm219, %v159, 0
      %v260 = vsel %vm219, %v160, 0
      %v263 = vsel %vm219, %v161, 0
      %v266 = vsel %vm219, %v162, 0
      %v269 = vsel %vm219, %v163, 0
      %v272 = vsel %vm219, %v164, 0
      %v275 = vsel %vm219, %v165, 0
      %v278 = vsel %vm219, %v166, 0
      %v281 = vsel %vm219, %v167, 0
      %v284 = vsel %vm219, %v168, 0
      %v287 = vsel %vm219, %v169, 0
      %v290 = vsel %vm219, %v170, 0
      %v293 = vsel %vm219, %v171, 0
      %v296 = vsel %vm219, %v172, 0
      %v299 = vsel %vm219, %v173, 0
      %v302 = vsel %vm219, %v174, 0
      %v305 = vsel %vm219, %v175, 0
      %v308 = vsel %vm219, %v176, 0
      %v311 = vsel %vm219, %v177, 0
      %v314 = vsel %vm219, %v178, 0
      %v317 = vsel %vm219, %v179, 0
      %v320 = vsel %vm219, %v180, 0
      %v323 = vsel %vm219, %v181, 0
      %v326 = vsel %vm219, %v182, 0
      %v329 = vsel %vm219, %v183, 0
      %v332 = vsel %vm219, %v184, 0
      %v335 = vsel %vm219, %v185, 0
      %v338 = vsel %vm219, %v186, 0
      %v341 = vsel %vm219, %v187, 0
      %v344 = vsel %vm219, %v188, 0
      %v347 = vsel %vm219, %v189, 0
      %v350 = vsel %vm219, %v190, 0
      %v353 = vsel %vm219, %v191, 0
      %v356 = vsel %vm219, %v192, 0
      %v359 = vsel %vm219, %v193, 0
      %v362 = vsel %vm219, %v194, 0
      %v365 = vsel %vm219, %v195, 0
      %v368 = vsel %vm219, %v196, 0
      %v371 = vsel %vm219, %v197, 0
      %v374 = vsel %vm219, %v198, 0
      %v377 = vsel %vm219, %v199, 0
      %v380 = vsel %vm219, %v200, 0
      %v383 = vsel %vm219, %v201, 0
      %v386 = vsel %vm219, %v202, 0
      %v389 = vsel %vm219, %v203, 0
      %v392 = vsel %vm219, %v204, 0
      %v395 = vsel %vm219, %v205, 0
      %v398 = vsel %vm219, %v206, 0
      %v401 = vsel %vm219, %v207, 0
      %v404 = vsel %vm219, %v208, 0
      %v407 = vsel %vm219, %v209, 0
      %v410 = vsel %vm219, %v210, 0
      %412 = vmatprep.subr.mxu0 0.0
      %413 = vmatpush1.msra.mxu0 0.0
      %414 = vmatprep.subr.mxu0 0.0
      %415 = vmatpush1.msra.mxu0 0.0
      %416 = vmatprep.subr.mxu0 0.0
      %417 = vmatpush1.msra.mxu0 0.0
      %418 = vmatprep.subr.mxu0 0.0
      %419 = vmatpush1.msra.mxu0 0.0
      %420 = vmatprep.subr.mxu0 0.0
      %421 = vmatpush1.msra.mxu0 0.0
      %422 = vmatprep.subr.mxu0 0.0
      %423 = vmatpush1.msra.mxu0 0.0
      %424 = vmatprep.subr.mxu0 0.0
      %425 = vmatpush1.msra.mxu0 0.0
      %426 = vmatprep.subr.mxu0 0.0
      %427 = vmatpush1.msra.mxu0 0.0
      %428 = vmatprep.subr.mxu0 0.0
      %429 = vmatpush1.msra.mxu0 %v218
      %430 = vmatprep.subr.mxu0 0.0
      %431 = vmatpush1.msra.mxu0 %v217
      %432 = vmatprep.subr.mxu0 0.0
      %433 = vmatpush1.msra.mxu0 %v216
      %434 = vmatprep.subr.mxu0 0.0
      %435 = vmatpush1.msra.mxu0 %v215
      %436 = vmatprep.subr.mxu0 0.0
      %437 = vmatpush1.msra.mxu0 %v214
      %438 = vmatprep.subr.mxu0 0.0
      %439 = vmatpush1.msra.mxu0 %v213
      %440 = vmatprep.subr.mxu0 0.0
      %441 = vmatpush1.msra.mxu0 %v212
      %442 = vmatprep.subr.mxu0 0.0
      %443 = vmatpush1.msra.mxu0 %v211
      %444 = vmatprep.subr.mxu0 0.0
      %445 = vmatpush2.msra.mxu0 0.0
      %446 = vmatprep.subr.mxu0 0.0
      %447 = vmatpush2.msra.mxu0 0.0
      %448 = vmatprep.subr.mxu0 0.0
      %449 = vmatpush2.msra.mxu0 0.0
      %450 = vmatprep.subr.mxu0 0.0
      %451 = vmatpush2.msra.mxu0 0.0
      %452 = vmatprep.subr.mxu0 0.0
      %453 = vmatpush2.msra.mxu0 0.0
      %454 = vmatprep.subr.mxu0 0.0
      %455 = vmatpush2.msra.mxu0 0.0
      %456 = vmatprep.subr.mxu0 0.0
      %457 = vmatpush2.msra.mxu0 0.0
      %458 = vmatprep.subr.mxu0 0.0
      %459 = vmatpush2.msra.mxu0 0.0
      %460 = vmatprep.subr.mxu0 0.0
      %461 = vmatpush2.msra.mxu0 0.0
      %462 = vmatprep.subr.mxu0 0.0
      %463 = vmatpush2.msra.mxu0 0.0
      %464 = vmatprep.subr.mxu0 0.0
      %465 = vmatpush2.msra.mxu0 0.0
      %466 = vmatprep.subr.mxu0 0.0
      %467 = vmatpush2.msra.mxu0 0.0
      %468 = vmatprep.subr.mxu0 0.0
      %469 = vmatpush2.msra.mxu0 0.0
      %470 = vmatprep.subr.mxu0 0.0
      %471 = vmatpush2.msra.mxu0 0.0
      %472 = vmatprep.subr.mxu0 0.0
      %473 = vmatpush2.msra.mxu0 0.0
      %474 = vmatprep.subr.mxu0 0.0
      %475 = vmatpush2.msra.mxu0 0.0
      %476 = vmatprep.mubr.f32.mxu0 0.0
      %477 = vmatmul.mubr.f32.gmra.mxu0 %v221
      %v478 = vpop.f32.mrf.mxu0
      %v479 = vadd.f32 0.0, %v478
      %v480 = vpop.f32.mrf.mxu0
      %481 = vmatprep.mubr.f32.mxu0 0.0
      %482 = vmatmul.mubr.f32.gmra.mxu0 %v224
      %v483 = vpop.f32.mrf.mxu0
      %v484 = vadd.f32 0.0, %v483
      %v485 = vpop.f32.mrf.mxu0
      %486 = vmatprep.mubr.f32.mxu0 0.0
      %487 = vmatmul.mubr.f32.gmra.mxu0 %v227
      %v488 = vpop.f32.mrf.mxu0
      %v489 = vadd.f32 0.0, %v488
      %v490 = vpop.f32.mrf.mxu0
      %491 = vmatprep.mubr.f32.mxu0 0.0
      %492 = vmatmul.mubr.f32.gmra.mxu0 %v230
      %v493 = vpop.f32.mrf.mxu0
      %v494 = vadd.f32 0.0, %v493
      %v495 = vpop.f32.mrf.mxu0
      %496 = vmatprep.mubr.f32.mxu0 0.0
      %497 = vmatmul.mubr.f32.gmra.mxu0 %v233
      %v498 = vpop.f32.mrf.mxu0
      %v499 = vadd.f32 0.0, %v498
      %v500 = vpop.f32.mrf.mxu0
      %501 = vmatprep.mubr.f32.mxu0 0.0
      %502 = vmatmul.mubr.f32.gmra.mxu0 %v236
      %v503 = vpop.f32.mrf.mxu0
      %v504 = vadd.f32 0.0, %v503
      %v505 = vpop.f32.mrf.mxu0
      %506 = vmatprep.mubr.f32.mxu0 0.0
      %507 = vmatmul.mubr.f32.gmra.mxu0 %v239
      %v508 = vpop.f32.mrf.mxu0
      %v509 = vadd.f32 0.0, %v508
      %v510 = vpop.f32.mrf.mxu0
      %511 = vmatprep.mubr.f32.mxu0 0.0
      %512 = vmatmul.mubr.f32.gmra.mxu0 %v242
      %v513 = vpop.f32.mrf.mxu0
      %v514 = vadd.f32 0.0, %v513
      %v515 = vpop.f32.mrf.mxu0
      %516 = vmatprep.mubr.f32.mxu0 0.0
      %517 = vmatmul.mubr.f32.gmra.mxu0 %v245
      %v518 = vpop.f32.mrf.mxu0
      %v519 = vadd.f32 0.0, %v518
      %v520 = vpop.f32.mrf.mxu0
      %521 = vmatprep.mubr.f32.mxu0 0.0
      %522 = vmatmul.mubr.f32.gmra.mxu0 %v248
      %v523 = vpop.f32.mrf.mxu0
      %v524 = vadd.f32 0.0, %v523
      %v525 = vpop.f32.mrf.mxu0
      %526 = vmatprep.mubr.f32.mxu0 0.0
      %527 = vmatmul.mubr.f32.gmra.mxu0 %v251
      %v528 = vpop.f32.mrf.mxu0
      %v529 = vadd.f32 0.0, %v528
      %v530 = vpop.f32.mrf.mxu0
      %531 = vmatprep.mubr.f32.mxu0 0.0
      %532 = vmatmul.mubr.f32.gmra.mxu0 %v254
      %v533 = vpop.f32.mrf.mxu0
      %v534 = vadd.f32 0.0, %v533
      %v535 = vpop.f32.mrf.mxu0
      %536 = vmatprep.mubr.f32.mxu0 0.0
      %537 = vmatmul.mubr.f32.gmra.mxu0 %v257
      %v538 = vpop.f32.mrf.mxu0
      %v539 = vadd.f32 0.0, %v538
      %v540 = vpop.f32.mrf.mxu0
      %541 = vmatprep.mubr.f32.mxu0 0.0
      %542 = vmatmul.mubr.f32.gmra.mxu0 %v260
      %v543 = vpop.f32.mrf.mxu0
      %v544 = vadd.f32 0.0, %v543
      %v545 = vpop.f32.mrf.mxu0
      %546 = vmatprep.mubr.f32.mxu0 0.0
      %547 = vmatmul.mubr.f32.gmra.mxu0 %v263
      %v548 = vpop.f32.mrf.mxu0
      %v549 = vadd.f32 0.0, %v548
      %v550 = vpop.f32.mrf.mxu0
      %551 = vmatprep.mubr.f32.mxu0 0.0
      %552 = vmatmul.mubr.f32.gmra.mxu0 %v266
      %v553 = vpop.f32.mrf.mxu0
      %v554 = vadd.f32 0.0, %v553
      %v555 = vpop.f32.mrf.mxu0
      %556 = vmatprep.mubr.f32.mxu0 0.0
      %557 = vmatmul.mubr.f32.gmra.mxu0 %v269
      %v558 = vpop.f32.mrf.mxu0
      %v559 = vadd.f32 0.0, %v558
      %v560 = vpop.f32.mrf.mxu0
      %561 = vmatprep.mubr.f32.mxu0 0.0
      %562 = vmatmul.mubr.f32.gmra.mxu0 %v272
      %v563 = vpop.f32.mrf.mxu0
      %v564 = vadd.f32 0.0, %v563
      %v565 = vpop.f32.mrf.mxu0
      %566 = vmatprep.mubr.f32.mxu0 0.0
      %567 = vmatmul.mubr.f32.gmra.mxu0 %v275
      %v568 = vpop.f32.mrf.mxu0
      %v569 = vadd.f32 0.0, %v568
      %v570 = vpop.f32.mrf.mxu0
      %571 = vmatprep.mubr.f32.mxu0 0.0
      %572 = vmatmul.mubr.f32.gmra.mxu0 %v278
      %v573 = vpop.f32.mrf.mxu0
      %v574 = vadd.f32 0.0, %v573
      %v575 = vpop.f32.mrf.mxu0
      %576 = vmatprep.mubr.f32.mxu0 0.0
      %577 = vmatmul.mubr.f32.gmra.mxu0 %v281
      %v578 = vpop.f32.mrf.mxu0
      %v579 = vadd.f32 0.0, %v578
      %v580 = vpop.f32.mrf.mxu0
      %581 = vmatprep.mubr.f32.mxu0 0.0
      %582 = vmatmul.mubr.f32.gmra.mxu0 %v284
      %v583 = vpop.f32.mrf.mxu0
      %v584 = vadd.f32 0.0, %v583
      %v585 = vpop.f32.mrf.mxu0
      %586 = vmatprep.mubr.f32.mxu0 0.0
      %587 = vmatmul.mubr.f32.gmra.mxu0 %v287
      %v588 = vpop.f32.mrf.mxu0
      %v589 = vadd.f32 0.0, %v588
      %v590 = vpop.f32.mrf.mxu0
      %591 = vmatprep.mubr.f32.mxu0 0.0
      %592 = vmatmul.mubr.f32.gmra.mxu0 %v290
      %v593 = vpop.f32.mrf.mxu0
      %v594 = vadd.f32 0.0, %v593
      %v595 = vpop.f32.mrf.mxu0
      %596 = vmatprep.mubr.f32.mxu0 0.0
      %597 = vmatmul.mubr.f32.gmra.mxu0 %v293
      %v598 = vpop.f32.mrf.mxu0
      %v599 = vadd.f32 0.0, %v598
      %v600 = vpop.f32.mrf.mxu0
      %601 = vmatprep.mubr.f32.mxu0 0.0
      %602 = vmatmul.mubr.f32.gmra.mxu0 %v296
      %v603 = vpop.f32.mrf.mxu0
      %v604 = vadd.f32 0.0, %v603
      %v605 = vpop.f32.mrf.mxu0
      %606 = vmatprep.mubr.f32.mxu0 0.0
      %607 = vmatmul.mubr.f32.gmra.mxu0 %v299
      %v608 = vpop.f32.mrf.mxu0
      %v609 = vadd.f32 0.0, %v608
      %v610 = vpop.f32.mrf.mxu0
      %611 = vmatprep.mubr.f32.mxu0 0.0
      %612 = vmatmul.mubr.f32.gmra.mxu0 %v302
      %v613 = vpop.f32.mrf.mxu0
      %v614 = vadd.f32 0.0, %v613
      %v615 = vpop.f32.mrf.mxu0
      %616 = vmatprep.mubr.f32.mxu0 0.0
      %617 = vmatmul.mubr.f32.gmra.mxu0 %v305
      %v618 = vpop.f32.mrf.mxu0
      %v619 = vadd.f32 0.0, %v618
      %v620 = vpop.f32.mrf.mxu0
      %621 = vmatprep.mubr.f32.mxu0 0.0
      %622 = vmatmul.mubr.f32.gmra.mxu0 %v308
      %v623 = vpop.f32.mrf.mxu0
      %v624 = vadd.f32 0.0, %v623
      %v625 = vpop.f32.mrf.mxu0
      %626 = vmatprep.mubr.f32.mxu0 0.0
      %627 = vmatmul.mubr.f32.gmra.mxu0 %v311
      %v628 = vpop.f32.mrf.mxu0
      %v629 = vadd.f32 0.0, %v628
      %v630 = vpop.f32.mrf.mxu0
      %631 = vmatprep.mubr.f32.mxu0 0.0
      %632 = vmatmul.mubr.f32.gmra.mxu0 %v314
      %v633 = vpop.f32.mrf.mxu0
      %v634 = vadd.f32 0.0, %v633
      %v635 = vpop.f32.mrf.mxu0
      %636 = vmatprep.mubr.f32.mxu0 0.0
      %637 = vmatmul.mubr.f32.gmra.mxu0 %v317
      %v638 = vpop.f32.mrf.mxu0
      %v639 = vadd.f32 0.0, %v638
      %v640 = vpop.f32.mrf.mxu0
      %641 = vmatprep.mubr.f32.mxu0 0.0
      %642 = vmatmul.mubr.f32.gmra.mxu0 %v320
      %v643 = vpop.f32.mrf.mxu0
      %v644 = vadd.f32 0.0, %v643
      %v645 = vpop.f32.mrf.mxu0
      %646 = vmatprep.mubr.f32.mxu0 0.0
      %647 = vmatmul.mubr.f32.gmra.mxu0 %v323
      %v648 = vpop.f32.mrf.mxu0
      %v649 = vadd.f32 0.0, %v648
      %v650 = vpop.f32.mrf.mxu0
      %651 = vmatprep.mubr.f32.mxu0 0.0
      %652 = vmatmul.mubr.f32.gmra.mxu0 %v326
      %v653 = vpop.f32.mrf.mxu0
      %v654 = vadd.f32 0.0, %v653
      %v655 = vpop.f32.mrf.mxu0
      %656 = vmatprep.mubr.f32.mxu0 0.0
      %657 = vmatmul.mubr.f32.gmra.mxu0 %v329
      %v658 = vpop.f32.mrf.mxu0
      %v659 = vadd.f32 0.0, %v658
      %v660 = vpop.f32.mrf.mxu0
      %661 = vmatprep.mubr.f32.mxu0 0.0
      %662 = vmatmul.mubr.f32.gmra.mxu0 %v332
      %v663 = vpop.f32.mrf.mxu0
      %v664 = vadd.f32 0.0, %v663
      %v665 = vpop.f32.mrf.mxu0
      %666 = vmatprep.mubr.f32.mxu0 0.0
      %667 = vmatmul.mubr.f32.gmra.mxu0 %v335
      %v668 = vpop.f32.mrf.mxu0
      %v669 = vadd.f32 0.0, %v668
      %v670 = vpop.f32.mrf.mxu0
      %671 = vmatprep.mubr.f32.mxu0 0.0
      %672 = vmatmul.mubr.f32.gmra.mxu0 %v338
      %v673 = vpop.f32.mrf.mxu0
      %v674 = vadd.f32 0.0, %v673
      %v675 = vpop.f32.mrf.mxu0
      %676 = vmatprep.mubr.f32.mxu0 0.0
      %677 = vmatmul.mubr.f32.gmra.mxu0 %v341
      %v678 = vpop.f32.mrf.mxu0
      %v679 = vadd.f32 0.0, %v678
      %v680 = vpop.f32.mrf.mxu0
      %681 = vmatprep.mubr.f32.mxu0 0.0
      %682 = vmatmul.mubr.f32.gmra.mxu0 %v344
      %v683 = vpop.f32.mrf.mxu0
      %v684 = vadd.f32 0.0, %v683
      %v685 = vpop.f32.mrf.mxu0
      %686 = vmatprep.mubr.f32.mxu0 0.0
      %687 = vmatmul.mubr.f32.gmra.mxu0 %v347
      %v688 = vpop.f32.mrf.mxu0
      %v689 = vadd.f32 0.0, %v688
      %v690 = vpop.f32.mrf.mxu0
      %691 = vmatprep.mubr.f32.mxu0 0.0
      %692 = vmatmul.mubr.f32.gmra.mxu0 %v350
      %v693 = vpop.f32.mrf.mxu0
      %v694 = vadd.f32 0.0, %v693
      %v695 = vpop.f32.mrf.mxu0
      %696 = vmatprep.mubr.f32.mxu0 0.0
      %697 = vmatmul.mubr.f32.gmra.mxu0 %v353
      %v698 = vpop.f32.mrf.mxu0
      %v699 = vadd.f32 0.0, %v698
      %v700 = vpop.f32.mrf.mxu0
      %701 = vmatprep.mubr.f32.mxu0 0.0
      %702 = vmatmul.mubr.f32.gmra.mxu0 %v356
      %v703 = vpop.f32.mrf.mxu0
      %v704 = vadd.f32 0.0, %v703
      %v705 = vpop.f32.mrf.mxu0
      %706 = vmatprep.mubr.f32.mxu0 0.0
      %707 = vmatmul.mubr.f32.gmra.mxu0 %v359
      %v708 = vpop.f32.mrf.mxu0
      %v709 = vadd.f32 0.0, %v708
      %v710 = vpop.f32.mrf.mxu0
      %711 = vmatprep.mubr.f32.mxu0 0.0
      %712 = vmatmul.mubr.f32.gmra.mxu0 %v362
      %v713 = vpop.f32.mrf.mxu0
      %v714 = vadd.f32 0.0, %v713
      %v715 = vpop.f32.mrf.mxu0
      %716 = vmatprep.mubr.f32.mxu0 0.0
      %717 = vmatmul.mubr.f32.gmra.mxu0 %v365
      %v718 = vpop.f32.mrf.mxu0
      %v719 = vadd.f32 0.0, %v718
      %v720 = vpop.f32.mrf.mxu0
      %721 = vmatprep.mubr.f32.mxu0 0.0
      %722 = vmatmul.mubr.f32.gmra.mxu0 %v368
      %v723 = vpop.f32.mrf.mxu0
      %v724 = vadd.f32 0.0, %v723
      %v725 = vpop.f32.mrf.mxu0
      %726 = vmatprep.mubr.f32.mxu0 0.0
      %727 = vmatmul.mubr.f32.gmra.mxu0 %v371
      %v728 = vpop.f32.mrf.mxu0
      %v729 = vadd.f32 0.0, %v728
      %v730 = vpop.f32.mrf.mxu0
      %731 = vmatprep.mubr.f32.mxu0 0.0
      %732 = vmatmul.mubr.f32.gmra.mxu0 %v374
      %v733 = vpop.f32.mrf.mxu0
      %v734 = vadd.f32 0.0, %v733
      %v735 = vpop.f32.mrf.mxu0
      %736 = vmatprep.mubr.f32.mxu0 0.0
      %737 = vmatmul.mubr.f32.gmra.mxu0 %v377
      %v738 = vpop.f32.mrf.mxu0
      %v739 = vadd.f32 0.0, %v738
      %v740 = vpop.f32.mrf.mxu0
      %741 = vmatprep.mubr.f32.mxu0 0.0
      %742 = vmatmul.mubr.f32.gmra.mxu0 %v380
      %v743 = vpop.f32.mrf.mxu0
      %v744 = vadd.f32 0.0, %v743
      %v745 = vpop.f32.mrf.mxu0
      %746 = vmatprep.mubr.f32.mxu0 0.0
      %747 = vmatmul.mubr.f32.gmra.mxu0 %v383
      %v748 = vpop.f32.mrf.mxu0
      %v749 = vadd.f32 0.0, %v748
      %v750 = vpop.f32.mrf.mxu0
      %751 = vmatprep.mubr.f32.mxu0 0.0
      %752 = vmatmul.mubr.f32.gmra.mxu0 %v386
      %v753 = vpop.f32.mrf.mxu0
      %v754 = vadd.f32 0.0, %v753
      %v755 = vpop.f32.mrf.mxu0
      %756 = vmatprep.mubr.f32.mxu0 0.0
      %757 = vmatmul.mubr.f32.gmra.mxu0 %v389
      %v758 = vpop.f32.mrf.mxu0
      %v759 = vadd.f32 0.0, %v758
      %v760 = vpop.f32.mrf.mxu0
      %761 = vmatprep.mubr.f32.mxu0 0.0
      %762 = vmatmul.mubr.f32.gmra.mxu0 %v392
      %v763 = vpop.f32.mrf.mxu0
      %v764 = vadd.f32 0.0, %v763
      %v765 = vpop.f32.mrf.mxu0
      %766 = vmatprep.mubr.f32.mxu0 0.0
      %767 = vmatmul.mubr.f32.gmra.mxu0 %v395
      %v768 = vpop.f32.mrf.mxu0
      %v769 = vadd.f32 0.0, %v768
      %v770 = vpop.f32.mrf.mxu0
      %771 = vmatprep.mubr.f32.mxu0 0.0
      %772 = vmatmul.mubr.f32.gmra.mxu0 %v398
      %v773 = vpop.f32.mrf.mxu0
      %v774 = vadd.f32 0.0, %v773
      %v775 = vpop.f32.mrf.mxu0
      %776 = vmatprep.mubr.f32.mxu0 0.0
      %777 = vmatmul.mubr.f32.gmra.mxu0 %v401
      %v778 = vpop.f32.mrf.mxu0
      %v779 = vadd.f32 0.0, %v778
      %v780 = vpop.f32.mrf.mxu0
      %781 = vmatprep.mubr.f32.mxu0 0.0
      %782 = vmatmul.mubr.f32.gmra.mxu0 %v404
      %v783 = vpop.f32.mrf.mxu0
      %v784 = vadd.f32 0.0, %v783
      %v785 = vpop.f32.mrf.mxu0
      %786 = vmatprep.mubr.f32.mxu0 0.0
      %787 = vmatmul.mubr.f32.gmra.mxu0 %v407
      %v788 = vpop.f32.mrf.mxu0
      %v789 = vadd.f32 0.0, %v788
      %v790 = vpop.f32.mrf.mxu0
      %791 = vmatprep.mubr.f32.mxu0 0.0
      %792 = vmatmul.mubr.f32.gmra.mxu0 %v410
      %v793 = vpop.f32.mrf.mxu0
      %v794 = vadd.f32 0.0, %v793
      %v795 = vpop.f32.mrf.mxu0
      %796 = vdwg.mxu0
      %797 = vst [vmem:[%s145] sm:$0xff] %v479
      %798 = vst [vmem:[%s145 + $0x8] sm:$0xff] %v484
      %799 = vst [vmem:[%s145 + $0x10] sm:$0xff] %v489
      %800 = vst [vmem:[%s145 + $0x18] sm:$0xff] %v494
      %801 = vst [vmem:[%s145 + $0x20] sm:$0xff] %v499
      %802 = vst [vmem:[%s145 + $0x28] sm:$0xff] %v504
      %803 = vst [vmem:[%s145 + $0x30] sm:$0xff] %v509
      %804 = vst [vmem:[%s145 + $0x38] sm:$0xff] %v514
      %805 = vst [vmem:[%s145 + $0x40] sm:$0xff] %v519
      %806 = vst [vmem:[%s145 + $0x48] sm:$0xff] %v524
      %807 = vst [vmem:[%s145 + $0x50] sm:$0xff] %v529
      %808 = vst [vmem:[%s145 + $0x58] sm:$0xff] %v534
      %809 = vst [vmem:[%s145 + $0x60] sm:$0xff] %v539
      %810 = vst [vmem:[%s145 + $0x68] sm:$0xff] %v544
      %811 = vst [vmem:[%s145 + $0x70] sm:$0xff] %v549
      %812 = vst [vmem:[%s145 + $0x78] sm:$0xff] %v554
      %813 = vst [vmem:[%s145 + $0x80] sm:$0xff] %v559
      %814 = vst [vmem:[%s145 + $0x88] sm:$0xff] %v564
      %815 = vst [vmem:[%s145 + $0x90] sm:$0xff] %v569
      %816 = vst [vmem:[%s145 + $0x98] sm:$0xff] %v574
      %817 = vst [vmem:[%s145 + $0xa0] sm:$0xff] %v579
      %818 = vst [vmem:[%s145 + $0xa8] sm:$0xff] %v584
      %819 = vst [vmem:[%s145 + $0xb0] sm:$0xff] %v589
      %820 = vst [vmem:[%s145 + $0xb8] sm:$0xff] %v594
      %821 = vst [vmem:[%s145 + $0xc0] sm:$0xff] %v599
      %822 = vst [vmem:[%s145 + $0xc8] sm:$0xff] %v604
      %823 = vst [vmem:[%s145 + $0xd0] sm:$0xff] %v609
      %824 = vst [vmem:[%s145 + $0xd8] sm:$0xff] %v614
      %825 = vst [vmem:[%s145 + $0xe0] sm:$0xff] %v619
      %826 = vst [vmem:[%s145 + $0xe8] sm:$0xff] %v624
      %827 = vst [vmem:[%s145 + $0xf0] sm:$0xff] %v629
      %828 = vst [vmem:[%s145 + $0xf8] sm:$0xff] %v634
      %829 = vst [vmem:[%s145 + $0x100] sm:$0xff] %v639
      %830 = vst [vmem:[%s145 + $0x108] sm:$0xff] %v644
      %831 = vst [vmem:[%s145 + $0x110] sm:$0xff] %v649
      %832 = vst [vmem:[%s145 + $0x118] sm:$0xff] %v654
      %833 = vst [vmem:[%s145 + $0x120] sm:$0xff] %v659
      %834 = vst [vmem:[%s145 + $0x128] sm:$0xff] %v664
      %835 = vst [vmem:[%s145 + $0x130] sm:$0xff] %v669
      %836 = vst [vmem:[%s145 + $0x138] sm:$0xff] %v674
      %837 = vst [vmem:[%s145 + $0x140] sm:$0xff] %v679
      %838 = vst [vmem:[%s145 + $0x148] sm:$0xff] %v684
      %839 = vst [vmem:[%s145 + $0x150] sm:$0xff] %v689
      %840 = vst [vmem:[%s145 + $0x158] sm:$0xff] %v694
      %841 = vst [vmem:[%s145 + $0x160] sm:$0xff] %v699
      %842 = vst [vmem:[%s145 + $0x168] sm:$0xff] %v704
      %843 = vst [vmem:[%s145 + $0x170] sm:$0xff] %v709
      %844 = vst [vmem:[%s145 + $0x178] sm:$0xff] %v714
      %845 = vst [vmem:[%s145 + $0x180] sm:$0xff] %v719
      %846 = vst [vmem:[%s145 + $0x188] sm:$0xff] %v724
      %847 = vst [vmem:[%s145 + $0x190] sm:$0xff] %v729
      %848 = vst [vmem:[%s145 + $0x198] sm:$0xff] %v734
      %849 = vst [vmem:[%s145 + $0x1a0] sm:$0xff] %v739
      %850 = vst [vmem:[%s145 + $0x1a8] sm:$0xff] %v744
      %851 = vst [vmem:[%s145 + $0x1b0] sm:$0xff] %v749
      %852 = vst [vmem:[%s145 + $0x1b8] sm:$0xff] %v754
      %853 = vst [vmem:[%s145 + $0x1c0] sm:$0xff] %v759
      %854 = vst [vmem:[%s145 + $0x1c8] sm:$0xff] %v764
      %855 = vst [vmem:[%s145 + $0x1d0] sm:$0xff] %v769
      %856 = vst [vmem:[%s145 + $0x1d8] sm:$0xff] %v774
      %857 = vst [vmem:[%s145 + $0x1e0] sm:$0xff] %v779
      %858 = vst [vmem:[%s145 + $0x1e8] sm:$0xff] %v784
      %859 = vst [vmem:[%s145 + $0x1f0] sm:$0xff] %v789
      %860 = vst [vmem:[%s145 + $0x1f8] sm:$0xff] %v794
      %s861 = smul.u32 64, %s13
      %p862 = scmp.lt.s32.totalorder %s861, 127
      %s863 = scalar_select %p862, %s861, 127
      %s864 = smul.addr %s863, 8
      %s865 = scalar_lea.vmem %s2, %s864
      // Predicated region
      $region29: #{gcn_forward.2} parent=27 // pred_check
        %p866 = pneg %p78
      $region30: #{gcn_forward.2} parent=27 // pred_check_branch
        %868 = sbr.rel (%p866) target = $region32
      $region31: #{gcn_forward.2} parent=27 // pred_region
        %s869 = smul.u32 64, %s13
      $region32: #{gcn_forward.2} parent=27 // pred_fallthru
        _
    $region28: #{gcn_forward.2} parent=5 // pred_fallthru
      _
    %p870 = scmp.le.s32.totalorder 2, %s8
    // Predicated region
    $region33: #{gcn_forward.2} parent=5 // pred_check
      %p871 = pneg %p870
    $region34: #{gcn_forward.2} parent=5 // pred_check_branch
      %873 = sbr.rel (%p871) target = $region36
    $region35: #{gcn_forward.2} parent=5 // pred_region
      %s874 = ssub.s32 %s8, 2
      // Predicated region
      $region37: #{gcn_forward.2} parent=35 // pred_check
        %p875 = pneg %p84
      $region38: #{gcn_forward.2} parent=35 // pred_check_branch
        %877 = sbr.rel (%p875) target = $region40
      $region39: #{gcn_forward.2} parent=35 // pred_region
        %s878 = smul.u32 64, %s14
        %p879 = scmp.lt.s32.totalorder %s878, 127
        %s880 = scalar_select %p879, %s878, 127
        %s881 = smul.addr %s880, 8
        %s882 = scalar_lea.vmem %s2, %s881
      $region40: #{gcn_forward.2} parent=35 // pred_fallthru
        _
    $region36: #{gcn_forward.2} parent=5 // pred_fallthru
      _
  $region6: #{gcn_forward.2} parent=0 // loop_footer
    %s12 = sadd.s32 1, %s8
  $region7: #{gcn_forward.2} parent=0 // loop_footer_branch
    %7 = sbr.rel target = $region3
  $region8: #{gcn_forward.2} parent=0 // loop_exit
    _

// kernel: gcn_forward.3
$region0: #{gcn_forward.3}
  #allocation0 [shape = 'u32[]', space=smem, size = 0x4, offset = 0x4, fixed_abs, tag = 'smem constant byte address 0x4 - core index']
  #allocation1 [shape = 'u32[144,128]{1,0:T(1,128)}', space=vmem, size = 0x12000, scoped, tag = 'internal scratch']
  #allocation2 [shape = 'f32[512,128]{1,0:T(8,128)}', space=vmem, size = 0x40000, scoped, tag = 'scratch operand']
  %s0 = inlined_call_operand.vmem [shape: f32[1024,1024], index: 0, kind: input, shape index: {}]
  %s1 = inlined_call_operand.vmem [shape: f32[1024,128], index: 1, kind: input, shape index: {}]
  %s2 = inlined_call_operand.vmem [shape: f32[1,128], index: 2, kind: input, shape index: {}]
  %s3 = inlined_call_operand.vmem [shape: f32[1024,128], index: 3, kind: output, shape index: {}]
  %s4 = sld [smem:[#allocation0]]
  $region76: #{gcn_forward.3} parent=0
    _
  %s6 = ssub.s32 1, %s4
  %s7 = scalar_select 0, %s6, %s4
  $region1: #{gcn_forward.3} parent=0
    #allocation3 [shape = 'u8[2097152]{0}', space=vmem, size = 0x200000, scoped, tag = 'input window, operand 0']
    loop: start=0, step=1, limit=6
    $region2: #{gcn_forward.3} parent=1 // loop_pre_header
      _
    $region3: #{gcn_forward.3} parent=1 // loop_header
      %s9 = sphi 0, %s13
      %p10 = scmp.ge.s32.totalorder %s9, 6
      %s16 = sphi 0, %s28
      %s17 = sphi 0, %s24
      %s18 = sphi 0, %s16
      %s19 = sphi 0, %s17
      %s20 = sphi 0, %s18
      %s21 = sphi 0, %s19
      %s33 = sphi 0, %s35
      %s36 = sphi 0, %s33
      %s37 = sphi 0, %s36
      %s53 = sphi 0, %s37
      %s59 = sphi 0, %s61
      %s62 = sphi 0, %s59
      %s63 = sphi 0, %s62
      %s79 = sphi 0, %s63
      %s83 = sphi 0, %s83
      %s85 = sphi 0, %s83
      %s86 = sphi 0, %s85
      %s100 = sphi 0, %s86
      %s106 = sphi 0, %s108
      %s109 = sphi 0, %s106
      %s110 = sphi 0, %s109
      %s126 = sphi 0, %s110
    $region4: #{gcn_forward.3} parent=1 // loop_header_branch
      %12 = sbr.rel (%p10) target = $region8
    $region5: #{gcn_forward.3} parent=1 // loop_body
      %s14 = ssub.s32 %s9, 1
      %s15 = ssub.s32 %s9, 2
      %s22 = sadd.s32 1, %s17
      %p23 = scmp.ge.s32.totalorder %s22, 2
      %s24 = scalar_select %p23, 0, %s22
      %s25 = sadd.s32 1, %s16
      %s26 = scalar_select %p23, %s25, %s16
      %p27 = scmp.ge.s32.totalorder %s26, 2
      %s28 = scalar_select %p27, 0, %s26
      %s29 = ssub.s32 %s16, %s28
      %s30 = ssub.s32 %s17, %s24
      %s31 = sor.u32 %s29, %s30
      %p32 = scmp.eq.s32.totalorder %s31, 0
      %s34 = sadd.s32 %s33, 1
      %s35 = scalar_select %p32, %s33, %s34
      %p38 = pneg %p32
      %p39 = scmp.eq.s32.totalorder %s9, 3
      %p40 = por %p38, %p39
      %p41 = scmp.ne.s32.totalorder %s33, %s36
      %p42 = scmp.eq.s32.totalorder %s9, 0
      %p43 = por %p41, %p42
      %p44 = scmp.ne.s32.totalorder %s33, %s36
      %p45 = scmp.eq.s32.totalorder %s14, 3
      %p46 = por %p44, %p45
      %p47 = scmp.ne.s32.totalorder %s36, %s37
      %p48 = scmp.eq.s32.totalorder %s14, 0
      %p49 = por %p47, %p48
      %p50 = scmp.ne.s32.totalorder %s36, %s37
      %p51 = scmp.eq.s32.totalorder %s15, 3
      %p52 = por %p50, %p51
      %p54 = scmp.ne.s32.totalorder %s37, %s53
      %p55 = scmp.eq.s32.totalorder %s15, 0
      %p56 = por %p54, %p55
      %s57 = ssub.s32 %s17, %s24
      %p58 = scmp.eq.s32.totalorder %s57, 0
      %s60 = sadd.s32 %s59, 1
      %s61 = scalar_select %p58, %s59, %s60
      %p64 = pneg %p58
      %p65 = scmp.eq.s32.totalorder %s9, 3
      %p66 = por %p64, %p65
      %p67 = scmp.ne.s32.totalorder %s59, %s62
      %p68 = scmp.eq.s32.totalorder %s9, 0
      %p69 = por %p67, %p68
      %p70 = scmp.ne.s32.totalorder %s59, %s62
      %p71 = scmp.eq.s32.totalorder %s14, 3
      %p72 = por %p70, %p71
      %p73 = scmp.ne.s32.totalorder %s62, %s63
      %p74 = scmp.eq.s32.totalorder %s14, 0
      %p75 = por %p73, %p74
      %p76 = scmp.ne.s32.totalorder %s62, %s63
      %p77 = scmp.eq.s32.totalorder %s15, 3
      %p78 = por %p76, %p77
      %p80 = scmp.ne.s32.totalorder %s63, %s79
      %p81 = scmp.eq.s32.totalorder %s15, 0
      %p82 = por %p80, %p81
      %s84 = sadd.s32 %s83, 1
      %p87 = scmp.eq.s32.totalorder %s9, 3
      %p88 = scmp.ne.s32.totalorder %s83, %s85
      %p89 = scmp.eq.s32.totalorder %s9, 0
      %p90 = por %p88, %p89
      %p91 = scmp.ne.s32.totalorder %s83, %s85
      %p92 = scmp.eq.s32.totalorder %s14, 3
      %p93 = por %p91, %p92
      %p94 = scmp.ne.s32.totalorder %s85, %s86
      %p95 = scmp.eq.s32.totalorder %s14, 0
      %p96 = por %p94, %p95
      %p97 = scmp.ne.s32.totalorder %s85, %s86
      %p98 = scmp.eq.s32.totalorder %s15, 3
      %p99 = por %p97, %p98
      %p101 = scmp.ne.s32.totalorder %s86, %s100
      %p102 = scmp.eq.s32.totalorder %s15, 0
      %p103 = por %p101, %p102
      %s104 = ssub.s32 %s16, %s28
      %p105 = scmp.eq.s32.totalorder %s104, 0
      %s107 = sadd.s32 %s106, 1
      %s108 = scalar_select %p105, %s106, %s107
      %p111 = pneg %p105
      %p112 = scmp.eq.s32.totalorder %s9, 3
      %p113 = por %p111, %p112
      %p114 = scmp.ne.s32.totalorder %s106, %s109
      %p115 = scmp.eq.s32.totalorder %s9, 0
      %p116 = por %p114, %p115
      %p117 = scmp.ne.s32.totalorder %s106, %s109
      %p118 = scmp.eq.s32.totalorder %s14, 3
      %p119 = por %p117, %p118
      %p120 = scmp.ne.s32.totalorder %s109, %s110
      %p121 = scmp.eq.s32.totalorder %s14, 0
      %p122 = por %p120, %p121
      %p123 = scmp.ne.s32.totalorder %s109, %s110
      %p124 = scmp.eq.s32.totalorder %s15, 3
      %p125 = por %p123, %p124
      %p127 = scmp.ne.s32.totalorder %s110, %s126
      %p128 = scmp.eq.s32.totalorder %s15, 0
      %p129 = por %p127, %p128
      %p130 = scmp.le.s32.totalorder 1, %s9
      %p131 = scmp.lt.s32.totalorder %s9, 5
      %p132 = pnand %p130, %p131
      %p133 = pneg %p132
      // Predicated region
      $region9: #{gcn_forward.3} parent=5 // pred_check
        _
      $region10: #{gcn_forward.3} parent=5 // pred_check_branch
        %135 = sbr.rel (%p132) target = $region12
      $region11: #{gcn_forward.3} parent=5 // pred_region
        %s136 = ssub.s32 %s9, 1
        // Predicated region
        $region13: #{gcn_forward.3} parent=11 // pred_check
          %p137 = pneg %p96
        $region14: #{gcn_forward.3} parent=11 // pred_check_branch
          %139 = sbr.rel (%p137) target = $region16
        $region15: #{gcn_forward.3} parent=11 // pred_region
          _
        $region16: #{gcn_forward.3} parent=11 // pred_fallthru
          _
      $region12: #{gcn_forward.3} parent=5 // pred_fallthru
        _
      %p140 = scmp.lt.s32.totalorder %s9, 4
      // Predicated region
      $region17: #{gcn_forward.3} parent=5 // pred_check
        %p141 = pneg %p140
      $region18: #{gcn_forward.3} parent=5 // pred_check_branch
        %143 = sbr.rel (%p141) target = $region20
      $region19: #{gcn_forward.3} parent=5 // pred_region
        // Predicated region
        $region21: #{gcn_forward.3} parent=19 // pred_check
          %p144 = pneg %p43
        $region22: #{gcn_forward.3} parent=19 // pred_check_branch
          %146 = sbr.rel (%p144) target = $region24
        $region23: #{gcn_forward.3} parent=19 // pred_region
          %s147 = sand.u32 %s33, 1
          %s148 = sand.u32 %s33, 1
          %s149 = smul.addr %s148, 2048
          %s150 = scalar_lea.vmem [#allocation3], %s149
          %s151 = smul.u32 64, %s16
          %s152 = smul.u32 4, %s17
          %s153 = smul.addr %s151, 8
          %s154 = sadd.s32 %s152, %s153
          %s155 = smul.addr %s154, 8
          %s156 = scalar_lea.vmem %s0, %s155
          // Predicated region
          $region25: #{gcn_forward.3} parent=23 // pred_check
            _
          $region26: #{gcn_forward.3} parent=23 // pred_check_branch
            %158 = sbr.rel (0) target = $region28
          $region27: #{gcn_forward.3} parent=23 // pred_region
            // Predicated region
            $region29: #{gcn_forward.3} parent=27 // pred_check
              _
            $region30: #{gcn_forward.3} parent=27 // pred_check_branch
              %160 = sbr.rel (0) target = $region32
            $region31: #{gcn_forward.3} parent=27 // pred_region
              loop: start=0, step=1, limit=1
              $region33: #{gcn_forward.3} parent=31 // loop_pre_header
                _
              $region34: #{gcn_forward.3} parent=31 // loop_header
                %s162 = sphi 0, %s166
                %p163 = scmp.ge.s32.totalorder %s162, 1
                %s167 = sphi %s156, %s156
                %s168 = sphi %s150, %s150
              $region35: #{gcn_forward.3} parent=31 // loop_header_branch
                %165 = sbr.rel (%p163) target = $region39
              $region36: #{gcn_forward.3} parent=31 // loop_body
                %v169 = vld [vmem:[%s167] sm:$0xff]
                %170 = vst [vmem:[%s168] sm:$0xff] %v169
                %v171 = vld [vmem:[%s167 + $0x8] sm:$0xff]
                %172 = vst [vmem:[%s168 + $0x8] sm:$0xff] %v171
                %v173 = vld [vmem:[%s167 + $0x10] sm:$0xff]
                %174 = vst [vmem:[%s168 + $0x10] sm:$0xff] %v173
                %v175 = vld [vmem:[%s167 + $0x18] sm:$0xff]
                %176 = vst [vmem:[%s168 + $0x18] sm:$0xff] %v175
                %v177 = vld [vmem:[%s167 + $0x40] sm:$0xff]
                %178 = vst [vmem:[%s168 + $0x20] sm:$0xff] %v177
                %v179 = vld [vmem:[%s167 + $0x48] sm:$0xff]
                %180 = vst [vmem:[%s168 + $0x28] sm:$0xff] %v179
                %v181 = vld [vmem:[%s167 + $0x50] sm:$0xff]
                %182 = vst [vmem:[%s168 + $0x30] sm:$0xff] %v181
                %v183 = vld [vmem:[%s167 + $0x58] sm:$0xff]
                %184 = vst [vmem:[%s168 + $0x38] sm:$0xff] %v183
                %v185 = vld [vmem:[%s167 + $0x80] sm:$0xff]
                %186 = vst [vmem:[%s168 + $0x40] sm:$0xff] %v185
                %v187 = vld [vmem:[%s167 + $0x88] sm:$0xff]
                %188 = vst [vmem:[%s168 + $0x48] sm:$0xff] %v187
                %v189 = vld [vmem:[%s167 + $0x90] sm:$0xff]
                %190 = vst [vmem:[%s168 + $0x50] sm:$0xff] %v189
                %v191 = vld [vmem:[%s167 + $0x98] sm:$0xff]
                %192 = vst [vmem:[%s168 + $0x58] sm:$0xff] %v191
                %v193 = vld [vmem:[%s167 + $0xc0] sm:$0xff]
                %194 = vst [vmem:[%s168 + $0x60] sm:$0xff] %v193
                %v195 = vld [vmem:[%s167 + $0xc8] sm:$0xff]
                %196 = vst [vmem:[%s168 + $0x68] sm:$0xff] %v195
                %v197 = vld [vmem:[%s167 + $0xd0] sm:$0xff]
                %198 = vst [vmem:[%s168 + $0x70] sm:$0xff] %v197
                %v199 = vld [vmem:[%s167 + $0xd8] sm:$0xff]
                %200 = vst [vmem:[%s168 + $0x78] sm:$0xff] %v199
                %v201 = vld [vmem:[%s167 + $0x100] sm:$0xff]
                %202 = vst [vmem:[%s168 + $0x80] sm:$0xff] %v201
                %v203 = vld [vmem:[%s167 + $0x108] sm:$0xff]
                %204 = vst [vmem:[%s168 + $0x88] sm:$0xff] %v203
                %v205 = vld [vmem:[%s167 + $0x110] sm:$0xff]
                %206 = vst [vmem:[%s168 + $0x90] sm:$0xff] %v205
                %v207 = vld [vmem:[%s167 + $0x118] sm:$0xff]
                %208 = vst [vmem:[%s168 + $0x98] sm:$0xff] %v207
                %v209 = vld [vmem:[%s167 + $0x140] sm:$0xff]
                %210 = vst [vmem:[%s168 + $0xa0] sm:$0xff] %v209
                %v211 = vld [vmem:[%s167 + $0x148] sm:$0xff]
                %212 = vst [vmem:[%s168 + $0xa8] sm:$0xff] %v211
                %v213 = vld [vmem:[%s167 + $0x150] sm:$0xff]
                %214 = vst [vmem:[%s168 + $0xb0] sm:$0xff] %v213
                %v215 = vld [vmem:[%s167 + $0x158] sm:$0xff]
                %216 = vst [vmem:[%s168 + $0xb8] sm:$0xff] %v215
                %v217 = vld [vmem:[%s167 + $0x180] sm:$0xff]
                %218 = vst [vmem:[%s168 + $0xc0] sm:$0xff] %v217
                %v219 = vld [vmem:[%s167 + $0x188] sm:$0xff]
                %220 = vst [vmem:[%s168 + $0xc8] sm:$0xff] %v219
                %v221 = vld [vmem:[%s167 + $0x190] sm:$0xff]
                %222 = vst [vmem:[%s168 + $0xd0] sm:$0xff] %v221
                %v223 = vld [vmem:[%s167 + $0x198] sm:$0xff]
                %224 = vst [vmem:[%s168 + $0xd8] sm:$0xff] %v223
                %v225 = vld [vmem:[%s167 + $0x1c0] sm:$0xff]
                %226 = vst [vmem:[%s168 + $0xe0] sm:$0xff] %v225
                %v227 = vld [vmem:[%s167 + $0x1c8] sm:$0xff]
                %228 = vst [vmem:[%s168 + $0xe8] sm:$0xff] %v227
                %v229 = vld [vmem:[%s167 + $0x1d0] sm:$0xff]
                %230 = vst [vmem:[%s168 + $0xf0] sm:$0xff] %v229
                %v231 = vld [vmem:[%s167 + $0x1d8] sm:$0xff]
                %232 = vst [vmem:[%s168 + $0xf8] sm:$0xff] %v231
                %v233 = vld [vmem:[%s167 + $0x200] sm:$0xff]
                %234 = vst [vmem:[%s168 + $0x100] sm:$0xff] %v233
                %v235 = vld [vmem:[%s167 + $0x208] sm:$0xff]
                %236 = vst [vmem:[%s168 + $0x108] sm:$0xff] %v235
                %v237 = vld [vmem:[%s167 + $0x210] sm:$0xff]
                %238 = vst [vmem:[%s168 + $0x110] sm:$0xff] %v237
                %v239 = vld [vmem:[%s167 + $0x218] sm:$0xff]
                %240 = vst [vmem:[%s168 + $0x118] sm:$0xff] %v239
                %v241 = vld [vmem:[%s167 + $0x240] sm:$0xff]
                %242 = vst [vmem:[%s168 + $0x120] sm:$0xff] %v241
                %v243 = vld [vmem:[%s167 + $0x248] sm:$0xff]
                %244 = vst [vmem:[%s168 + $0x128] sm:$0xff] %v243
                %v245 = vld [vmem:[%s167 + $0x250] sm:$0xff]
                %246 = vst [vmem:[%s168 + $0x130] sm:$0xff] %v245
                %v247 = vld [vmem:[%s167 + $0x258] sm:$0xff]
                %248 = vst [vmem:[%s168 + $0x138] sm:$0xff] %v247
                %v249 = vld [vmem:[%s167 + $0x280] sm:$0xff]
                %250 = vst [vmem:[%s168 + $0x140] sm:$0xff] %v249
                %v251 = vld [vmem:[%s167 + $0x288] sm:$0xff]
                %252 = vst [vmem:[%s168 + $0x148] sm:$0xff] %v251
                %v253 = vld [vmem:[%s167 + $0x290] sm:$0xff]
                %254 = vst [vmem:[%s168 + $0x150] sm:$0xff] %v253
                %v255 = vld [vmem:[%s167 + $0x298] sm:$0xff]
                %256 = vst [vmem:[%s168 + $0x158] sm:$0xff] %v255
                %v257 = vld [vmem:[%s167 + $0x2c0] sm:$0xff]
                %258 = vst [vmem:[%s168 + $0x160] sm:$0xff] %v257
                %v259 = vld [vmem:[%s167 + $0x2c8] sm:$0xff]
                %260 = vst [vmem:[%s168 + $0x168] sm:$0xff] %v259
                %v261 = vld [vmem:[%s167 + $0x2d0] sm:$0xff]
                %262 = vst [vmem:[%s168 + $0x170] sm:$0xff] %v261
                %v263 = vld [vmem:[%s167 + $0x2d8] sm:$0xff]
                %264 = vst [vmem:[%s168 + $0x178] sm:$0xff] %v263
                %v265 = vld [vmem:[%s167 + $0x300] sm:$0xff]
                %266 = vst [vmem:[%s168 + $0x180] sm:$0xff] %v265
                %v267 = vld [vmem:[%s167 + $0x308] sm:$0xff]
                %268 = vst [vmem:[%s168 + $0x188] sm:$0xff] %v267
                %v269 = vld [vmem:[%s167 + $0x310] sm:$0xff]
                %270 = vst [vmem:[%s168 + $0x190] sm:$0xff] %v269
                %v271 = vld [vmem:[%s167 + $0x318] sm:$0xff]
                %272 = vst [vmem:[%s168 + $0x198] sm:$0xff] %v271
                %v273 = vld [vmem:[%s167 + $0x340] sm:$0xff]
                %274 = vst [vmem:[%s168 + $0x1a0] sm:$0xff] %v273
                %v275 = vld [vmem:[%s167 + $0x348] sm:$0xff]
                %276 = vst [vmem:[%s168 + $0x1a8] sm:$0xff] %v275
                %v277 = vld [vmem:[%s167 + $0x350] sm:$0xff]
                %278 = vst [vmem:[%s168 + $0x1b0] sm:$0xff] %v277
                %v279 = vld [vmem:[%s167 + $0x358] sm:$0xff]
                %280 = vst [vmem:[%s168 + $0x1b8] sm:$0xff] %v279
                %v281 = vld [vmem:[%s167 + $0x380] sm:$0xff]
                %282 = vst [vmem:[%s168 + $0x1c0] sm:$0xff] %v281
                %v283 = vld [vmem:[%s167 + $0x388] sm:$0xff]
                %284 = vst [vmem:[%s168 + $0x1c8] sm:$0xff] %v283
                %v285 = vld [vmem:[%s167 + $0x390] sm:$0xff]
                %286 = vst [vmem:[%s168 + $0x1d0] sm:$0xff] %v285
                %v287 = vld [vmem:[%s167 + $0x398] sm:$0xff]
                %288 = vst [vmem:[%s168 + $0x1d8] sm:$0xff] %v287
                %v289 = vld [vmem:[%s167 + $0x3c0] sm:$0xff]
                %290 = vst [vmem:[%s168 + $0x1e0] sm:$0xff] %v289
                %v291 = vld [vmem:[%s167 + $0x3c8] sm:$0xff]
                %292 = vst [vmem:[%s168 + $0x1e8] sm:$0xff] %v291
                %v293 = vld [vmem:[%s167 + $0x3d0] sm:$0xff]
                %294 = vst [vmem:[%s168 + $0x1f0] sm:$0xff] %v293
                %v295 = vld [vmem:[%s167 + $0x3d8] sm:$0xff]
                %296 = vst [vmem:[%s168 + $0x1f8] sm:$0xff] %v295
                %v297 = vld [vmem:[%s167 + $0x400] sm:$0xff]
                %298 = vst [vmem:[%s168 + $0x200] sm:$0xff] %v297
                %v299 = vld [vmem:[%s167 + $0x408] sm:$0xff]
                %300 = vst [vmem:[%s168 + $0x208] sm:$0xff] %v299
                %v301 = vld [vmem:[%s167 + $0x410] sm:$0xff]
                %302 = vst [vmem:[%s168 + $0x210] sm:$0xff] %v301
                %v303 = vld [vmem:[%s167 + $0x418] sm:$0xff]
                %304 = vst [vmem:[%s168 + $0x218] sm:$0xff] %v303
                %v305 = vld [vmem:[%s167 + $0x440] sm:$0xff]
                %306 = vst [vmem:[%s168 + $0x220] sm:$0xff] %v305
                %v307 = vld [vmem:[%s167 + $0x448] sm:$0xff]
                %308 = vst [vmem:[%s168 + $0x228] sm:$0xff] %v307
                %v309 = vld [vmem:[%s167 + $0x450] sm:$0xff]
                %310 = vst [vmem:[%s168 + $0x230] sm:$0xff] %v309
                %v311 = vld [vmem:[%s167 + $0x458] sm:$0xff]
                %312 = vst [vmem:[%s168 + $0x238] sm:$0xff] %v311
                %v313 = vld [vmem:[%s167 + $0x480] sm:$0xff]
                %314 = vst [vmem:[%s168 + $0x240] sm:$0xff] %v313
                %v315 = vld [vmem:[%s167 + $0x488] sm:$0xff]
                %316 = vst [vmem:[%s168 + $0x248] sm:$0xff] %v315
                %v317 = vld [vmem:[%s167 + $0x490] sm:$0xff]
                %318 = vst [vmem:[%s168 + $0x250] sm:$0xff] %v317
                %v319 = vld [vmem:[%s167 + $0x498] sm:$0xff]
                %320 = vst [vmem:[%s168 + $0x258] sm:$0xff] %v319
                %v321 = vld [vmem:[%s167 + $0x4c0] sm:$0xff]
                %322 = vst [vmem:[%s168 + $0x260] sm:$0xff] %v321
                %v323 = vld [vmem:[%s167 + $0x4c8] sm:$0xff]
                %324 = vst [vmem:[%s168 + $0x268] sm:$0xff] %v323
                %v325 = vld [vmem:[%s167 + $0x4d0] sm:$0xff]
                %326 = vst [vmem:[%s168 + $0x270] sm:$0xff] %v325
                %v327 = vld [vmem:[%s167 + $0x4d8] sm:$0xff]
                %328 = vst [vmem:[%s168 + $0x278] sm:$0xff] %v327
                %v329 = vld [vmem:[%s167 + $0x500] sm:$0xff]
                %330 = vst [vmem:[%s168 + $0x280] sm:$0xff] %v329
                %v331 = vld [vmem:[%s167 + $0x508] sm:$0xff]
                %332 = vst [vmem:[%s168 + $0x288] sm:$0xff] %v331
                %v333 = vld [vmem:[%s167 + $0x510] sm:$0xff]
                %334 = vst [vmem:[%s168 + $0x290] sm:$0xff] %v333
                %v335 = vld [vmem:[%s167 + $0x518] sm:$0xff]
                %336 = vst [vmem:[%s168 + $0x298] sm:$0xff] %v335
                %v337 = vld [vmem:[%s167 + $0x540] sm:$0xff]
                %338 = vst [vmem:[%s168 + $0x2a0] sm:$0xff] %v337
                %v339 = vld [vmem:[%s167 + $0x548] sm:$0xff]
                %340 = vst [vmem:[%s168 + $0x2a8] sm:$0xff] %v339
                %v341 = vld [vmem:[%s167 + $0x550] sm:$0xff]
                %342 = vst [vmem:[%s168 + $0x2b0] sm:$0xff] %v341
                %v343 = vld [vmem:[%s167 + $0x558] sm:$0xff]
                %344 = vst [vmem:[%s168 + $0x2b8] sm:$0xff] %v343
                %v345 = vld [vmem:[%s167 + $0x580] sm:$0xff]
                %346 = vst [vmem:[%s168 + $0x2c0] sm:$0xff] %v345
                %v347 = vld [vmem:[%s167 + $0x588] sm:$0xff]
                %348 = vst [vmem:[%s168 + $0x2c8] sm:$0xff] %v347
                %v349 = vld [vmem:[%s167 + $0x590] sm:$0xff]
                %350 = vst [vmem:[%s168 + $0x2d0] sm:$0xff] %v349
                %v351 = vld [vmem:[%s167 + $0x598] sm:$0xff]
                %352 = vst [vmem:[%s168 + $0x2d8] sm:$0xff] %v351
                %v353 = vld [vmem:[%s167 + $0x5c0] sm:$0xff]
                %354 = vst [vmem:[%s168 + $0x2e0] sm:$0xff] %v353
                %v355 = vld [vmem:[%s167 + $0x5c8] sm:$0xff]
                %356 = vst [vmem:[%s168 + $0x2e8] sm:$0xff] %v355
                %v357 = vld [vmem:[%s167 + $0x5d0] sm:$0xff]
                %358 = vst [vmem:[%s168 + $0x2f0] sm:$0xff] %v357
                %v359 = vld [vmem:[%s167 + $0x5d8] sm:$0xff]
                %360 = vst [vmem:[%s168 + $0x2f8] sm:$0xff] %v359
                %v361 = vld [vmem:[%s167 + $0x600] sm:$0xff]
                %362 = vst [vmem:[%s168 + $0x300] sm:$0xff] %v361
                %v363 = vld [vmem:[%s167 + $0x608] sm:$0xff]
                %364 = vst [vmem:[%s168 + $0x308] sm:$0xff] %v363
                %v365 = vld [vmem:[%s167 + $0x610] sm:$0xff]
                %366 = vst [vmem:[%s168 + $0x310] sm:$0xff] %v365
                %v367 = vld [vmem:[%s167 + $0x618] sm:$0xff]
                %368 = vst [vmem:[%s168 + $0x318] sm:$0xff] %v367
                %v369 = vld [vmem:[%s167 + $0x640] sm:$0xff]
                %370 = vst [vmem:[%s168 + $0x320] sm:$0xff] %v369
                %v371 = vld [vmem:[%s167 + $0x648] sm:$0xff]
                %372 = vst [vmem:[%s168 + $0x328] sm:$0xff] %v371
                %v373 = vld [vmem:[%s167 + $0x650] sm:$0xff]
                %374 = vst [vmem:[%s168 + $0x330] sm:$0xff] %v373
                %v375 = vld [vmem:[%s167 + $0x658] sm:$0xff]
                %376 = vst [vmem:[%s168 + $0x338] sm:$0xff] %v375
                %v377 = vld [vmem:[%s167 + $0x680] sm:$0xff]
                %378 = vst [vmem:[%s168 + $0x340] sm:$0xff] %v377
                %v379 = vld [vmem:[%s167 + $0x688] sm:$0xff]
                %380 = vst [vmem:[%s168 + $0x348] sm:$0xff] %v379
                %v381 = vld [vmem:[%s167 + $0x690] sm:$0xff]
                %382 = vst [vmem:[%s168 + $0x350] sm:$0xff] %v381
                %v383 = vld [vmem:[%s167 + $0x698] sm:$0xff]
                %384 = vst [vmem:[%s168 + $0x358] sm:$0xff] %v383
                %v385 = vld [vmem:[%s167 + $0x6c0] sm:$0xff]
                %386 = vst [vmem:[%s168 + $0x360] sm:$0xff] %v385
                %v387 = vld [vmem:[%s167 + $0x6c8] sm:$0xff]
                %388 = vst [vmem:[%s168 + $0x368] sm:$0xff] %v387
                %v389 = vld [vmem:[%s167 + $0x6d0] sm:$0xff]
                %390 = vst [vmem:[%s168 + $0x370] sm:$0xff] %v389
                %v391 = vld [vmem:[%s167 + $0x6d8] sm:$0xff]
                %392 = vst [vmem:[%s168 + $0x378] sm:$0xff] %v391
                %v393 = vld [vmem:[%s167 + $0x700] sm:$0xff]
                %394 = vst [vmem:[%s168 + $0x380] sm:$0xff] %v393
                %v395 = vld [vmem:[%s167 + $0x708] sm:$0xff]
                %396 = vst [vmem:[%s168 + $0x388] sm:$0xff] %v395
                %v397 = vld [vmem:[%s167 + $0x710] sm:$0xff]
                %398 = vst [vmem:[%s168 + $0x390] sm:$0xff] %v397
                %v399 = vld [vmem:[%s167 + $0x718] sm:$0xff]
                %400 = vst [vmem:[%s168 + $0x398] sm:$0xff] %v399
                %v401 = vld [vmem:[%s167 + $0x740] sm:$0xff]
                %402 = vst [vmem:[%s168 + $0x3a0] sm:$0xff] %v401
                %v403 = vld [vmem:[%s167 + $0x748] sm:$0xff]
                %404 = vst [vmem:[%s168 + $0x3a8] sm:$0xff] %v403
                %v405 = vld [vmem:[%s167 + $0x750] sm:$0xff]
                %406 = vst [vmem:[%s168 + $0x3b0] sm:$0xff] %v405
                %v407 = vld [vmem:[%s167 + $0x758] sm:$0xff]
                %408 = vst [vmem:[%s168 + $0x3b8] sm:$0xff] %v407
                %v409 = vld [vmem:[%s167 + $0x780] sm:$0xff]
                %410 = vst [vmem:[%s168 + $0x3c0] sm:$0xff] %v409
                %v411 = vld [vmem:[%s167 + $0x788] sm:$0xff]
                %412 = vst [vmem:[%s168 + $0x3c8] sm:$0xff] %v411
                %v413 = vld [vmem:[%s167 + $0x790] sm:$0xff]
                %414 = vst [vmem:[%s168 + $0x3d0] sm:$0xff] %v413
                %v415 = vld [vmem:[%s167 + $0x798] sm:$0xff]
                %416 = vst [vmem:[%s168 + $0x3d8] sm:$0xff] %v415
                %v417 = vld [vmem:[%s167 + $0x7c0] sm:$0xff]
                %418 = vst [vmem:[%s168 + $0x3e0] sm:$0xff] %v417
                %v419 = vld [vmem:[%s167 + $0x7c8] sm:$0xff]
                %420 = vst [vmem:[%s168 + $0x3e8] sm:$0xff] %v419
                %v421 = vld [vmem:[%s167 + $0x7d0] sm:$0xff]
                %422 = vst [vmem:[%s168 + $0x3f0] sm:$0xff] %v421
                %v423 = vld [vmem:[%s167 + $0x7d8] sm:$0xff]
                %424 = vst [vmem:[%s168 + $0x3f8] sm:$0xff] %v423
                %v425 = vld [vmem:[%s167 + $0x800] sm:$0xff]
                %426 = vst [vmem:[%s168 + $0x400] sm:$0xff] %v425
                %v427 = vld [vmem:[%s167 + $0x808] sm:$0xff]
                %428 = vst [vmem:[%s168 + $0x408] sm:$0xff] %v427
                %v429 = vld [vmem:[%s167 + $0x810] sm:$0xff]
                %430 = vst [vmem:[%s168 + $0x410] sm:$0xff] %v429
                %v431 = vld [vmem:[%s167 + $0x818] sm:$0xff]
                %432 = vst [vmem:[%s168 + $0x418] sm:$0xff] %v431
                %v433 = vld [vmem:[%s167 + $0x840] sm:$0xff]
                %434 = vst [vmem:[%s168 + $0x420] sm:$0xff] %v433
                %v435 = vld [vmem:[%s167 + $0x848] sm:$0xff]
                %436 = vst [vmem:[%s168 + $0x428] sm:$0xff] %v435
                %v437 = vld [vmem:[%s167 + $0x850] sm:$0xff]
                %438 = vst [vmem:[%s168 + $0x430] sm:$0xff] %v437
                %v439 = vld [vmem:[%s167 + $0x858] sm:$0xff]
                %440 = vst [vmem:[%s168 + $0x438] sm:$0xff] %v439
                %v441 = vld [vmem:[%s167 + $0x880] sm:$0xff]
                %442 = vst [vmem:[%s168 + $0x440] sm:$0xff] %v441
                %v443 = vld [vmem:[%s167 + $0x888] sm:$0xff]
                %444 = vst [vmem:[%s168 + $0x448] sm:$0xff] %v443
                %v445 = vld [vmem:[%s167 + $0x890] sm:$0xff]
                %446 = vst [vmem:[%s168 + $0x450] sm:$0xff] %v445
                %v447 = vld [vmem:[%s167 + $0x898] sm:$0xff]
                %448 = vst [vmem:[%s168 + $0x458] sm:$0xff] %v447
                %v449 = vld [vmem:[%s167 + $0x8c0] sm:$0xff]
                %450 = vst [vmem:[%s168 + $0x460] sm:$0xff] %v449
                %v451 = vld [vmem:[%s167 + $0x8c8] sm:$0xff]
                %452 = vst [vmem:[%s168 + $0x468] sm:$0xff] %v451
                %v453 = vld [vmem:[%s167 + $0x8d0] sm:$0xff]
                %454 = vst [vmem:[%s168 + $0x470] sm:$0xff] %v453
                %v455 = vld [vmem:[%s167 + $0x8d8] sm:$0xff]
                %456 = vst [vmem:[%s168 + $0x478] sm:$0xff] %v455
                %v457 = vld [vmem:[%s167 + $0x900] sm:$0xff]
                %458 = vst [vmem:[%s168 + $0x480] sm:$0xff] %v457
                %v459 = vld [vmem:[%s167 + $0x908] sm:$0xff]
                %460 = vst [vmem:[%s168 + $0x488] sm:$0xff] %v459
                %v461 = vld [vmem:[%s167 + $0x910] sm:$0xff]
                %462 = vst [vmem:[%s168 + $0x490] sm:$0xff] %v461
                %v463 = vld [vmem:[%s167 + $0x918] sm:$0xff]
                %464 = vst [vmem:[%s168 + $0x498] sm:$0xff] %v463
                %v465 = vld [vmem:[%s167 + $0x940] sm:$0xff]
                %466 = vst [vmem:[%s168 + $0x4a0] sm:$0xff] %v465
                %v467 = vld [vmem:[%s167 + $0x948] sm:$0xff]
                %468 = vst [vmem:[%s168 + $0x4a8] sm:$0xff] %v467
                %v469 = vld [vmem:[%s167 + $0x950] sm:$0xff]
                %470 = vst [vmem:[%s168 + $0x4b0] sm:$0xff] %v469
                %v471 = vld [vmem:[%s167 + $0x958] sm:$0xff]
                %472 = vst [vmem:[%s168 + $0x4b8] sm:$0xff] %v471
                %v473 = vld [vmem:[%s167 + $0x980] sm:$0xff]
                %474 = vst [vmem:[%s168 + $0x4c0] sm:$0xff] %v473
                %v475 = vld [vmem:[%s167 + $0x988] sm:$0xff]
                %476 = vst [vmem:[%s168 + $0x4c8] sm:$0xff] %v475
                %v477 = vld [vmem:[%s167 + $0x990] sm:$0xff]
                %478 = vst [vmem:[%s168 + $0x4d0] sm:$0xff] %v477
                %v479 = vld [vmem:[%s167 + $0x998] sm:$0xff]
                %480 = vst [vmem:[%s168 + $0x4d8] sm:$0xff] %v479
                %v481 = vld [vmem:[%s167 + $0x9c0] sm:$0xff]
                %482 = vst [vmem:[%s168 + $0x4e0] sm:$0xff] %v481
                %v483 = vld [vmem:[%s167 + $0x9c8] sm:$0xff]
                %484 = vst [vmem:[%s168 + $0x4e8] sm:$0xff] %v483
                %v485 = vld [vmem:[%s167 + $0x9d0] sm:$0xff]
                %486 = vst [vmem:[%s168 + $0x4f0] sm:$0xff] %v485
                %v487 = vld [vmem:[%s167 + $0x9d8] sm:$0xff]
                %488 = vst [vmem:[%s168 + $0x4f8] sm:$0xff] %v487
                %v489 = vld [vmem:[%s167 + $0xa00] sm:$0xff]
                %490 = vst [vmem:[%s168 + $0x500] sm:$0xff] %v489
                %v491 = vld [vmem:[%s167 + $0xa08] sm:$0xff]
                %492 = vst [vmem:[%s168 + $0x508] sm:$0xff] %v491
                %v493 = vld [vmem:[%s167 + $0xa10] sm:$0xff]
                %494 = vst [vmem:[%s168 + $0x510] sm:$0xff] %v493
                %v495 = vld [vmem:[%s167 + $0xa18] sm:$0xff]
                %496 = vst [vmem:[%s168 + $0x518] sm:$0xff] %v495
                %v497 = vld [vmem:[%s167 + $0xa40] sm:$0xff]
                %498 = vst [vmem:[%s168 + $0x520] sm:$0xff] %v497
                %v499 = vld [vmem:[%s167 + $0xa48] sm:$0xff]
                %500 = vst [vmem:[%s168 + $0x528] sm:$0xff] %v499
                %v501 = vld [vmem:[%s167 + $0xa50] sm:$0xff]
                %502 = vst [vmem:[%s168 + $0x530] sm:$0xff] %v501
                %v503 = vld [vmem:[%s167 + $0xa58] sm:$0xff]
                %504 = vst [vmem:[%s168 + $0x538] sm:$0xff] %v503
                %v505 = vld [vmem:[%s167 + $0xa80] sm:$0xff]
                %506 = vst [vmem:[%s168 + $0x540] sm:$0xff] %v505
                %v507 = vld [vmem:[%s167 + $0xa88] sm:$0xff]
                %508 = vst [vmem:[%s168 + $0x548] sm:$0xff] %v507
                %v509 = vld [vmem:[%s167 + $0xa90] sm:$0xff]
                %510 = vst [vmem:[%s168 + $0x550] sm:$0xff] %v509
                %v511 = vld [vmem:[%s167 + $0xa98] sm:$0xff]
                %512 = vst [vmem:[%s168 + $0x558] sm:$0xff] %v511
                %v513 = vld [vmem:[%s167 + $0xac0] sm:$0xff]
                %514 = vst [vmem:[%s168 + $0x560] sm:$0xff] %v513
                %v515 = vld [vmem:[%s167 + $0xac8] sm:$0xff]
                %516 = vst [vmem:[%s168 + $0x568] sm:$0xff] %v515
                %v517 = vld [vmem:[%s167 + $0xad0] sm:$0xff]
                %518 = vst [vmem:[%s168 + $0x570] sm:$0xff] %v517
                %v519 = vld [vmem:[%s167 + $0xad8] sm:$0xff]
                %520 = vst [vmem:[%s168 + $0x578] sm:$0xff] %v519
                %v521 = vld [vmem:[%s167 + $0xb00] sm:$0xff]
                %522 = vst [vmem:[%s168 + $0x580] sm:$0xff] %v521
                %v523 = vld [vmem:[%s167 + $0xb08] sm:$0xff]
                %524 = vst [vmem:[%s168 + $0x588] sm:$0xff] %v523
                %v525 = vld [vmem:[%s167 + $0xb10] sm:$0xff]
                %526 = vst [vmem:[%s168 + $0x590] sm:$0xff] %v525
                %v527 = vld [vmem:[%s167 + $0xb18] sm:$0xff]
                %528 = vst [vmem:[%s168 + $0x598] sm:$0xff] %v527
                %v529 = vld [vmem:[%s167 + $0xb40] sm:$0xff]
                %530 = vst [vmem:[%s168 + $0x5a0] sm:$0xff] %v529
                %v531 = vld [vmem:[%s167 + $0xb48] sm:$0xff]
                %532 = vst [vmem:[%s168 + $0x5a8] sm:$0xff] %v531
                %v533 = vld [vmem:[%s167 + $0xb50] sm:$0xff]
                %534 = vst [vmem:[%s168 + $0x5b0] sm:$0xff] %v533
                %v535 = vld [vmem:[%s167 + $0xb58] sm:$0xff]
                %536 = vst [vmem:[%s168 + $0x5b8] sm:$0xff] %v535
                %v537 = vld [vmem:[%s167 + $0xb80] sm:$0xff]
                %538 = vst [vmem:[%s168 + $0x5c0] sm:$0xff] %v537
                %v539 = vld [vmem:[%s167 + $0xb88] sm:$0xff]
                %540 = vst [vmem:[%s168 + $0x5c8] sm:$0xff] %v539
                %v541 = vld [vmem:[%s167 + $0xb90] sm:$0xff]
                %542 = vst [vmem:[%s168 + $0x5d0] sm:$0xff] %v541
                %v543 = vld [vmem:[%s167 + $0xb98] sm:$0xff]
                %544 = vst [vmem:[%s168 + $0x5d8] sm:$0xff] %v543
                %v545 = vld [vmem:[%s167 + $0xbc0] sm:$0xff]
                %546 = vst [vmem:[%s168 + $0x5e0] sm:$0xff] %v545
                %v547 = vld [vmem:[%s167 + $0xbc8] sm:$0xff]
                %548 = vst [vmem:[%s168 + $0x5e8] sm:$0xff] %v547
                %v549 = vld [vmem:[%s167 + $0xbd0] sm:$0xff]
                %550 = vst [vmem:[%s168 + $0x5f0] sm:$0xff] %v549
                %v551 = vld [vmem:[%s167 + $0xbd8] sm:$0xff]
                %552 = vst [vmem:[%s168 + $0x5f8] sm:$0xff] %v551
                %v553 = vld [vmem:[%s167 + $0xc00] sm:$0xff]
                %554 = vst [vmem:[%s168 + $0x600] sm:$0xff] %v553
                %v555 = vld [vmem:[%s167 + $0xc08] sm:$0xff]
                %556 = vst [vmem:[%s168 + $0x608] sm:$0xff] %v555
                %v557 = vld [vmem:[%s167 + $0xc10] sm:$0xff]
                %558 = vst [vmem:[%s168 + $0x610] sm:$0xff] %v557
                %v559 = vld [vmem:[%s167 + $0xc18] sm:$0xff]
                %560 = vst [vmem:[%s168 + $0x618] sm:$0xff] %v559
                %v561 = vld [vmem:[%s167 + $0xc40] sm:$0xff]
                %562 = vst [vmem:[%s168 + $0x620] sm:$0xff] %v561
                %v563 = vld [vmem:[%s167 + $0xc48] sm:$0xff]
                %564 = vst [vmem:[%s168 + $0x628] sm:$0xff] %v563
                %v565 = vld [vmem:[%s167 + $0xc50] sm:$0xff]
                %566 = vst [vmem:[%s168 + $0x630] sm:$0xff] %v565
                %v567 = vld [vmem:[%s167 + $0xc58] sm:$0xff]
                %568 = vst [vmem:[%s168 + $0x638] sm:$0xff] %v567
                %v569 = vld [vmem:[%s167 + $0xc80] sm:$0xff]
                %570 = vst [vmem:[%s168 + $0x640] sm:$0xff] %v569
                %v571 = vld [vmem:[%s167 + $0xc88] sm:$0xff]
                %572 = vst [vmem:[%s168 + $0x648] sm:$0xff] %v571
                %v573 = vld [vmem:[%s167 + $0xc90] sm:$0xff]
                %574 = vst [vmem:[%s168 + $0x650] sm:$0xff] %v573
                %v575 = vld [vmem:[%s167 + $0xc98] sm:$0xff]
                %576 = vst [vmem:[%s168 + $0x658] sm:$0xff] %v575
                %v577 = vld [vmem:[%s167 + $0xcc0] sm:$0xff]
                %578 = vst [vmem:[%s168 + $0x660] sm:$0xff] %v577
                %v579 = vld [vmem:[%s167 + $0xcc8] sm:$0xff]
                %580 = vst [vmem:[%s168 + $0x668] sm:$0xff] %v579
                %v581 = vld [vmem:[%s167 + $0xcd0] sm:$0xff]
                %582 = vst [vmem:[%s168 + $0x670] sm:$0xff] %v581
                %v583 = vld [vmem:[%s167 + $0xcd8] sm:$0xff]
                %584 = vst [vmem:[%s168 + $0x678] sm:$0xff] %v583
                %v585 = vld [vmem:[%s167 + $0xd00] sm:$0xff]
                %586 = vst [vmem:[%s168 + $0x680] sm:$0xff] %v585
                %v587 = vld [vmem:[%s167 + $0xd08] sm:$0xff]
                %588 = vst [vmem:[%s168 + $0x688] sm:$0xff] %v587
                %v589 = vld [vmem:[%s167 + $0xd10] sm:$0xff]
                %590 = vst [vmem:[%s168 + $0x690] sm:$0xff] %v589
                %v591 = vld [vmem:[%s167 + $0xd18] sm:$0xff]
                %592 = vst [vmem:[%s168 + $0x698] sm:$0xff] %v591
                %v593 = vld [vmem:[%s167 + $0xd40] sm:$0xff]
                %594 = vst [vmem:[%s168 + $0x6a0] sm:$0xff] %v593
                %v595 = vld [vmem:[%s167 + $0xd48] sm:$0xff]
                %596 = vst [vmem:[%s168 + $0x6a8] sm:$0xff] %v595
                %v597 = vld [vmem:[%s167 + $0xd50] sm:$0xff]
                %598 = vst [vmem:[%s168 + $0x6b0] sm:$0xff] %v597
                %v599 = vld [vmem:[%s167 + $0xd58] sm:$0xff]
                %600 = vst [vmem:[%s168 + $0x6b8] sm:$0xff] %v599
                %v601 = vld [vmem:[%s167 + $0xd80] sm:$0xff]
                %602 = vst [vmem:[%s168 + $0x6c0] sm:$0xff] %v601
                %v603 = vld [vmem:[%s167 + $0xd88] sm:$0xff]
                %604 = vst [vmem:[%s168 + $0x6c8] sm:$0xff] %v603
                %v605 = vld [vmem:[%s167 + $0xd90] sm:$0xff]
                %606 = vst [vmem:[%s168 + $0x6d0] sm:$0xff] %v605
                %v607 = vld [vmem:[%s167 + $0xd98] sm:$0xff]
                %608 = vst [vmem:[%s168 + $0x6d8] sm:$0xff] %v607
                %v609 = vld [vmem:[%s167 + $0xdc0] sm:$0xff]
                %610 = vst [vmem:[%s168 + $0x6e0] sm:$0xff] %v609
                %v611 = vld [vmem:[%s167 + $0xdc8] sm:$0xff]
                %612 = vst [vmem:[%s168 + $0x6e8] sm:$0xff] %v611
                %v613 = vld [vmem:[%s167 + $0xdd0] sm:$0xff]
                %614 = vst [vmem:[%s168 + $0x6f0] sm:$0xff] %v613
                %v615 = vld [vmem:[%s167 + $0xdd8] sm:$0xff]
                %616 = vst [vmem:[%s168 + $0x6f8] sm:$0xff] %v615
                %v617 = vld [vmem:[%s167 + $0xe00] sm:$0xff]
                %618 = vst [vmem:[%s168 + $0x700] sm:$0xff] %v617
                %v619 = vld [vmem:[%s167 + $0xe08] sm:$0xff]
                %620 = vst [vmem:[%s168 + $0x708] sm:$0xff] %v619
                %v621 = vld [vmem:[%s167 + $0xe10] sm:$0xff]
                %622 = vst [vmem:[%s168 + $0x710] sm:$0xff] %v621
                %v623 = vld [vmem:[%s167 + $0xe18] sm:$0xff]
                %624 = vst [vmem:[%s168 + $0x718] sm:$0xff] %v623
                %v625 = vld [vmem:[%s167 + $0xe40] sm:$0xff]
                %626 = vst [vmem:[%s168 + $0x720] sm:$0xff] %v625
                %v627 = vld [vmem:[%s167 + $0xe48] sm:$0xff]
                %628 = vst [vmem:[%s168 + $0x728] sm:$0xff] %v627
                %v629 = vld [vmem:[%s167 + $0xe50] sm:$0xff]
                %630 = vst [vmem:[%s168 + $0x730] sm:$0xff] %v629
                %v631 = vld [vmem:[%s167 + $0xe58] sm:$0xff]
                %632 = vst [vmem:[%s168 + $0x738] sm:$0xff] %v631
                %v633 = vld [vmem:[%s167 + $0xe80] sm:$0xff]
                %634 = vst [vmem:[%s168 + $0x740] sm:$0xff] %v633
                %v635 = vld [vmem:[%s167 + $0xe88] sm:$0xff]
                %636 = vst [vmem:[%s168 + $0x748] sm:$0xff] %v635
                %v637 = vld [vmem:[%s167 + $0xe90] sm:$0xff]
                %638 = vst [vmem:[%s168 + $0x750] sm:$0xff] %v637
                %v639 = vld [vmem:[%s167 + $0xe98] sm:$0xff]
                %640 = vst [vmem:[%s168 + $0x758] sm:$0xff] %v639
                %v641 = vld [vmem:[%s167 + $0xec0] sm:$0xff]
                %642 = vst [vmem:[%s168 + $0x760] sm:$0xff] %v641
                %v643 = vld [vmem:[%s167 + $0xec8] sm:$0xff]
                %644 = vst [vmem:[%s168 + $0x768] sm:$0xff] %v643
                %v645 = vld [vmem:[%s167 + $0xed0] sm:$0xff]
                %646 = vst [vmem:[%s168 + $0x770] sm:$0xff] %v645
                %v647 = vld [vmem:[%s167 + $0xed8] sm:$0xff]
                %648 = vst [vmem:[%s168 + $0x778] sm:$0xff] %v647
                %v649 = vld [vmem:[%s167 + $0xf00] sm:$0xff]
                %650 = vst [vmem:[%s168 + $0x780] sm:$0xff] %v649
                %v651 = vld [vmem:[%s167 + $0xf08] sm:$0xff]
                %652 = vst [vmem:[%s168 + $0x788] sm:$0xff] %v651
                %v653 = vld [vmem:[%s167 + $0xf10] sm:$0xff]
                %654 = vst [vmem:[%s168 + $0x790] sm:$0xff] %v653
                %v655 = vld [vmem:[%s167 + $0xf18] sm:$0xff]
                %656 = vst [vmem:[%s168 + $0x798] sm:$0xff] %v655
                %v657 = vld [vmem:[%s167 + $0xf40] sm:$0xff]
                %658 = vst [vmem:[%s168 + $0x7a0] sm:$0xff] %v657
                %v659 = vld [vmem:[%s167 + $0xf48] sm:$0xff]
                %660 = vst [vmem:[%s168 + $0x7a8] sm:$0xff] %v659
                %v661 = vld [vmem:[%s167 + $0xf50] sm:$0xff]
                %662 = vst [vmem:[%s168 + $0x7b0] sm:$0xff] %v661
                %v663 = vld [vmem:[%s167 + $0xf58] sm:$0xff]
                %664 = vst [vmem:[%s168 + $0x7b8] sm:$0xff] %v663
                %v665 = vld [vmem:[%s167 + $0xf80] sm:$0xff]
                %666 = vst [vmem:[%s168 + $0x7c0] sm:$0xff] %v665
                %v667 = vld [vmem:[%s167 + $0xf88] sm:$0xff]
                %668 = vst [vmem:[%s168 + $0x7c8] sm:$0xff] %v667
                %v669 = vld [vmem:[%s167 + $0xf90] sm:$0xff]
                %670 = vst [vmem:[%s168 + $0x7d0] sm:$0xff] %v669
                %v671 = vld [vmem:[%s167 + $0xf98] sm:$0xff]
                %672 = vst [vmem:[%s168 + $0x7d8] sm:$0xff] %v671
                %v673 = vld [vmem:[%s167 + $0xfc0] sm:$0xff]
                %674 = vst [vmem:[%s168 + $0x7e0] sm:$0xff] %v673
                %v675 = vld [vmem:[%s167 + $0xfc8] sm:$0xff]
                %676 = vst [vmem:[%s168 + $0x7e8] sm:$0xff] %v675
                %v677 = vld [vmem:[%s167 + $0xfd0] sm:$0xff]
                %678 = vst [vmem:[%s168 + $0x7f0] sm:$0xff] %v677
                %v679 = vld [vmem:[%s167 + $0xfd8] sm:$0xff]
                %680 = vst [vmem:[%s168 + $0x7f8] sm:$0xff] %v679
              $region37: #{gcn_forward.3} parent=31 // loop_footer
                %s166 = sadd.s32 1, %s162
              $region38: #{gcn_forward.3} parent=31 // loop_footer_branch
                %161 = sbr.rel target = $region34
              $region39: #{gcn_forward.3} parent=31 // loop_exit
                _
            $region32: #{gcn_forward.3} parent=27 // pred_fallthru
              _
            // Predicated region
            $region40: #{gcn_forward.3} parent=27 // pred_check
              _
            $region41: #{gcn_forward.3} parent=27 // pred_check_branch
              %682 = sbr.rel target = $region43
            $region42: #{gcn_forward.3} parent=27 // pred_region
              _
            $region43: #{gcn_forward.3} parent=27 // pred_fallthru
              _
          $region28: #{gcn_forward.3} parent=23 // pred_fallthru
            _
          %683 = vnop
        $region24: #{gcn_forward.3} parent=19 // pred_fallthru
          _
        // Predicated region
        $region44: #{gcn_forward.3} parent=19 // pred_check
          %p684 = pneg %p69
        $region45: #{gcn_forward.3} parent=19 // pred_check_branch
          %686 = sbr.rel (%p684) target = $region47
        $region46: #{gcn_forward.3} parent=19 // pred_region
          %s687 = smul.u32 64, %s17
          %p688 = scmp.lt.s32.totalorder %s687, 127
          %s689 = scalar_select %p688, %s687, 127
          %s690 = smul.addr %s689, 8
          %s691 = scalar_lea.vmem %s1, %s690
          %s692 = smul.u32 64, %s17
        $region47: #{gcn_forward.3} parent=19 // pred_fallthru
          _
      $region20: #{gcn_forward.3} parent=5 // pred_fallthru
        _
      %p693 = scmp.le.s32.totalorder 1, %s9
      %p694 = scmp.lt.s32.totalorder %s9, 5
      %p695 = pnand %p693, %p694
      %p696 = pneg %p695
      // Predicated region
      $region48: #{gcn_forward.3} parent=5 // pred_check
        _
      $region49: #{gcn_forward.3} parent=5 // pred_check_branch
        %698 = sbr.rel (%p695) target = $region51
      $region50: #{gcn_forward.3} parent=5 // pred_region
        %s699 = ssub.s32 %s9, 1
        %s700 = sand.u32 %s36, 1
        %s701 = sand.u32 %s36, 1
        %s702 = smul.addr %s701, 2048
        %s703 = scalar_lea.vmem [#allocation3], %s702
        // Predicated region
        $region52: #{gcn_forward.3} parent=50 // pred_check
          %p704 = pneg %p49
        $region53: #{gcn_forward.3} parent=50 // pred_check_branch
          %706 = sbr.rel (%p704) target = $region55
        $region54: #{gcn_forward.3} parent=50 // pred_region
          _
        $region55: #{gcn_forward.3} parent=50 // pred_fallthru
          _
        %s707 = sand.u32 %s36, 1
        %s708 = sand.u32 %s36, 1
        %s709 = smul.addr %s708, 2048
        %s710 = scalar_lea.vmem [#allocation3], %s709
        %p711 = pneg %p49
        %p712 = pneg %p46
        %s713 = smul.u32 64, %s19
        %p714 = scmp.lt.s32.totalorder %s713, 127
        %s715 = scalar_select %p714, %s713, 127
        %s716 = smul.addr %s715, 8
        %s717 = scalar_lea.vmem %s1, %s716
        %p718 = pneg %p75
        %p719 = pneg %p72
        %p720 = pneg %p96
        %p721 = pneg %p93
        %p722 = pneg %p122
        %p723 = pneg %p119
        %s724 = smul.u32 64, %s18
        %p725 = scmp.lt.s32.totalorder %s724, 127
        %s726 = scalar_select %p725, %s724, 127
        %s727 = smul.addr %s726, 8
        %s728 = scalar_lea.vmem %s3, %s727
        %s729 = smul.u32 64, %s18
        %s730 = smul.u32 4, %s19
        %s731 = smul.u32 64, %s19
        %p732 = scmp.lt.s32.totalorder %s731, 127
        %s733 = scalar_select %p732, %s731, 127
        %s734 = smul.addr %s733, 8
        %s735 = scalar_lea.vmem %s1, %s734
        %s736 = smul.u32 64, %s19
        %s737 = smul.u32 64, %s18
        %p738 = scmp.lt.s32.totalorder %s737, 127
        %s739 = scalar_select %p738, %s737, 127
        %s740 = smul.addr %s739, 8
        %s741 = scalar_lea.vmem %s3, %s740
        %s742 = smul.u32 64, %s18
        %p743 = scmp.eq.s32.totalorder %s19, 0
        // Predicated region
        $region56: #{gcn_forward.3} parent=50 // pred_check
          %p744 = pneg %p743
        $region57: #{gcn_forward.3} parent=50 // pred_check_branch
          %746 = sbr.rel (%p744) target = $region59
        $region58: #{gcn_forward.3} parent=50 // pred_region
          %747 = vst [vmem:[#allocation2] sm:$0xff] 0.0
          %748 = vst [vmem:[#allocation2 + $0x8] sm:$0xff] 0.0
          %749 = vst [vmem:[#allocation2 + $0x10] sm:$0xff] 0.0
          %750 = vst [vmem:[#allocation2 + $0x18] sm:$0xff] 0.0
          %751 = vst [vmem:[#allocation2 + $0x20] sm:$0xff] 0.0
          %752 = vst [vmem:[#allocation2 + $0x28] sm:$0xff] 0.0
          %753 = vst [vmem:[#allocation2 + $0x30] sm:$0xff] 0.0
          %754 = vst [vmem:[#allocation2 + $0x38] sm:$0xff] 0.0
          %755 = vst [vmem:[#allocation2 + $0x40] sm:$0xff] 0.0
          %756 = vst [vmem:[#allocation2 + $0x48] sm:$0xff] 0.0
          %757 = vst [vmem:[#allocation2 + $0x50] sm:$0xff] 0.0
          %758 = vst [vmem:[#allocation2 + $0x58] sm:$0xff] 0.0
          %759 = vst [vmem:[#allocation2 + $0x60] sm:$0xff] 0.0
          %760 = vst [vmem:[#allocation2 + $0x68] sm:$0xff] 0.0
          %761 = vst [vmem:[#allocation2 + $0x70] sm:$0xff] 0.0
          %762 = vst [vmem:[#allocation2 + $0x78] sm:$0xff] 0.0
          %763 = vst [vmem:[#allocation2 + $0x80] sm:$0xff] 0.0
          %764 = vst [vmem:[#allocation2 + $0x88] sm:$0xff] 0.0
          %765 = vst [vmem:[#allocation2 + $0x90] sm:$0xff] 0.0
          %766 = vst [vmem:[#allocation2 + $0x98] sm:$0xff] 0.0
          %767 = vst [vmem:[#allocation2 + $0xa0] sm:$0xff] 0.0
          %768 = vst [vmem:[#allocation2 + $0xa8] sm:$0xff] 0.0
          %769 = vst [vmem:[#allocation2 + $0xb0] sm:$0xff] 0.0
          %770 = vst [vmem:[#allocation2 + $0xb8] sm:$0xff] 0.0
          %771 = vst [vmem:[#allocation2 + $0xc0] sm:$0xff] 0.0
          %772 = vst [vmem:[#allocation2 + $0xc8] sm:$0xff] 0.0
          %773 = vst [vmem:[#allocation2 + $0xd0] sm:$0xff] 0.0
          %774 = vst [vmem:[#allocation2 + $0xd8] sm:$0xff] 0.0
          %775 = vst [vmem:[#allocation2 + $0xe0] sm:$0xff] 0.0
          %776 = vst [vmem:[#allocation2 + $0xe8] sm:$0xff] 0.0
          %777 = vst [vmem:[#allocation2 + $0xf0] sm:$0xff] 0.0
          %778 = vst [vmem:[#allocation2 + $0xf8] sm:$0xff] 0.0
          %779 = vst [vmem:[#allocation2 + $0x100] sm:$0xff] 0.0
          %780 = vst [vmem:[#allocation2 + $0x108] sm:$0xff] 0.0
          %781 = vst [vmem:[#allocation2 + $0x110] sm:$0xff] 0.0
          %782 = vst [vmem:[#allocation2 + $0x118] sm:$0xff] 0.0
          %783 = vst [vmem:[#allocation2 + $0x120] sm:$0xff] 0.0
          %784 = vst [vmem:[#allocation2 + $0x128] sm:$0xff] 0.0
          %785 = vst [vmem:[#allocation2 + $0x130] sm:$0xff] 0.0
          %786 = vst [vmem:[#allocation2 + $0x138] sm:$0xff] 0.0
          %787 = vst [vmem:[#allocation2 + $0x140] sm:$0xff] 0.0
          %788 = vst [vmem:[#allocation2 + $0x148] sm:$0xff] 0.0
          %789 = vst [vmem:[#allocation2 + $0x150] sm:$0xff] 0.0
          %790 = vst [vmem:[#allocation2 + $0x158] sm:$0xff] 0.0
          %791 = vst [vmem:[#allocation2 + $0x160] sm:$0xff] 0.0
          %792 = vst [vmem:[#allocation2 + $0x168] sm:$0xff] 0.0
          %793 = vst [vmem:[#allocation2 + $0x170] sm:$0xff] 0.0
          %794 = vst [vmem:[#allocation2 + $0x178] sm:$0xff] 0.0
          %795 = vst [vmem:[#allocation2 + $0x180] sm:$0xff] 0.0
          %796 = vst [vmem:[#allocation2 + $0x188] sm:$0xff] 0.0
          %797 = vst [vmem:[#allocation2 + $0x190] sm:$0xff] 0.0
          %798 = vst [vmem:[#allocation2 + $0x198] sm:$0xff] 0.0
          %799 = vst [vmem:[#allocation2 + $0x1a0] sm:$0xff] 0.0
          %800 = vst [vmem:[#allocation2 + $0x1a8] sm:$0xff] 0.0
          %801 = vst [vmem:[#allocation2 + $0x1b0] sm:$0xff] 0.0
          %802 = vst [vmem:[#allocation2 + $0x1b8] sm:$0xff] 0.0
          %803 = vst [vmem:[#allocation2 + $0x1c0] sm:$0xff] 0.0
          %804 = vst [vmem:[#allocation2 + $0x1c8] sm:$0xff] 0.0
          %805 = vst [vmem:[#allocation2 + $0x1d0] sm:$0xff] 0.0
          %806 = vst [vmem:[#allocation2 + $0x1d8] sm:$0xff] 0.0
          %807 = vst [vmem:[#allocation2 + $0x1e0] sm:$0xff] 0.0
          %808 = vst [vmem:[#allocation2 + $0x1e8] sm:$0xff] 0.0
          %809 = vst [vmem:[#allocation2 + $0x1f0] sm:$0xff] 0.0
          %810 = vst [vmem:[#allocation2 + $0x1f8] sm:$0xff] 0.0
        $region59: #{gcn_forward.3} parent=50 // pred_fallthru
          _
        %v811 = vld [vmem:[#allocation2] sm:$0xff]
        %v812 = vld [vmem:[#allocation2 + $0x8] sm:$0xff]
        %v813 = vld [vmem:[#allocation2 + $0x10] sm:$0xff]
        %v814 = vld [vmem:[#allocation2 + $0x18] sm:$0xff]
        %v815 = vld [vmem:[#allocation2 + $0x20] sm:$0xff]
        %v816 = vld [vmem:[#allocation2 + $0x28] sm:$0xff]
        %v817 = vld [vmem:[#allocation2 + $0x30] sm:$0xff]
        %v818 = vld [vmem:[#allocation2 + $0x38] sm:$0xff]
        %v819 = vld [vmem:[#allocation2 + $0x40] sm:$0xff]
        %v820 = vld [vmem:[#allocation2 + $0x48] sm:$0xff]
        %v821 = vld [vmem:[#allocation2 + $0x50] sm:$0xff]
        %v822 = vld [vmem:[#allocation2 + $0x58] sm:$0xff]
        %v823 = vld [vmem:[#allocation2 + $0x60] sm:$0xff]
        %v824 = vld [vmem:[#allocation2 + $0x68] sm:$0xff]
        %v825 = vld [vmem:[#allocation2 + $0x70] sm:$0xff]
        %v826 = vld [vmem:[#allocation2 + $0x78] sm:$0xff]
        %v827 = vld [vmem:[#allocation2 + $0x80] sm:$0xff]
        %v828 = vld [vmem:[#allocation2 + $0x88] sm:$0xff]
        %v829 = vld [vmem:[#allocation2 + $0x90] sm:$0xff]
        %v830 = vld [vmem:[#allocation2 + $0x98] sm:$0xff]
        %v831 = vld [vmem:[#allocation2 + $0xa0] sm:$0xff]
        %v832 = vld [vmem:[#allocation2 + $0xa8] sm:$0xff]
        %v833 = vld [vmem:[#allocation2 + $0xb0] sm:$0xff]
        %v834 = vld [vmem:[#allocation2 + $0xb8] sm:$0xff]
        %v835 = vld [vmem:[#allocation2 + $0xc0] sm:$0xff]
        %v836 = vld [vmem:[#allocation2 + $0xc8] sm:$0xff]
        %v837 = vld [vmem:[#allocation2 + $0xd0] sm:$0xff]
        %v838 = vld [vmem:[#allocation2 + $0xd8] sm:$0xff]
        %v839 = vld [vmem:[#allocation2 + $0xe0] sm:$0xff]
        %v840 = vld [vmem:[#allocation2 + $0xe8] sm:$0xff]
        %v841 = vld [vmem:[#allocation2 + $0xf0] sm:$0xff]
        %v842 = vld [vmem:[#allocation2 + $0xf8] sm:$0xff]
        %v843 = vld [vmem:[#allocation2 + $0x100] sm:$0xff]
        %v844 = vld [vmem:[#allocation2 + $0x108] sm:$0xff]
        %v845 = vld [vmem:[#allocation2 + $0x110] sm:$0xff]
        %v846 = vld [vmem:[#allocation2 + $0x118] sm:$0xff]
        %v847 = vld [vmem:[#allocation2 + $0x120] sm:$0xff]
        %v848 = vld [vmem:[#allocation2 + $0x128] sm:$0xff]
        %v849 = vld [vmem:[#allocation2 + $0x130] sm:$0xff]
        %v850 = vld [vmem:[#allocation2 + $0x138] sm:$0xff]
        %v851 = vld [vmem:[#allocation2 + $0x140] sm:$0xff]
        %v852 = vld [vmem:[#allocation2 + $0x148] sm:$0xff]
        %v853 = vld [vmem:[#allocation2 + $0x150] sm:$0xff]
        %v854 = vld [vmem:[#allocation2 + $0x158] sm:$0xff]
        %v855 = vld [vmem:[#allocation2 + $0x160] sm:$0xff]
        %v856 = vld [vmem:[#allocation2 + $0x168] sm:$0xff]
        %v857 = vld [vmem:[#allocation2 + $0x170] sm:$0xff]
        %v858 = vld [vmem:[#allocation2 + $0x178] sm:$0xff]
        %v859 = vld [vmem:[#allocation2 + $0x180] sm:$0xff]
        %v860 = vld [vmem:[#allocation2 + $0x188] sm:$0xff]
        %v861 = vld [vmem:[#allocation2 + $0x190] sm:$0xff]
        %v862 = vld [vmem:[#allocation2 + $0x198] sm:$0xff]
        %v863 = vld [vmem:[#allocation2 + $0x1a0] sm:$0xff]
        %v864 = vld [vmem:[#allocation2 + $0x1a8] sm:$0xff]
        %v865 = vld [vmem:[#allocation2 + $0x1b0] sm:$0xff]
        %v866 = vld [vmem:[#allocation2 + $0x1b8] sm:$0xff]
        %v867 = vld [vmem:[#allocation2 + $0x1c0] sm:$0xff]
        %v868 = vld [vmem:[#allocation2 + $0x1c8] sm:$0xff]
        %v869 = vld [vmem:[#allocation2 + $0x1d0] sm:$0xff]
        %v870 = vld [vmem:[#allocation2 + $0x1d8] sm:$0xff]
        %v871 = vld [vmem:[#allocation2 + $0x1e0] sm:$0xff]
        %v872 = vld [vmem:[#allocation2 + $0x1e8] sm:$0xff]
        %v873 = vld [vmem:[#allocation2 + $0x1f0] sm:$0xff]
        %v874 = vld [vmem:[#allocation2 + $0x1f8] sm:$0xff]
        %v875 = vld [vmem:[%s703] sm:$0xff]
        %v876 = vld [vmem:[%s703 + $0x8] sm:$0xff]
        %v877 = vld [vmem:[%s703 + $0x10] sm:$0xff]
        %v878 = vld [vmem:[%s703 + $0x18] sm:$0xff]
        %v879 = vld [vmem:[%s703 + $0x20] sm:$0xff]
        %v880 = vld [vmem:[%s703 + $0x28] sm:$0xff]
        %v881 = vld [vmem:[%s703 + $0x30] sm:$0xff]
        %v882 = vld [vmem:[%s703 + $0x38] sm:$0xff]
        %v883 = vld [vmem:[%s703 + $0x40] sm:$0xff]
        %v884 = vld [vmem:[%s703 + $0x48] sm:$0xff]
        %v885 = vld [vmem:[%s703 + $0x50] sm:$0xff]
        %v886 = vld [vmem:[%s703 + $0x58] sm:$0xff]
        %v887 = vld [vmem:[%s703 + $0x60] sm:$0xff]
        %v888 = vld [vmem:[%s703 + $0x68] sm:$0xff]
        %v889 = vld [vmem:[%s703 + $0x70] sm:$0xff]
        %v890 = vld [vmem:[%s703 + $0x78] sm:$0xff]
        %v891 = vld [vmem:[%s703 + $0x80] sm:$0xff]
        %v892 = vld [vmem:[%s703 + $0x88] sm:$0xff]
        %v893 = vld [vmem:[%s703 + $0x90] sm:$0xff]
        %v894 = vld [vmem:[%s703 + $0x98] sm:$0xff]
        %v895 = vld [vmem:[%s703 + $0xa0] sm:$0xff]
        %v896 = vld [vmem:[%s703 + $0xa8] sm:$0xff]
        %v897 = vld [vmem:[%s703 + $0xb0] sm:$0xff]
        %v898 = vld [vmem:[%s703 + $0xb8] sm:$0xff]
        %v899 = vld [vmem:[%s703 + $0xc0] sm:$0xff]
        %v900 = vld [vmem:[%s703 + $0xc8] sm:$0xff]
        %v901 = vld [vmem:[%s703 + $0xd0] sm:$0xff]
        %v902 = vld [vmem:[%s703 + $0xd8] sm:$0xff]
        %v903 = vld [vmem:[%s703 + $0xe0] sm:$0xff]
        %v904 = vld [vmem:[%s703 + $0xe8] sm:$0xff]
        %v905 = vld [vmem:[%s703 + $0xf0] sm:$0xff]
        %v906 = vld [vmem:[%s703 + $0xf8] sm:$0xff]
        %v907 = vld [vmem:[%s703 + $0x100] sm:$0xff]
        %v908 = vld [vmem:[%s703 + $0x108] sm:$0xff]
        %v909 = vld [vmem:[%s703 + $0x110] sm:$0xff]
        %v910 = vld [vmem:[%s703 + $0x118] sm:$0xff]
        %v911 = vld [vmem:[%s703 + $0x120] sm:$0xff]
        %v912 = vld [vmem:[%s703 + $0x128] sm:$0xff]
        %v913 = vld [vmem:[%s703 + $0x130] sm:$0xff]
        %v914 = vld [vmem:[%s703 + $0x138] sm:$0xff]
        %v915 = vld [vmem:[%s703 + $0x140] sm:$0xff]
        %v916 = vld [vmem:[%s703 + $0x148] sm:$0xff]
        %v917 = vld [vmem:[%s703 + $0x150] sm:$0xff]
        %v918 = vld [vmem:[%s703 + $0x158] sm:$0xff]
        %v919 = vld [vmem:[%s703 + $0x160] sm:$0xff]
        %v920 = vld [vmem:[%s703 + $0x168] sm:$0xff]
        %v921 = vld [vmem:[%s703 + $0x170] sm:$0xff]
        %v922 = vld [vmem:[%s703 + $0x178] sm:$0xff]
        %v923 = vld [vmem:[%s703 + $0x180] sm:$0xff]
        %v924 = vld [vmem:[%s703 + $0x188] sm:$0xff]
        %v925 = vld [vmem:[%s703 + $0x190] sm:$0xff]
        %v926 = vld [vmem:[%s703 + $0x198] sm:$0xff]
        %v927 = vld [vmem:[%s703 + $0x1a0] sm:$0xff]
        %v928 = vld [vmem:[%s703 + $0x1a8] sm:$0xff]
        %v929 = vld [vmem:[%s703 + $0x1b0] sm:$0xff]
        %v930 = vld [vmem:[%s703 + $0x1b8] sm:$0xff]
        %v931 = vld [vmem:[%s703 + $0x1c0] sm:$0xff]
        %v932 = vld [vmem:[%s703 + $0x1c8] sm:$0xff]
        %v933 = vld [vmem:[%s703 + $0x1d0] sm:$0xff]
        %v934 = vld [vmem:[%s703 + $0x1d8] sm:$0xff]
        %v935 = vld [vmem:[%s703 + $0x1e0] sm:$0xff]
        %v936 = vld [vmem:[%s703 + $0x1e8] sm:$0xff]
        %v937 = vld [vmem:[%s703 + $0x1f0] sm:$0xff]
        %v938 = vld [vmem:[%s703 + $0x1f8] sm:$0xff]
        %v939 = vld [vmem:[%s703 + $0x200] sm:$0xff]
        %v940 = vld [vmem:[%s703 + $0x208] sm:$0xff]
        %v941 = vld [vmem:[%s703 + $0x210] sm:$0xff]
        %v942 = vld [vmem:[%s703 + $0x218] sm:$0xff]
        %v943 = vld [vmem:[%s703 + $0x220] sm:$0xff]
        %v944 = vld [vmem:[%s703 + $0x228] sm:$0xff]
        %v945 = vld [vmem:[%s703 + $0x230] sm:$0xff]
        %v946 = vld [vmem:[%s703 + $0x238] sm:$0xff]
        %v947 = vld [vmem:[%s703 + $0x240] sm:$0xff]
        %v948 = vld [vmem:[%s703 + $0x248] sm:$0xff]
        %v949 = vld [vmem:[%s703 + $0x250] sm:$0xff]
        %v950 = vld [vmem:[%s703 + $0x258] sm:$0xff]
        %v951 = vld [vmem:[%s703 + $0x260] sm:$0xff]
        %v952 = vld [vmem:[%s703 + $0x268] sm:$0xff]
        %v953 = vld [vmem:[%s703 + $0x270] sm:$0xff]
        %v954 = vld [vmem:[%s703 + $0x278] sm:$0xff]
        %v955 = vld [vmem:[%s703 + $0x280] sm:$0xff]
        %v956 = vld [vmem:[%s703 + $0x288] sm:$0xff]
        %v957 = vld [vmem:[%s703 + $0x290] sm:$0xff]
        %v958 = vld [vmem:[%s703 + $0x298] sm:$0xff]
        %v959 = vld [vmem:[%s703 + $0x2a0] sm:$0xff]
        %v960 = vld [vmem:[%s703 + $0x2a8] sm:$0xff]
        %v961 = vld [vmem:[%s703 + $0x2b0] sm:$0xff]
        %v962 = vld [vmem:[%s703 + $0x2b8] sm:$0xff]
        %v963 = vld [vmem:[%s703 + $0x2c0] sm:$0xff]
        %v964 = vld [vmem:[%s703 + $0x2c8] sm:$0xff]
        %v965 = vld [vmem:[%s703 + $0x2d0] sm:$0xff]
        %v966 = vld [vmem:[%s703 + $0x2d8] sm:$0xff]
        %v967 = vld [vmem:[%s703 + $0x2e0] sm:$0xff]
        %v968 = vld [vmem:[%s703 + $0x2e8] sm:$0xff]
        %v969 = vld [vmem:[%s703 + $0x2f0] sm:$0xff]
        %v970 = vld [vmem:[%s703 + $0x2f8] sm:$0xff]
        %v971 = vld [vmem:[%s703 + $0x300] sm:$0xff]
        %v972 = vld [vmem:[%s703 + $0x308] sm:$0xff]
        %v973 = vld [vmem:[%s703 + $0x310] sm:$0xff]
        %v974 = vld [vmem:[%s703 + $0x318] sm:$0xff]
        %v975 = vld [vmem:[%s703 + $0x320] sm:$0xff]
        %v976 = vld [vmem:[%s703 + $0x328] sm:$0xff]
        %v977 = vld [vmem:[%s703 + $0x330] sm:$0xff]
        %v978 = vld [vmem:[%s703 + $0x338] sm:$0xff]
        %v979 = vld [vmem:[%s703 + $0x340] sm:$0xff]
        %v980 = vld [vmem:[%s703 + $0x348] sm:$0xff]
        %v981 = vld [vmem:[%s703 + $0x350] sm:$0xff]
        %v982 = vld [vmem:[%s703 + $0x358] sm:$0xff]
        %v983 = vld [vmem:[%s703 + $0x360] sm:$0xff]
        %v984 = vld [vmem:[%s703 + $0x368] sm:$0xff]
        %v985 = vld [vmem:[%s703 + $0x370] sm:$0xff]
        %v986 = vld [vmem:[%s703 + $0x378] sm:$0xff]
        %v987 = vld [vmem:[%s703 + $0x380] sm:$0xff]
        %v988 = vld [vmem:[%s703 + $0x388] sm:$0xff]
        %v989 = vld [vmem:[%s703 + $0x390] sm:$0xff]
        %v990 = vld [vmem:[%s703 + $0x398] sm:$0xff]
        %v991 = vld [vmem:[%s703 + $0x3a0] sm:$0xff]
        %v992 = vld [vmem:[%s703 + $0x3a8] sm:$0xff]
        %v993 = vld [vmem:[%s703 + $0x3b0] sm:$0xff]
        %v994 = vld [vmem:[%s703 + $0x3b8] sm:$0xff]
        %v995 = vld [vmem:[%s703 + $0x3c0] sm:$0xff]
        %v996 = vld [vmem:[%s703 + $0x3c8] sm:$0xff]
        %v997 = vld [vmem:[%s703 + $0x3d0] sm:$0xff]
        %v998 = vld [vmem:[%s703 + $0x3d8] sm:$0xff]
        %v999 = vld [vmem:[%s703 + $0x3e0] sm:$0xff]
        %v1000 = vld [vmem:[%s703 + $0x3e8] sm:$0xff]
        %v1001 = vld [vmem:[%s703 + $0x3f0] sm:$0xff]
        %v1002 = vld [vmem:[%s703 + $0x3f8] sm:$0xff]
        %v1003 = vld [vmem:[%s703 + $0x400] sm:$0xff]
        %v1004 = vld [vmem:[%s703 + $0x408] sm:$0xff]
        %v1005 = vld [vmem:[%s703 + $0x410] sm:$0xff]
        %v1006 = vld [vmem:[%s703 + $0x418] sm:$0xff]
        %v1007 = vld [vmem:[%s703 + $0x420] sm:$0xff]
        %v1008 = vld [vmem:[%s703 + $0x428] sm:$0xff]
        %v1009 = vld [vmem:[%s703 + $0x430] sm:$0xff]
        %v1010 = vld [vmem:[%s703 + $0x438] sm:$0xff]
        %v1011 = vld [vmem:[%s703 + $0x440] sm:$0xff]
        %v1012 = vld [vmem:[%s703 + $0x448] sm:$0xff]
        %v1013 = vld [vmem:[%s703 + $0x450] sm:$0xff]
        %v1014 = vld [vmem:[%s703 + $0x458] sm:$0xff]
        %v1015 = vld [vmem:[%s703 + $0x460] sm:$0xff]
        %v1016 = vld [vmem:[%s703 + $0x468] sm:$0xff]
        %v1017 = vld [vmem:[%s703 + $0x470] sm:$0xff]
        %v1018 = vld [vmem:[%s703 + $0x478] sm:$0xff]
        %v1019 = vld [vmem:[%s703 + $0x480] sm:$0xff]
        %v1020 = vld [vmem:[%s703 + $0x488] sm:$0xff]
        %v1021 = vld [vmem:[%s703 + $0x490] sm:$0xff]
        %v1022 = vld [vmem:[%s703 + $0x498] sm:$0xff]
        %v1023 = vld [vmem:[%s703 + $0x4a0] sm:$0xff]
        %v1024 = vld [vmem:[%s703 + $0x4a8] sm:$0xff]
        %v1025 = vld [vmem:[%s703 + $0x4b0] sm:$0xff]
        %v1026 = vld [vmem:[%s703 + $0x4b8] sm:$0xff]
        %v1027 = vld [vmem:[%s703 + $0x4c0] sm:$0xff]
        %v1028 = vld [vmem:[%s703 + $0x4c8] sm:$0xff]
        %v1029 = vld [vmem:[%s703 + $0x4d0] sm:$0xff]
        %v1030 = vld [vmem:[%s703 + $0x4d8] sm:$0xff]
        %v1031 = vld [vmem:[%s703 + $0x4e0] sm:$0xff]
        %v1032 = vld [vmem:[%s703 + $0x4e8] sm:$0xff]
        %v1033 = vld [vmem:[%s703 + $0x4f0] sm:$0xff]
        %v1034 = vld [vmem:[%s703 + $0x4f8] sm:$0xff]
        %v1035 = vld [vmem:[%s703 + $0x500] sm:$0xff]
        %v1036 = vld [vmem:[%s703 + $0x508] sm:$0xff]
        %v1037 = vld [vmem:[%s703 + $0x510] sm:$0xff]
        %v1038 = vld [vmem:[%s703 + $0x518] sm:$0xff]
        %v1039 = vld [vmem:[%s703 + $0x520] sm:$0xff]
        %v1040 = vld [vmem:[%s703 + $0x528] sm:$0xff]
        %v1041 = vld [vmem:[%s703 + $0x530] sm:$0xff]
        %v1042 = vld [vmem:[%s703 + $0x538] sm:$0xff]
        %v1043 = vld [vmem:[%s703 + $0x540] sm:$0xff]
        %v1044 = vld [vmem:[%s703 + $0x548] sm:$0xff]
        %v1045 = vld [vmem:[%s703 + $0x550] sm:$0xff]
        %v1046 = vld [vmem:[%s703 + $0x558] sm:$0xff]
        %v1047 = vld [vmem:[%s703 + $0x560] sm:$0xff]
        %v1048 = vld [vmem:[%s703 + $0x568] sm:$0xff]
        %v1049 = vld [vmem:[%s703 + $0x570] sm:$0xff]
        %v1050 = vld [vmem:[%s703 + $0x578] sm:$0xff]
        %v1051 = vld [vmem:[%s703 + $0x580] sm:$0xff]
        %v1052 = vld [vmem:[%s703 + $0x588] sm:$0xff]
        %v1053 = vld [vmem:[%s703 + $0x590] sm:$0xff]
        %v1054 = vld [vmem:[%s703 + $0x598] sm:$0xff]
        %v1055 = vld [vmem:[%s703 + $0x5a0] sm:$0xff]
        %v1056 = vld [vmem:[%s703 + $0x5a8] sm:$0xff]
        %v1057 = vld [vmem:[%s703 + $0x5b0] sm:$0xff]
        %v1058 = vld [vmem:[%s703 + $0x5b8] sm:$0xff]
        %v1059 = vld [vmem:[%s703 + $0x5c0] sm:$0xff]
        %v1060 = vld [vmem:[%s703 + $0x5c8] sm:$0xff]
        %v1061 = vld [vmem:[%s703 + $0x5d0] sm:$0xff]
        %v1062 = vld [vmem:[%s703 + $0x5d8] sm:$0xff]
        %v1063 = vld [vmem:[%s703 + $0x5e0] sm:$0xff]
        %v1064 = vld [vmem:[%s703 + $0x5e8] sm:$0xff]
        %v1065 = vld [vmem:[%s703 + $0x5f0] sm:$0xff]
        %v1066 = vld [vmem:[%s703 + $0x5f8] sm:$0xff]
        %v1067 = vld [vmem:[%s703 + $0x600] sm:$0xff]
        %v1068 = vld [vmem:[%s703 + $0x608] sm:$0xff]
        %v1069 = vld [vmem:[%s703 + $0x610] sm:$0xff]
        %v1070 = vld [vmem:[%s703 + $0x618] sm:$0xff]
        %v1071 = vld [vmem:[%s703 + $0x620] sm:$0xff]
        %v1072 = vld [vmem:[%s703 + $0x628] sm:$0xff]
        %v1073 = vld [vmem:[%s703 + $0x630] sm:$0xff]
        %v1074 = vld [vmem:[%s703 + $0x638] sm:$0xff]
        %v1075 = vld [vmem:[%s703 + $0x640] sm:$0xff]
        %v1076 = vld [vmem:[%s703 + $0x648] sm:$0xff]
        %v1077 = vld [vmem:[%s703 + $0x650] sm:$0xff]
        %v1078 = vld [vmem:[%s703 + $0x658] sm:$0xff]
        %v1079 = vld [vmem:[%s703 + $0x660] sm:$0xff]
        %v1080 = vld [vmem:[%s703 + $0x668] sm:$0xff]
        %v1081 = vld [vmem:[%s703 + $0x670] sm:$0xff]
        %v1082 = vld [vmem:[%s703 + $0x678] sm:$0xff]
        %v1083 = vld [vmem:[%s703 + $0x680] sm:$0xff]
        %v1084 = vld [vmem:[%s703 + $0x688] sm:$0xff]
        %v1085 = vld [vmem:[%s703 + $0x690] sm:$0xff]
        %v1086 = vld [vmem:[%s703 + $0x698] sm:$0xff]
        %v1087 = vld [vmem:[%s703 + $0x6a0] sm:$0xff]
        %v1088 = vld [vmem:[%s703 + $0x6a8] sm:$0xff]
        %v1089 = vld [vmem:[%s703 + $0x6b0] sm:$0xff]
        %v1090 = vld [vmem:[%s703 + $0x6b8] sm:$0xff]
        %v1091 = vld [vmem:[%s703 + $0x6c0] sm:$0xff]
        %v1092 = vld [vmem:[%s703 + $0x6c8] sm:$0xff]
        %v1093 = vld [vmem:[%s703 + $0x6d0] sm:$0xff]
        %v1094 = vld [vmem:[%s703 + $0x6d8] sm:$0xff]
        %v1095 = vld [vmem:[%s703 + $0x6e0] sm:$0xff]
        %v1096 = vld [vmem:[%s703 + $0x6e8] sm:$0xff]
        %v1097 = vld [vmem:[%s703 + $0x6f0] sm:$0xff]
        %v1098 = vld [vmem:[%s703 + $0x6f8] sm:$0xff]
        %v1099 = vld [vmem:[%s703 + $0x700] sm:$0xff]
        %v1100 = vld [vmem:[%s703 + $0x708] sm:$0xff]
        %v1101 = vld [vmem:[%s703 + $0x710] sm:$0xff]
        %v1102 = vld [vmem:[%s703 + $0x718] sm:$0xff]
        %v1103 = vld [vmem:[%s703 + $0x720] sm:$0xff]
        %v1104 = vld [vmem:[%s703 + $0x728] sm:$0xff]
        %v1105 = vld [vmem:[%s703 + $0x730] sm:$0xff]
        %v1106 = vld [vmem:[%s703 + $0x738] sm:$0xff]
        %v1107 = vld [vmem:[%s703 + $0x740] sm:$0xff]
        %v1108 = vld [vmem:[%s703 + $0x748] sm:$0xff]
        %v1109 = vld [vmem:[%s703 + $0x750] sm:$0xff]
        %v1110 = vld [vmem:[%s703 + $0x758] sm:$0xff]
        %v1111 = vld [vmem:[%s703 + $0x760] sm:$0xff]
        %v1112 = vld [vmem:[%s703 + $0x768] sm:$0xff]
        %v1113 = vld [vmem:[%s703 + $0x770] sm:$0xff]
        %v1114 = vld [vmem:[%s703 + $0x778] sm:$0xff]
        %v1115 = vld [vmem:[%s703 + $0x780] sm:$0xff]
        %v1116 = vld [vmem:[%s703 + $0x788] sm:$0xff]
        %v1117 = vld [vmem:[%s703 + $0x790] sm:$0xff]
        %v1118 = vld [vmem:[%s703 + $0x798] sm:$0xff]
        %v1119 = vld [vmem:[%s703 + $0x7a0] sm:$0xff]
        %v1120 = vld [vmem:[%s703 + $0x7a8] sm:$0xff]
        %v1121 = vld [vmem:[%s703 + $0x7b0] sm:$0xff]
        %v1122 = vld [vmem:[%s703 + $0x7b8] sm:$0xff]
        %v1123 = vld [vmem:[%s703 + $0x7c0] sm:$0xff]
        %v1124 = vld [vmem:[%s703 + $0x7c8] sm:$0xff]
        %v1125 = vld [vmem:[%s703 + $0x7d0] sm:$0xff]
        %v1126 = vld [vmem:[%s703 + $0x7d8] sm:$0xff]
        %v1127 = vld [vmem:[%s703 + $0x7e0] sm:$0xff]
        %v1128 = vld [vmem:[%s703 + $0x7e8] sm:$0xff]
        %v1129 = vld [vmem:[%s703 + $0x7f0] sm:$0xff]
        %v1130 = vld [vmem:[%s703 + $0x7f8] sm:$0xff]
        %v1131 = vld [vmem:[%s735] sm:$0xff]
        %v1132 = vld [vmem:[%s735 + $0x8] sm:$0xff]
        %v1133 = vld [vmem:[%s735 + $0x10] sm:$0xff]
        %v1134 = vld [vmem:[%s735 + $0x18] sm:$0xff]
        %v1135 = vld [vmem:[%s735 + $0x20] sm:$0xff]
        %v1136 = vld [vmem:[%s735 + $0x28] sm:$0xff]
        %v1137 = vld [vmem:[%s735 + $0x30] sm:$0xff]
        %v1138 = vld [vmem:[%s735 + $0x38] sm:$0xff]
        %v1139 = vld [vmem:[%s735 + $0x40] sm:$0xff]
        %v1140 = vld [vmem:[%s735 + $0x48] sm:$0xff]
        %v1141 = vld [vmem:[%s735 + $0x50] sm:$0xff]
        %v1142 = vld [vmem:[%s735 + $0x58] sm:$0xff]
        %v1143 = vld [vmem:[%s735 + $0x60] sm:$0xff]
        %v1144 = vld [vmem:[%s735 + $0x68] sm:$0xff]
        %v1145 = vld [vmem:[%s735 + $0x70] sm:$0xff]
        %v1146 = vld [vmem:[%s735 + $0x78] sm:$0xff]
        %v1147 = vld [vmem:[%s735 + $0x80] sm:$0xff]
        %v1148 = vld [vmem:[%s735 + $0x88] sm:$0xff]
        %v1149 = vld [vmem:[%s735 + $0x90] sm:$0xff]
        %v1150 = vld [vmem:[%s735 + $0x98] sm:$0xff]
        %v1151 = vld [vmem:[%s735 + $0xa0] sm:$0xff]
        %v1152 = vld [vmem:[%s735 + $0xa8] sm:$0xff]
        %v1153 = vld [vmem:[%s735 + $0xb0] sm:$0xff]
        %v1154 = vld [vmem:[%s735 + $0xb8] sm:$0xff]
        %v1155 = vld [vmem:[%s735 + $0xc0] sm:$0xff]
        %v1156 = vld [vmem:[%s735 + $0xc8] sm:$0xff]
        %v1157 = vld [vmem:[%s735 + $0xd0] sm:$0xff]
        %v1158 = vld [vmem:[%s735 + $0xd8] sm:$0xff]
        %v1159 = vld [vmem:[%s735 + $0xe0] sm:$0xff]
        %v1160 = vld [vmem:[%s735 + $0xe8] sm:$0xff]
        %v1161 = vld [vmem:[%s735 + $0xf0] sm:$0xff]
        %v1162 = vld [vmem:[%s735 + $0xf8] sm:$0xff]
        %v1163 = vld [vmem:[%s735 + $0x100] sm:$0xff]
        %v1164 = vld [vmem:[%s735 + $0x108] sm:$0xff]
        %v1165 = vld [vmem:[%s735 + $0x110] sm:$0xff]
        %v1166 = vld [vmem:[%s735 + $0x118] sm:$0xff]
        %v1167 = vld [vmem:[%s735 + $0x120] sm:$0xff]
        %v1168 = vld [vmem:[%s735 + $0x128] sm:$0xff]
        %v1169 = vld [vmem:[%s735 + $0x130] sm:$0xff]
        %v1170 = vld [vmem:[%s735 + $0x138] sm:$0xff]
        %v1171 = vld [vmem:[%s735 + $0x140] sm:$0xff]
        %v1172 = vld [vmem:[%s735 + $0x148] sm:$0xff]
        %v1173 = vld [vmem:[%s735 + $0x150] sm:$0xff]
        %v1174 = vld [vmem:[%s735 + $0x158] sm:$0xff]
        %v1175 = vld [vmem:[%s735 + $0x160] sm:$0xff]
        %v1176 = vld [vmem:[%s735 + $0x168] sm:$0xff]
        %v1177 = vld [vmem:[%s735 + $0x170] sm:$0xff]
        %v1178 = vld [vmem:[%s735 + $0x178] sm:$0xff]
        %v1179 = vld [vmem:[%s735 + $0x180] sm:$0xff]
        %v1180 = vld [vmem:[%s735 + $0x188] sm:$0xff]
        %v1181 = vld [vmem:[%s735 + $0x190] sm:$0xff]
        %v1182 = vld [vmem:[%s735 + $0x198] sm:$0xff]
        %v1183 = vld [vmem:[%s735 + $0x1a0] sm:$0xff]
        %v1184 = vld [vmem:[%s735 + $0x1a8] sm:$0xff]
        %v1185 = vld [vmem:[%s735 + $0x1b0] sm:$0xff]
        %v1186 = vld [vmem:[%s735 + $0x1b8] sm:$0xff]
        %v1187 = vld [vmem:[%s735 + $0x1c0] sm:$0xff]
        %v1188 = vld [vmem:[%s735 + $0x1c8] sm:$0xff]
        %v1189 = vld [vmem:[%s735 + $0x1d0] sm:$0xff]
        %v1190 = vld [vmem:[%s735 + $0x1d8] sm:$0xff]
        %v1191 = vld [vmem:[%s735 + $0x1e0] sm:$0xff]
        %v1192 = vld [vmem:[%s735 + $0x1e8] sm:$0xff]
        %v1193 = vld [vmem:[%s735 + $0x1f0] sm:$0xff]
        %v1194 = vld [vmem:[%s735 + $0x1f8] sm:$0xff]
        %1195 = vmatprep.subr.mxu0 0.0
        %1196 = vmatpush1.msra.mxu0 %v1146
        %1197 = vmatprep.subr.mxu0 0.0
        %1198 = vmatpush1.msra.mxu0 %v1145
        %1199 = vmatprep.subr.mxu0 0.0
        %1200 = vmatpush1.msra.mxu0 %v1144
        %1201 = vmatprep.subr.mxu0 0.0
        %1202 = vmatpush1.msra.mxu0 %v1143
        %1203 = vmatprep.subr.mxu0 0.0
        %1204 = vmatpush1.msra.mxu0 %v1142
        %1205 = vmatprep.subr.mxu0 0.0
        %1206 = vmatpush1.msra.mxu0 %v1141
        %1207 = vmatprep.subr.mxu0 0.0
        %1208 = vmatpush1.msra.mxu0 %v1140
        %1209 = vmatprep.subr.mxu0 0.0
        %1210 = vmatpush1.msra.mxu0 %v1139
        %1211 = vmatprep.subr.mxu0 0.0
        %1212 = vmatpush1.msra.mxu0 %v1138
        %1213 = vmatprep.subr.mxu0 0.0
        %1214 = vmatpush1.msra.mxu0 %v1137
        %1215 = vmatprep.subr.mxu0 0.0
        %1216 = vmatpush1.msra.mxu0 %v1136
        %1217 = vmatprep.subr.mxu0 0.0
        %1218 = vmatpush1.msra.mxu0 %v1135
        %1219 = vmatprep.subr.mxu0 0.0
        %1220 = vmatpush1.msra.mxu0 %v1134
        %1221 = vmatprep.subr.mxu0 0.0
        %1222 = vmatpush1.msra.mxu0 %v1133
        %1223 = vmatprep.subr.mxu0 0.0
        %1224 = vmatpush1.msra.mxu0 %v1132
        %1225 = vmatprep.subr.mxu0 0.0
        %1226 = vmatpush1.msra.mxu0 %v1131
        %1227 = vmatprep.subr.mxu0 0.0
        %1228 = vmatpush2.msra.mxu0 %v1162
        %1229 = vmatprep.subr.mxu0 0.0
        %1230 = vmatpush2.msra.mxu0 %v1161
        %1231 = vmatprep.subr.mxu0 0.0
        %1232 = vmatpush2.msra.mxu0 %v1160
        %1233 = vmatprep.subr.mxu0 0.0
        %1234 = vmatpush2.msra.mxu0 %v1159
        %1235 = vmatprep.subr.mxu0 0.0
        %1236 = vmatpush2.msra.mxu0 %v1158
        %1237 = vmatprep.subr.mxu0 0.0
        %1238 = vmatpush2.msra.mxu0 %v1157
        %1239 = vmatprep.subr.mxu0 0.0
        %1240 = vmatpush2.msra.mxu0 %v1156
        %1241 = vmatprep.subr.mxu0 0.0
        %1242 = vmatpush2.msra.mxu0 %v1155
        %1243 = vmatprep.subr.mxu0 0.0
        %1244 = vmatpush2.msra.mxu0 %v1154
        %1245 = vmatprep.subr.mxu0 0.0
        %1246 = vmatpush2.msra.mxu0 %v1153
        %1247 = vmatprep.subr.mxu0 0.0
        %1248 = vmatpush2.msra.mxu0 %v1152
        %1249 = vmatprep.subr.mxu0 0.0
        %1250 = vmatpush2.msra.mxu0 %v1151
        %1251 = vmatprep.subr.mxu0 0.0
        %1252 = vmatpush2.msra.mxu0 %v1150
        %1253 = vmatprep.subr.mxu0 0.0
        %1254 = vmatpush2.msra.mxu0 %v1149
        %1255 = vmatprep.subr.mxu0 0.0
        %1256 = vmatpush2.msra.mxu0 %v1148
        %1257 = vmatprep.subr.mxu0 0.0
        %1258 = vmatpush2.msra.mxu0 %v1147
        %1259 = vmatprep.mubr.f32.mxu0 %v876
        %1260 = vmatmul.mubr.f32.gmra.mxu0 %v875
        %v1261 = vpop.f32.mrf.mxu0
        %v1262 = vadd.f32 0.0, %v1261
        %v1263 = vpop.f32.mrf.mxu0
        %1264 = vmatprep.mubr.f32.mxu0 %v880
        %1265 = vmatmul.mubr.f32.gmra.mxu0 %v879
        %v1266 = vpop.f32.mrf.mxu0
        %v1267 = vadd.f32 0.0, %v1266
        %v1268 = vpop.f32.mrf.mxu0
        %1269 = vmatprep.mubr.f32.mxu0 %v884
        %1270 = vmatmul.mubr.f32.gmra.mxu0 %v883
        %v1271 = vpop.f32.mrf.mxu0
        %v1272 = vadd.f32 0.0, %v1271
        %v1273 = vpop.f32.mrf.mxu0
        %1274 = vmatprep.mubr.f32.mxu0 %v888
        %1275 = vmatmul.mubr.f32.gmra.mxu0 %v887
        %v1276 = vpop.f32.mrf.mxu0
        %v1277 = vadd.f32 0.0, %v1276
        %v1278 = vpop.f32.mrf.mxu0
        %1279 = vmatprep.mubr.f32.mxu0 %v892
        %1280 = vmatmul.mubr.f32.gmra.mxu0 %v891
        %v1281 = vpop.f32.mrf.mxu0
        %v1282 = vadd.f32 0.0, %v1281
        %v1283 = vpop.f32.mrf.mxu0
        %1284 = vmatprep.mubr.f32.mxu0 %v896
        %1285 = vmatmul.mubr.f32.gmra.mxu0 %v895
        %v1286 = vpop.f32.mrf.mxu0
        %v1287 = vadd.f32 0.0, %v1286
        %v1288 = vpop.f32.mrf.mxu0
        %1289 = vmatprep.mubr.f32.mxu0 %v900
        %1290 = vmatmul.mubr.f32.gmra.mxu0 %v899
        %v1291 = vpop.f32.mrf.mxu0
        %v1292 = vadd.f32 0.0, %v1291
        %v1293 = vpop.f32.mrf.mxu0
        %1294 = vmatprep.mubr.f32.mxu0 %v904
        %1295 = vmatmul.mubr.f32.gmra.mxu0 %v903
        %v1296 = vpop.f32.mrf.mxu0
        %v1297 = vadd.f32 0.0, %v1296
        %v1298 = vpop.f32.mrf.mxu0
        %1299 = vmatprep.mubr.f32.mxu0 %v908
        %1300 = vmatmul.mubr.f32.gmra.mxu0 %v907
        %v1301 = vpop.f32.mrf.mxu0
        %v1302 = vadd.f32 0.0, %v1301
        %v1303 = vpop.f32.mrf.mxu0
        %1304 = vmatprep.mubr.f32.mxu0 %v912
        %1305 = vmatmul.mubr.f32.gmra.mxu0 %v911
        %v1306 = vpop.f32.mrf.mxu0
        %v1307 = vadd.f32 0.0, %v1306
        %v1308 = vpop.f32.mrf.mxu0
        %1309 = vmatprep.mubr.f32.mxu0 %v916
        %1310 = vmatmul.mubr.f32.gmra.mxu0 %v915
        %v1311 = vpop.f32.mrf.mxu0
        %v1312 = vadd.f32 0.0, %v1311
        %v1313 = vpop.f32.mrf.mxu0
        %1314 = vmatprep.mubr.f32.mxu0 %v920
        %1315 = vmatmul.mubr.f32.gmra.mxu0 %v919
        %v1316 = vpop.f32.mrf.mxu0
        %v1317 = vadd.f32 0.0, %v1316
        %v1318 = vpop.f32.mrf.mxu0
        %1319 = vmatprep.mubr.f32.mxu0 %v924
        %1320 = vmatmul.mubr.f32.gmra.mxu0 %v923
        %v1321 = vpop.f32.mrf.mxu0
        %v1322 = vadd.f32 0.0, %v1321
        %v1323 = vpop.f32.mrf.mxu0
        %1324 = vmatprep.mubr.f32.mxu0 %v928
        %1325 = vmatmul.mubr.f32.gmra.mxu0 %v927
        %v1326 = vpop.f32.mrf.mxu0
        %v1327 = vadd.f32 0.0, %v1326
        %v1328 = vpop.f32.mrf.mxu0
        %1329 = vmatprep.mubr.f32.mxu0 %v932
        %1330 = vmatmul.mubr.f32.gmra.mxu0 %v931
        %v1331 = vpop.f32.mrf.mxu0
        %v1332 = vadd.f32 0.0, %v1331
        %v1333 = vpop.f32.mrf.mxu0
        %1334 = vmatprep.mubr.f32.mxu0 %v936
        %1335 = vmatmul.mubr.f32.gmra.mxu0 %v935
        %v1336 = vpop.f32.mrf.mxu0
        %v1337 = vadd.f32 0.0, %v1336
        %v1338 = vpop.f32.mrf.mxu0
        %1339 = vmatprep.mubr.f32.mxu0 %v940
        %1340 = vmatmul.mubr.f32.gmra.mxu0 %v939
        %v1341 = vpop.f32.mrf.mxu0
        %v1342 = vadd.f32 0.0, %v1341
        %v1343 = vpop.f32.mrf.mxu0
        %1344 = vmatprep.mubr.f32.mxu0 %v944
        %1345 = vmatmul.mubr.f32.gmra.mxu0 %v943
        %v1346 = vpop.f32.mrf.mxu0
        %v1347 = vadd.f32 0.0, %v1346
        %v1348 = vpop.f32.mrf.mxu0
        %1349 = vmatprep.mubr.f32.mxu0 %v948
        %1350 = vmatmul.mubr.f32.gmra.mxu0 %v947
        %v1351 = vpop.f32.mrf.mxu0
        %v1352 = vadd.f32 0.0, %v1351
        %v1353 = vpop.f32.mrf.mxu0
        %1354 = vmatprep.mubr.f32.mxu0 %v952
        %1355 = vmatmul.mubr.f32.gmra.mxu0 %v951
        %v1356 = vpop.f32.mrf.mxu0
        %v1357 = vadd.f32 0.0, %v1356
        %v1358 = vpop.f32.mrf.mxu0
        %1359 = vmatprep.mubr.f32.mxu0 %v956
        %1360 = vmatmul.mubr.f32.gmra.mxu0 %v955
        %v1361 = vpop.f32.mrf.mxu0
        %v1362 = vadd.f32 0.0, %v1361
        %v1363 = vpop.f32.mrf.mxu0
        %1364 = vmatprep.mubr.f32.mxu0 %v960
        %1365 = vmatmul.mubr.f32.gmra.mxu0 %v959
        %v1366 = vpop.f32.mrf.mxu0
        %v1367 = vadd.f32 0.0, %v1366
        %v1368 = vpop.f32.mrf.mxu0
        %1369 = vmatprep.mubr.f32.mxu0 %v964
        %1370 = vmatmul.mubr.f32.gmra.mxu0 %v963
        %v1371 = vpop.f32.mrf.mxu0
        %v1372 = vadd.f32 0.0, %v1371
        %v1373 = vpop.f32.mrf.mxu0
        %1374 = vmatprep.mubr.f32.mxu0 %v968
        %1375 = vmatmul.mubr.f32.gmra.mxu0 %v967
        %v1376 = vpop.f32.mrf.mxu0
        %v1377 = vadd.f32 0.0, %v1376
        %v1378 = vpop.f32.mrf.mxu0
        %1379 = vmatprep.mubr.f32.mxu0 %v972
        %1380 = vmatmul.mubr.f32.gmra.mxu0 %v971
        %v1381 = vpop.f32.mrf.mxu0
        %v1382 = vadd.f32 0.0, %v1381
        %v1383 = vpop.f32.mrf.mxu0
        %1384 = vmatprep.mubr.f32.mxu0 %v976
        %1385 = vmatmul.mubr.f32.gmra.mxu0 %v975
        %v1386 = vpop.f32.mrf.mxu0
        %v1387 = vadd.f32 0.0, %v1386
        %v1388 = vpop.f32.mrf.mxu0
        %1389 = vmatprep.mubr.f32.mxu0 %v980
        %1390 = vmatmul.mubr.f32.gmra.mxu0 %v979
        %v1391 = vpop.f32.mrf.mxu0
        %v1392 = vadd.f32 0.0, %v1391
        %v1393 = vpop.f32.mrf.mxu0
        %1394 = vmatprep.mubr.f32.mxu0 %v984
        %1395 = vmatmul.mubr.f32.gmra.mxu0 %v983
        %v1396 = vpop.f32.mrf.mxu0
        %v1397 = vadd.f32 0.0, %v1396
        %v1398 = vpop.f32.mrf.mxu0
        %1399 = vmatprep.mubr.f32.mxu0 %v988
        %1400 = vmatmul.mubr.f32.gmra.mxu0 %v987
        %v1401 = vpop.f32.mrf.mxu0
        %v1402 = vadd.f32 0.0, %v1401
        %v1403 = vpop.f32.mrf.mxu0
        %1404 = vmatprep.mubr.f32.mxu0 %v992
        %1405 = vmatmul.mubr.f32.gmra.mxu0 %v991
        %v1406 = vpop.f32.mrf.mxu0
        %v1407 = vadd.f32 0.0, %v1406
        %v1408 = vpop.f32.mrf.mxu0
        %1409 = vmatprep.mubr.f32.mxu0 %v996
        %1410 = vmatmul.mubr.f32.gmra.mxu0 %v995
        %v1411 = vpop.f32.mrf.mxu0
        %v1412 = vadd.f32 0.0, %v1411
        %v1413 = vpop.f32.mrf.mxu0
        %1414 = vmatprep.mubr.f32.mxu0 %v1000
        %1415 = vmatmul.mubr.f32.gmra.mxu0 %v999
        %v1416 = vpop.f32.mrf.mxu0
        %v1417 = vadd.f32 0.0, %v1416
        %v1418 = vpop.f32.mrf.mxu0
        %1419 = vmatprep.mubr.f32.mxu0 %v1004
        %1420 = vmatmul.mubr.f32.gmra.mxu0 %v1003
        %v1421 = vpop.f32.mrf.mxu0
        %v1422 = vadd.f32 0.0, %v1421
        %v1423 = vpop.f32.mrf.mxu0
        %1424 = vmatprep.mubr.f32.mxu0 %v1008
        %1425 = vmatmul.mubr.f32.gmra.mxu0 %v1007
        %v1426 = vpop.f32.mrf.mxu0
        %v1427 = vadd.f32 0.0, %v1426
        %v1428 = vpop.f32.mrf.mxu0
        %1429 = vmatprep.mubr.f32.mxu0 %v1012
        %1430 = vmatmul.mubr.f32.gmra.mxu0 %v1011
        %v1431 = vpop.f32.mrf.mxu0
        %v1432 = vadd.f32 0.0, %v1431
        %v1433 = vpop.f32.mrf.mxu0
        %1434 = vmatprep.mubr.f32.mxu0 %v1016
        %1435 = vmatmul.mubr.f32.gmra.mxu0 %v1015
        %v1436 = vpop.f32.mrf.mxu0
        %v1437 = vadd.f32 0.0, %v1436
        %v1438 = vpop.f32.mrf.mxu0
        %1439 = vmatprep.mubr.f32.mxu0 %v1020
        %1440 = vmatmul.mubr.f32.gmra.mxu0 %v1019
        %v1441 = vpop.f32.mrf.mxu0
        %v1442 = vadd.f32 0.0, %v1441
        %v1443 = vpop.f32.mrf.mxu0
        %1444 = vmatprep.mubr.f32.mxu0 %v1024
        %1445 = vmatmul.mubr.f32.gmra.mxu0 %v1023
        %v1446 = vpop.f32.mrf.mxu0
        %v1447 = vadd.f32 0.0, %v1446
        %v1448 = vpop.f32.mrf.mxu0
        %1449 = vmatprep.mubr.f32.mxu0 %v1028
        %1450 = vmatmul.mubr.f32.gmra.mxu0 %v1027
        %v1451 = vpop.f32.mrf.mxu0
        %v1452 = vadd.f32 0.0, %v1451
        %v1453 = vpop.f32.mrf.mxu0
        %1454 = vmatprep.mubr.f32.mxu0 %v1032
        %1455 = vmatmul.mubr.f32.gmra.mxu0 %v1031
        %v1456 = vpop.f32.mrf.mxu0
        %v1457 = vadd.f32 0.0, %v1456
        %v1458 = vpop.f32.mrf.mxu0
        %1459 = vmatprep.mubr.f32.mxu0 %v1036
        %1460 = vmatmul.mubr.f32.gmra.mxu0 %v1035
        %v1461 = vpop.f32.mrf.mxu0
        %v1462 = vadd.f32 0.0, %v1461
        %v1463 = vpop.f32.mrf.mxu0
        %1464 = vmatprep.mubr.f32.mxu0 %v1040
        %1465 = vmatmul.mubr.f32.gmra.mxu0 %v1039
        %v1466 = vpop.f32.mrf.mxu0
        %v1467 = vadd.f32 0.0, %v1466
        %v1468 = vpop.f32.mrf.mxu0
        %1469 = vmatprep.mubr.f32.mxu0 %v1044
        %1470 = vmatmul.mubr.f32.gmra.mxu0 %v1043
        %v1471 = vpop.f32.mrf.mxu0
        %v1472 = vadd.f32 0.0, %v1471
        %v1473 = vpop.f32.mrf.mxu0
        %1474 = vmatprep.mubr.f32.mxu0 %v1048
        %1475 = vmatmul.mubr.f32.gmra.mxu0 %v1047
        %v1476 = vpop.f32.mrf.mxu0
        %v1477 = vadd.f32 0.0, %v1476
        %v1478 = vpop.f32.mrf.mxu0
        %1479 = vmatprep.mubr.f32.mxu0 %v1052
        %1480 = vmatmul.mubr.f32.gmra.mxu0 %v1051
        %v1481 = vpop.f32.mrf.mxu0
        %v1482 = vadd.f32 0.0, %v1481
        %v1483 = vpop.f32.mrf.mxu0
        %1484 = vmatprep.mubr.f32.mxu0 %v1056
        %1485 = vmatmul.mubr.f32.gmra.mxu0 %v1055
        %v1486 = vpop.f32.mrf.mxu0
        %v1487 = vadd.f32 0.0, %v1486
        %v1488 = vpop.f32.mrf.mxu0
        %1489 = vmatprep.mubr.f32.mxu0 %v1060
        %1490 = vmatmul.mubr.f32.gmra.mxu0 %v1059
        %v1491 = vpop.f32.mrf.mxu0
        %v1492 = vadd.f32 0.0, %v1491
        %v1493 = vpop.f32.mrf.mxu0
        %1494 = vmatprep.mubr.f32.mxu0 %v1064
        %1495 = vmatmul.mubr.f32.gmra.mxu0 %v1063
        %v1496 = vpop.f32.mrf.mxu0
        %v1497 = vadd.f32 0.0, %v1496
        %v1498 = vpop.f32.mrf.mxu0
        %1499 = vmatprep.mubr.f32.mxu0 %v1068
        %1500 = vmatmul.mubr.f32.gmra.mxu0 %v1067
        %v1501 = vpop.f32.mrf.mxu0
        %v1502 = vadd.f32 0.0, %v1501
        %v1503 = vpop.f32.mrf.mxu0
        %1504 = vmatprep.mubr.f32.mxu0 %v1072
        %1505 = vmatmul.mubr.f32.gmra.mxu0 %v1071
        %v1506 = vpop.f32.mrf.mxu0
        %v1507 = vadd.f32 0.0, %v1506
        %v1508 = vpop.f32.mrf.mxu0
        %1509 = vmatprep.mubr.f32.mxu0 %v1076
        %1510 = vmatmul.mubr.f32.gmra.mxu0 %v1075
        %v1511 = vpop.f32.mrf.mxu0
        %v1512 = vadd.f32 0.0, %v1511
        %v1513 = vpop.f32.mrf.mxu0
        %1514 = vmatprep.mubr.f32.mxu0 %v1080
        %1515 = vmatmul.mubr.f32.gmra.mxu0 %v1079
        %v1516 = vpop.f32.mrf.mxu0
        %v1517 = vadd.f32 0.0, %v1516
        %v1518 = vpop.f32.mrf.mxu0
        %1519 = vmatprep.mubr.f32.mxu0 %v1084
        %1520 = vmatmul.mubr.f32.gmra.mxu0 %v1083
        %v1521 = vpop.f32.mrf.mxu0
        %v1522 = vadd.f32 0.0, %v1521
        %v1523 = vpop.f32.mrf.mxu0
        %1524 = vmatprep.mubr.f32.mxu0 %v1088
        %1525 = vmatmul.mubr.f32.gmra.mxu0 %v1087
        %v1526 = vpop.f32.mrf.mxu0
        %v1527 = vadd.f32 0.0, %v1526
        %v1528 = vpop.f32.mrf.mxu0
        %1529 = vmatprep.mubr.f32.mxu0 %v1092
        %1530 = vmatmul.mubr.f32.gmra.mxu0 %v1091
        %v1531 = vpop.f32.mrf.mxu0
        %v1532 = vadd.f32 0.0, %v1531
        %v1533 = vpop.f32.mrf.mxu0
        %1534 = vmatprep.mubr.f32.mxu0 %v1096
        %1535 = vmatmul.mubr.f32.gmra.mxu0 %v1095
        %v1536 = vpop.f32.mrf.mxu0
        %v1537 = vadd.f32 0.0, %v1536
        %v1538 = vpop.f32.mrf.mxu0
        %1539 = vmatprep.mubr.f32.mxu0 %v1100
        %1540 = vmatmul.mubr.f32.gmra.mxu0 %v1099
        %v1541 = vpop.f32.mrf.mxu0
        %v1542 = vadd.f32 0.0, %v1541
        %v1543 = vpop.f32.mrf.mxu0
        %1544 = vmatprep.mubr.f32.mxu0 %v1104
        %1545 = vmatmul.mubr.f32.gmra.mxu0 %v1103
        %v1546 = vpop.f32.mrf.mxu0
        %v1547 = vadd.f32 0.0, %v1546
        %v1548 = vpop.f32.mrf.mxu0
        %1549 = vmatprep.mubr.f32.mxu0 %v1108
        %1550 = vmatmul.mubr.f32.gmra.mxu0 %v1107
        %v1551 = vpop.f32.mrf.mxu0
        %v1552 = vadd.f32 0.0, %v1551
        %v1553 = vpop.f32.mrf.mxu0
        %1554 = vmatprep.mubr.f32.mxu0 %v1112
        %1555 = vmatmul.mubr.f32.gmra.mxu0 %v1111
        %v1556 = vpop.f32.mrf.mxu0
        %v1557 = vadd.f32 0.0, %v1556
        %v1558 = vpop.f32.mrf.mxu0
        %1559 = vmatprep.mubr.f32.mxu0 %v1116
        %1560 = vmatmul.mubr.f32.gmra.mxu0 %v1115
        %v1561 = vpop.f32.mrf.mxu0
        %v1562 = vadd.f32 0.0, %v1561
        %v1563 = vpop.f32.mrf.mxu0
        %1564 = vmatprep.mubr.f32.mxu0 %v1120
        %1565 = vmatmul.mubr.f32.gmra.mxu0 %v1119
        %v1566 = vpop.f32.mrf.mxu0
        %v1567 = vadd.f32 0.0, %v1566
        %v1568 = vpop.f32.mrf.mxu0
        %1569 = vmatprep.mubr.f32.mxu0 %v1124
        %1570 = vmatmul.mubr.f32.gmra.mxu0 %v1123
        %v1571 = vpop.f32.mrf.mxu0
        %v1572 = vadd.f32 0.0, %v1571
        %v1573 = vpop.f32.mrf.mxu0
        %1574 = vmatprep.mubr.f32.mxu0 %v1128
        %1575 = vmatmul.mubr.f32.gmra.mxu0 %v1127
        %v1576 = vpop.f32.mrf.mxu0
        %v1577 = vadd.f32 0.0, %v1576
        %v1578 = vpop.f32.mrf.mxu0
        %1579 = vdwg.mxu0
        %1580 = vmatprep.subr.mxu0 0.0
        %1581 = vmatpush1.msra.mxu0 %v1178
        %1582 = vmatprep.subr.mxu0 0.0
        %1583 = vmatpush1.msra.mxu0 %v1177
        %1584 = vmatprep.subr.mxu0 0.0
        %1585 = vmatpush1.msra.mxu0 %v1176
        %1586 = vmatprep.subr.mxu0 0.0
        %1587 = vmatpush1.msra.mxu0 %v1175
        %1588 = vmatprep.subr.mxu0 0.0
        %1589 = vmatpush1.msra.mxu0 %v1174
        %1590 = vmatprep.subr.mxu0 0.0
        %1591 = vmatpush1.msra.mxu0 %v1173
        %1592 = vmatprep.subr.mxu0 0.0
        %1593 = vmatpush1.msra.mxu0 %v1172
        %1594 = vmatprep.subr.mxu0 0.0
        %1595 = vmatpush1.msra.mxu0 %v1171
        %1596 = vmatprep.subr.mxu0 0.0
        %1597 = vmatpush1.msra.mxu0 %v1170
        %1598 = vmatprep.subr.mxu0 0.0
        %1599 = vmatpush1.msra.mxu0 %v1169
        %1600 = vmatprep.subr.mxu0 0.0
        %1601 = vmatpush1.msra.mxu0 %v1168
        %1602 = vmatprep.subr.mxu0 0.0
        %1603 = vmatpush1.msra.mxu0 %v1167
        %1604 = vmatprep.subr.mxu0 0.0
        %1605 = vmatpush1.msra.mxu0 %v1166
        %1606 = vmatprep.subr.mxu0 0.0
        %1607 = vmatpush1.msra.mxu0 %v1165
        %1608 = vmatprep.subr.mxu0 0.0
        %1609 = vmatpush1.msra.mxu0 %v1164
        %1610 = vmatprep.subr.mxu0 0.0
        %1611 = vmatpush1.msra.mxu0 %v1163
        %1612 = vmatprep.subr.mxu0 0.0
        %1613 = vmatpush2.msra.mxu0 %v1194
        %1614 = vmatprep.subr.mxu0 0.0
        %1615 = vmatpush2.msra.mxu0 %v1193
        %1616 = vmatprep.subr.mxu0 0.0
        %1617 = vmatpush2.msra.mxu0 %v1192
        %1618 = vmatprep.subr.mxu0 0.0
        %1619 = vmatpush2.msra.mxu0 %v1191
        %1620 = vmatprep.subr.mxu0 0.0
        %1621 = vmatpush2.msra.mxu0 %v1190
        %1622 = vmatprep.subr.mxu0 0.0
        %1623 = vmatpush2.msra.mxu0 %v1189
        %1624 = vmatprep.subr.mxu0 0.0
        %1625 = vmatpush2.msra.mxu0 %v1188
        %1626 = vmatprep.subr.mxu0 0.0
        %1627 = vmatpush2.msra.mxu0 %v1187
        %1628 = vmatprep.subr.mxu0 0.0
        %1629 = vmatpush2.msra.mxu0 %v1186
        %1630 = vmatprep.subr.mxu0 0.0
        %1631 = vmatpush2.msra.mxu0 %v1185
        %1632 = vmatprep.subr.mxu0 0.0
        %1633 = vmatpush2.msra.mxu0 %v1184
        %1634 = vmatprep.subr.mxu0 0.0
        %1635 = vmatpush2.msra.mxu0 %v1183
        %1636 = vmatprep.subr.mxu0 0.0
        %1637 = vmatpush2.msra.mxu0 %v1182
        %1638 = vmatprep.subr.mxu0 0.0
        %1639 = vmatpush2.msra.mxu0 %v1181
        %1640 = vmatprep.subr.mxu0 0.0
        %1641 = vmatpush2.msra.mxu0 %v1180
        %1642 = vmatprep.subr.mxu0 0.0
        %1643 = vmatpush2.msra.mxu0 %v1179
        %1644 = vmatprep.mubr.f32.mxu0 %v878
        %1645 = vmatmul.mubr.f32.gmra.mxu0 %v877
        %v1646 = vpop.f32.mrf.mxu0
        %v1647 = vadd.f32 %v1262, %v1646
        %v1648 = vpop.f32.mrf.mxu0
        %1649 = vmatprep.mubr.f32.mxu0 %v882
        %1650 = vmatmul.mubr.f32.gmra.mxu0 %v881
        %v1651 = vpop.f32.mrf.mxu0
        %v1652 = vadd.f32 %v1267, %v1651
        %v1653 = vpop.f32.mrf.mxu0
        %1654 = vmatprep.mubr.f32.mxu0 %v886
        %1655 = vmatmul.mubr.f32.gmra.mxu0 %v885
        %v1656 = vpop.f32.mrf.mxu0
        %v1657 = vadd.f32 %v1272, %v1656
        %v1658 = vpop.f32.mrf.mxu0
        %1659 = vmatprep.mubr.f32.mxu0 %v890
        %1660 = vmatmul.mubr.f32.gmra.mxu0 %v889
        %v1661 = vpop.f32.mrf.mxu0
        %v1662 = vadd.f32 %v1277, %v1661
        %v1663 = vpop.f32.mrf.mxu0
        %1664 = vmatprep.mubr.f32.mxu0 %v894
        %1665 = vmatmul.mubr.f32.gmra.mxu0 %v893
        %v1666 = vpop.f32.mrf.mxu0
        %v1667 = vadd.f32 %v1282, %v1666
        %v1668 = vpop.f32.mrf.mxu0
        %1669 = vmatprep.mubr.f32.mxu0 %v898
        %1670 = vmatmul.mubr.f32.gmra.mxu0 %v897
        %v1671 = vpop.f32.mrf.mxu0
        %v1672 = vadd.f32 %v1287, %v1671
        %v1673 = vpop.f32.mrf.mxu0
        %1674 = vmatprep.mubr.f32.mxu0 %v902
        %1675 = vmatmul.mubr.f32.gmra.mxu0 %v901
        %v1676 = vpop.f32.mrf.mxu0
        %v1677 = vadd.f32 %v1292, %v1676
        %v1678 = vpop.f32.mrf.mxu0
        %1679 = vmatprep.mubr.f32.mxu0 %v906
        %1680 = vmatmul.mubr.f32.gmra.mxu0 %v905
        %v1681 = vpop.f32.mrf.mxu0
        %v1682 = vadd.f32 %v1297, %v1681
        %v1683 = vpop.f32.mrf.mxu0
        %1684 = vmatprep.mubr.f32.mxu0 %v910
        %1685 = vmatmul.mubr.f32.gmra.mxu0 %v909
        %v1686 = vpop.f32.mrf.mxu0
        %v1687 = vadd.f32 %v1302, %v1686
        %v1688 = vpop.f32.mrf.mxu0
        %1689 = vmatprep.mubr.f32.mxu0 %v914
        %1690 = vmatmul.mubr.f32.gmra.mxu0 %v913
        %v1691 = vpop.f32.mrf.mxu0
        %v1692 = vadd.f32 %v1307, %v1691
        %v1693 = vpop.f32.mrf.mxu0
        %1694 = vmatprep.mubr.f32.mxu0 %v918
        %1695 = vmatmul.mubr.f32.gmra.mxu0 %v917
        %v1696 = vpop.f32.mrf.mxu0
        %v1697 = vadd.f32 %v1312, %v1696
        %v1698 = vpop.f32.mrf.mxu0
        %1699 = vmatprep.mubr.f32.mxu0 %v922
        %1700 = vmatmul.mubr.f32.gmra.mxu0 %v921
        %v1701 = vpop.f32.mrf.mxu0
        %v1702 = vadd.f32 %v1317, %v1701
        %v1703 = vpop.f32.mrf.mxu0
        %1704 = vmatprep.mubr.f32.mxu0 %v926
        %1705 = vmatmul.mubr.f32.gmra.mxu0 %v925
        %v1706 = vpop.f32.mrf.mxu0
        %v1707 = vadd.f32 %v1322, %v1706
        %v1708 = vpop.f32.mrf.mxu0
        %1709 = vmatprep.mubr.f32.mxu0 %v930
        %1710 = vmatmul.mubr.f32.gmra.mxu0 %v929
        %v1711 = vpop.f32.mrf.mxu0
        %v1712 = vadd.f32 %v1327, %v1711
        %v1713 = vpop.f32.mrf.mxu0
        %1714 = vmatprep.mubr.f32.mxu0 %v934
        %1715 = vmatmul.mubr.f32.gmra.mxu0 %v933
        %v1716 = vpop.f32.mrf.mxu0
        %v1717 = vadd.f32 %v1332, %v1716
        %v1718 = vpop.f32.mrf.mxu0
        %1719 = vmatprep.mubr.f32.mxu0 %v938
        %1720 = vmatmul.mubr.f32.gmra.mxu0 %v937
        %v1721 = vpop.f32.mrf.mxu0
        %v1722 = vadd.f32 %v1337, %v1721
        %v1723 = vpop.f32.mrf.mxu0
        %1724 = vmatprep.mubr.f32.mxu0 %v942
        %1725 = vmatmul.mubr.f32.gmra.mxu0 %v941
        %v1726 = vpop.f32.mrf.mxu0
        %v1727 = vadd.f32 %v1342, %v1726
        %v1728 = vpop.f32.mrf.mxu0
        %1729 = vmatprep.mubr.f32.mxu0 %v946
        %1730 = vmatmul.mubr.f32.gmra.mxu0 %v945
        %v1731 = vpop.f32.mrf.mxu0
        %v1732 = vadd.f32 %v1347, %v1731
        %v1733 = vpop.f32.mrf.mxu0
        %1734 = vmatprep.mubr.f32.mxu0 %v950
        %1735 = vmatmul.mubr.f32.gmra.mxu0 %v949
        %v1736 = vpop.f32.mrf.mxu0
        %v1737 = vadd.f32 %v1352, %v1736
        %v1738 = vpop.f32.mrf.mxu0
        %1739 = vmatprep.mubr.f32.mxu0 %v954
        %1740 = vmatmul.mubr.f32.gmra.mxu0 %v953
        %v1741 = vpop.f32.mrf.mxu0
        %v1742 = vadd.f32 %v1357, %v1741
        %v1743 = vpop.f32.mrf.mxu0
        %1744 = vmatprep.mubr.f32.mxu0 %v958
        %1745 = vmatmul.mubr.f32.gmra.mxu0 %v957
        %v1746 = vpop.f32.mrf.mxu0
        %v1747 = vadd.f32 %v1362, %v1746
        %v1748 = vpop.f32.mrf.mxu0
        %1749 = vmatprep.mubr.f32.mxu0 %v962
        %1750 = vmatmul.mubr.f32.gmra.mxu0 %v961
        %v1751 = vpop.f32.mrf.mxu0
        %v1752 = vadd.f32 %v1367, %v1751
        %v1753 = vpop.f32.mrf.mxu0
        %1754 = vmatprep.mubr.f32.mxu0 %v966
        %1755 = vmatmul.mubr.f32.gmra.mxu0 %v965
        %v1756 = vpop.f32.mrf.mxu0
        %v1757 = vadd.f32 %v1372, %v1756
        %v1758 = vpop.f32.mrf.mxu0
        %1759 = vmatprep.mubr.f32.mxu0 %v970
        %1760 = vmatmul.mubr.f32.gmra.mxu0 %v969
        %v1761 = vpop.f32.mrf.mxu0
        %v1762 = vadd.f32 %v1377, %v1761
        %v1763 = vpop.f32.mrf.mxu0
        %1764 = vmatprep.mubr.f32.mxu0 %v974
        %1765 = vmatmul.mubr.f32.gmra.mxu0 %v973
        %v1766 = vpop.f32.mrf.mxu0
        %v1767 = vadd.f32 %v1382, %v1766
        %v1768 = vpop.f32.mrf.mxu0
        %1769 = vmatprep.mubr.f32.mxu0 %v978
        %1770 = vmatmul.mubr.f32.gmra.mxu0 %v977
        %v1771 = vpop.f32.mrf.mxu0
        %v1772 = vadd.f32 %v1387, %v1771
        %v1773 = vpop.f32.mrf.mxu0
        %1774 = vmatprep.mubr.f32.mxu0 %v982
        %1775 = vmatmul.mubr.f32.gmra.mxu0 %v981
        %v1776 = vpop.f32.mrf.mxu0
        %v1777 = vadd.f32 %v1392, %v1776
        %v1778 = vpop.f32.mrf.mxu0
        %1779 = vmatprep.mubr.f32.mxu0 %v986
        %1780 = vmatmul.mubr.f32.gmra.mxu0 %v985
        %v1781 = vpop.f32.mrf.mxu0
        %v1782 = vadd.f32 %v1397, %v1781
        %v1783 = vpop.f32.mrf.mxu0
        %1784 = vmatprep.mubr.f32.mxu0 %v990
        %1785 = vmatmul.mubr.f32.gmra.mxu0 %v989
        %v1786 = vpop.f32.mrf.mxu0
        %v1787 = vadd.f32 %v1402, %v1786
        %v1788 = vpop.f32.mrf.mxu0
        %1789 = vmatprep.mubr.f32.mxu0 %v994
        %1790 = vmatmul.mubr.f32.gmra.mxu0 %v993
        %v1791 = vpop.f32.mrf.mxu0
        %v1792 = vadd.f32 %v1407, %v1791
        %v1793 = vpop.f32.mrf.mxu0
        %1794 = vmatprep.mubr.f32.mxu0 %v998
        %1795 = vmatmul.mubr.f32.gmra.mxu0 %v997
        %v1796 = vpop.f32.mrf.mxu0
        %v1797 = vadd.f32 %v1412, %v1796
        %v1798 = vpop.f32.mrf.mxu0
        %1799 = vmatprep.mubr.f32.mxu0 %v1002
        %1800 = vmatmul.mubr.f32.gmra.mxu0 %v1001
        %v1801 = vpop.f32.mrf.mxu0
        %v1802 = vadd.f32 %v1417, %v1801
        %v1803 = vpop.f32.mrf.mxu0
        %1804 = vmatprep.mubr.f32.mxu0 %v1006
        %1805 = vmatmul.mubr.f32.gmra.mxu0 %v1005
        %v1806 = vpop.f32.mrf.mxu0
        %v1807 = vadd.f32 %v1422, %v1806
        %v1808 = vpop.f32.mrf.mxu0
        %1809 = vmatprep.mubr.f32.mxu0 %v1010
        %1810 = vmatmul.mubr.f32.gmra.mxu0 %v1009
        %v1811 = vpop.f32.mrf.mxu0
        %v1812 = vadd.f32 %v1427, %v1811
        %v1813 = vpop.f32.mrf.mxu0
        %1814 = vmatprep.mubr.f32.mxu0 %v1014
        %1815 = vmatmul.mubr.f32.gmra.mxu0 %v1013
        %v1816 = vpop.f32.mrf.mxu0
        %v1817 = vadd.f32 %v1432, %v1816
        %v1818 = vpop.f32.mrf.mxu0
        %1819 = vmatprep.mubr.f32.mxu0 %v1018
        %1820 = vmatmul.mubr.f32.gmra.mxu0 %v1017
        %v1821 = vpop.f32.mrf.mxu0
        %v1822 = vadd.f32 %v1437, %v1821
        %v1823 = vpop.f32.mrf.mxu0
        %1824 = vmatprep.mubr.f32.mxu0 %v1022
        %1825 = vmatmul.mubr.f32.gmra.mxu0 %v1021
        %v1826 = vpop.f32.mrf.mxu0
        %v1827 = vadd.f32 %v1442, %v1826
        %v1828 = vpop.f32.mrf.mxu0
        %1829 = vmatprep.mubr.f32.mxu0 %v1026
        %1830 = vmatmul.mubr.f32.gmra.mxu0 %v1025
        %v1831 = vpop.f32.mrf.mxu0
        %v1832 = vadd.f32 %v1447, %v1831
        %v1833 = vpop.f32.mrf.mxu0
        %1834 = vmatprep.mubr.f32.mxu0 %v1030
        %1835 = vmatmul.mubr.f32.gmra.mxu0 %v1029
        %v1836 = vpop.f32.mrf.mxu0
        %v1837 = vadd.f32 %v1452, %v1836
        %v1838 = vpop.f32.mrf.mxu0
        %1839 = vmatprep.mubr.f32.mxu0 %v1034
        %1840 = vmatmul.mubr.f32.gmra.mxu0 %v1033
        %v1841 = vpop.f32.mrf.mxu0
        %v1842 = vadd.f32 %v1457, %v1841
        %v1843 = vpop.f32.mrf.mxu0
        %1844 = vmatprep.mubr.f32.mxu0 %v1038
        %1845 = vmatmul.mubr.f32.gmra.mxu0 %v1037
        %v1846 = vpop.f32.mrf.mxu0
        %v1847 = vadd.f32 %v1462, %v1846
        %v1848 = vpop.f32.mrf.mxu0
        %1849 = vmatprep.mubr.f32.mxu0 %v1042
        %1850 = vmatmul.mubr.f32.gmra.mxu0 %v1041
        %v1851 = vpop.f32.mrf.mxu0
        %v1852 = vadd.f32 %v1467, %v1851
        %v1853 = vpop.f32.mrf.mxu0
        %1854 = vmatprep.mubr.f32.mxu0 %v1046
        %1855 = vmatmul.mubr.f32.gmra.mxu0 %v1045
        %v1856 = vpop.f32.mrf.mxu0
        %v1857 = vadd.f32 %v1472, %v1856
        %v1858 = vpop.f32.mrf.mxu0
        %1859 = vmatprep.mubr.f32.mxu0 %v1050
        %1860 = vmatmul.mubr.f32.gmra.mxu0 %v1049
        %v1861 = vpop.f32.mrf.mxu0
        %v1862 = vadd.f32 %v1477, %v1861
        %v1863 = vpop.f32.mrf.mxu0
        %1864 = vmatprep.mubr.f32.mxu0 %v1054
        %1865 = vmatmul.mubr.f32.gmra.mxu0 %v1053
        %v1866 = vpop.f32.mrf.mxu0
        %v1867 = vadd.f32 %v1482, %v1866
        %v1868 = vpop.f32.mrf.mxu0
        %1869 = vmatprep.mubr.f32.mxu0 %v1058
        %1870 = vmatmul.mubr.f32.gmra.mxu0 %v1057
        %v1871 = vpop.f32.mrf.mxu0
        %v1872 = vadd.f32 %v1487, %v1871
        %v1873 = vpop.f32.mrf.mxu0
        %1874 = vmatprep.mubr.f32.mxu0 %v1062
        %1875 = vmatmul.mubr.f32.gmra.mxu0 %v1061
        %v1876 = vpop.f32.mrf.mxu0
        %v1877 = vadd.f32 %v1492, %v1876
        %v1878 = vpop.f32.mrf.mxu0
        %1879 = vmatprep.mubr.f32.mxu0 %v1066
        %1880 = vmatmul.mubr.f32.gmra.mxu0 %v1065
        %v1881 = vpop.f32.mrf.mxu0
        %v1882 = vadd.f32 %v1497, %v1881
        %v1883 = vpop.f32.mrf.mxu0
        %1884 = vmatprep.mubr.f32.mxu0 %v1070
        %1885 = vmatmul.mubr.f32.gmra.mxu0 %v1069
        %v1886 = vpop.f32.mrf.mxu0
        %v1887 = vadd.f32 %v1502, %v1886
        %v1888 = vpop.f32.mrf.mxu0
        %1889 = vmatprep.mubr.f32.mxu0 %v1074
        %1890 = vmatmul.mubr.f32.gmra.mxu0 %v1073
        %v1891 = vpop.f32.mrf.mxu0
        %v1892 = vadd.f32 %v1507, %v1891
        %v1893 = vpop.f32.mrf.mxu0
        %1894 = vmatprep.mubr.f32.mxu0 %v1078
        %1895 = vmatmul.mubr.f32.gmra.mxu0 %v1077
        %v1896 = vpop.f32.mrf.mxu0
        %v1897 = vadd.f32 %v1512, %v1896
        %v1898 = vpop.f32.mrf.mxu0
        %1899 = vmatprep.mubr.f32.mxu0 %v1082
        %1900 = vmatmul.mubr.f32.gmra.mxu0 %v1081
        %v1901 = vpop.f32.mrf.mxu0
        %v1902 = vadd.f32 %v1517, %v1901
        %v1903 = vpop.f32.mrf.mxu0
        %1904 = vmatprep.mubr.f32.mxu0 %v1086
        %1905 = vmatmul.mubr.f32.gmra.mxu0 %v1085
        %v1906 = vpop.f32.mrf.mxu0
        %v1907 = vadd.f32 %v1522, %v1906
        %v1908 = vpop.f32.mrf.mxu0
        %1909 = vmatprep.mubr.f32.mxu0 %v1090
        %1910 = vmatmul.mubr.f32.gmra.mxu0 %v1089
        %v1911 = vpop.f32.mrf.mxu0
        %v1912 = vadd.f32 %v1527, %v1911
        %v1913 = vpop.f32.mrf.mxu0
        %1914 = vmatprep.mubr.f32.mxu0 %v1094
        %1915 = vmatmul.mubr.f32.gmra.mxu0 %v1093
        %v1916 = vpop.f32.mrf.mxu0
        %v1917 = vadd.f32 %v1532, %v1916
        %v1918 = vpop.f32.mrf.mxu0
        %1919 = vmatprep.mubr.f32.mxu0 %v1098
        %1920 = vmatmul.mubr.f32.gmra.mxu0 %v1097
        %v1921 = vpop.f32.mrf.mxu0
        %v1922 = vadd.f32 %v1537, %v1921
        %v1923 = vpop.f32.mrf.mxu0
        %1924 = vmatprep.mubr.f32.mxu0 %v1102
        %1925 = vmatmul.mubr.f32.gmra.mxu0 %v1101
        %v1926 = vpop.f32.mrf.mxu0
        %v1927 = vadd.f32 %v1542, %v1926
        %v1928 = vpop.f32.mrf.mxu0
        %1929 = vmatprep.mubr.f32.mxu0 %v1106
        %1930 = vmatmul.mubr.f32.gmra.mxu0 %v1105
        %v1931 = vpop.f32.mrf.mxu0
        %v1932 = vadd.f32 %v1547, %v1931
        %v1933 = vpop.f32.mrf.mxu0
        %1934 = vmatprep.mubr.f32.mxu0 %v1110
        %1935 = vmatmul.mubr.f32.gmra.mxu0 %v1109
        %v1936 = vpop.f32.mrf.mxu0
        %v1937 = vadd.f32 %v1552, %v1936
        %v1938 = vpop.f32.mrf.mxu0
        %1939 = vmatprep.mubr.f32.mxu0 %v1114
        %1940 = vmatmul.mubr.f32.gmra.mxu0 %v1113
        %v1941 = vpop.f32.mrf.mxu0
        %v1942 = vadd.f32 %v1557, %v1941
        %v1943 = vpop.f32.mrf.mxu0
        %1944 = vmatprep.mubr.f32.mxu0 %v1118
        %1945 = vmatmul.mubr.f32.gmra.mxu0 %v1117
        %v1946 = vpop.f32.mrf.mxu0
        %v1947 = vadd.f32 %v1562, %v1946
        %v1948 = vpop.f32.mrf.mxu0
        %1949 = vmatprep.mubr.f32.mxu0 %v1122
        %1950 = vmatmul.mubr.f32.gmra.mxu0 %v1121
        %v1951 = vpop.f32.mrf.mxu0
        %v1952 = vadd.f32 %v1567, %v1951
        %v1953 = vpop.f32.mrf.mxu0
        %1954 = vmatprep.mubr.f32.mxu0 %v1126
        %1955 = vmatmul.mubr.f32.gmra.mxu0 %v1125
        %v1956 = vpop.f32.mrf.mxu0
        %v1957 = vadd.f32 %v1572, %v1956
        %v1958 = vpop.f32.mrf.mxu0
        %1959 = vmatprep.mubr.f32.mxu0 %v1130
        %1960 = vmatmul.mubr.f32.gmra.mxu0 %v1129
        %v1961 = vpop.f32.mrf.mxu0
        %v1962 = vadd.f32 %v1577, %v1961
        %v1963 = vpop.f32.mrf.mxu0
        %1964 = vdwg.mxu0
        %v1965 = vadd.f32 %v811, %v1647
        %v1966 = vadd.f32 %v812, %v1652
        %v1967 = vadd.f32 %v813, %v1657
        %v1968 = vadd.f32 %v814, %v1662
        %v1969 = vadd.f32 %v815, %v1667
        %v1970 = vadd.f32 %v816, %v1672
        %v1971 = vadd.f32 %v817, %v1677
        %v1972 = vadd.f32 %v818, %v1682
        %v1973 = vadd.f32 %v819, %v1687
        %v1974 = vadd.f32 %v820, %v1692
        %v1975 = vadd.f32 %v821, %v1697
        %v1976 = vadd.f32 %v822, %v1702
        %v1977 = vadd.f32 %v823, %v1707
        %v1978 = vadd.f32 %v824, %v1712
        %v1979 = vadd.f32 %v825, %v1717
        %v1980 = vadd.f32 %v826, %v1722
        %v1981 = vadd.f32 %v827, %v1727
        %v1982 = vadd.f32 %v828, %v1732
        %v1983 = vadd.f32 %v829, %v1737
        %v1984 = vadd.f32 %v830, %v1742
        %v1985 = vadd.f32 %v831, %v1747
        %v1986 = vadd.f32 %v832, %v1752
        %v1987 = vadd.f32 %v833, %v1757
        %v1988 = vadd.f32 %v834, %v1762
        %v1989 = vadd.f32 %v835, %v1767
        %v1990 = vadd.f32 %v836, %v1772
        %v1991 = vadd.f32 %v837, %v1777
        %v1992 = vadd.f32 %v838, %v1782
        %v1993 = vadd.f32 %v839, %v1787
        %v1994 = vadd.f32 %v840, %v1792
        %v1995 = vadd.f32 %v841, %v1797
        %v1996 = vadd.f32 %v842, %v1802
        %v1997 = vadd.f32 %v843, %v1807
        %v1998 = vadd.f32 %v844, %v1812
        %v1999 = vadd.f32 %v845, %v1817
        %v2000 = vadd.f32 %v846, %v1822
        %v2001 = vadd.f32 %v847, %v1827
        %v2002 = vadd.f32 %v848, %v1832
        %v2003 = vadd.f32 %v849, %v1837
        %v2004 = vadd.f32 %v850, %v1842
        %v2005 = vadd.f32 %v851, %v1847
        %v2006 = vadd.f32 %v852, %v1852
        %v2007 = vadd.f32 %v853, %v1857
        %v2008 = vadd.f32 %v854, %v1862
        %v2009 = vadd.f32 %v855, %v1867
        %v2010 = vadd.f32 %v856, %v1872
        %v2011 = vadd.f32 %v857, %v1877
        %v2012 = vadd.f32 %v858, %v1882
        %v2013 = vadd.f32 %v859, %v1887
        %v2014 = vadd.f32 %v860, %v1892
        %v2015 = vadd.f32 %v861, %v1897
        %v2016 = vadd.f32 %v862, %v1902
        %v2017 = vadd.f32 %v863, %v1907
        %v2018 = vadd.f32 %v864, %v1912
        %v2019 = vadd.f32 %v865, %v1917
        %v2020 = vadd.f32 %v866, %v1922
        %v2021 = vadd.f32 %v867, %v1927
        %v2022 = vadd.f32 %v868, %v1932
        %v2023 = vadd.f32 %v869, %v1937
        %v2024 = vadd.f32 %v870, %v1942
        %v2025 = vadd.f32 %v871, %v1947
        %v2026 = vadd.f32 %v872, %v1952
        %v2027 = vadd.f32 %v873, %v1957
        %v2028 = vadd.f32 %v874, %v1962
        %2029 = vst [vmem:[#allocation2] sm:$0xff] %v1965
        %2030 = vst [vmem:[#allocation2 + $0x8] sm:$0xff] %v1966
        %2031 = vst [vmem:[#allocation2 + $0x10] sm:$0xff] %v1967
        %2032 = vst [vmem:[#allocation2 + $0x18] sm:$0xff] %v1968
        %2033 = vst [vmem:[#allocation2 + $0x20] sm:$0xff] %v1969
        %2034 = vst [vmem:[#allocation2 + $0x28] sm:$0xff] %v1970
        %2035 = vst [vmem:[#allocation2 + $0x30] sm:$0xff] %v1971
        %2036 = vst [vmem:[#allocation2 + $0x38] sm:$0xff] %v1972
        %2037 = vst [vmem:[#allocation2 + $0x40] sm:$0xff] %v1973
        %2038 = vst [vmem:[#allocation2 + $0x48] sm:$0xff] %v1974
        %2039 = vst [vmem:[#allocation2 + $0x50] sm:$0xff] %v1975
        %2040 = vst [vmem:[#allocation2 + $0x58] sm:$0xff] %v1976
        %2041 = vst [vmem:[#allocation2 + $0x60] sm:$0xff] %v1977
        %2042 = vst [vmem:[#allocation2 + $0x68] sm:$0xff] %v1978
        %2043 = vst [vmem:[#allocation2 + $0x70] sm:$0xff] %v1979
        %2044 = vst [vmem:[#allocation2 + $0x78] sm:$0xff] %v1980
        %2045 = vst [vmem:[#allocation2 + $0x80] sm:$0xff] %v1981
        %2046 = vst [vmem:[#allocation2 + $0x88] sm:$0xff] %v1982
        %2047 = vst [vmem:[#allocation2 + $0x90] sm:$0xff] %v1983
        %2048 = vst [vmem:[#allocation2 + $0x98] sm:$0xff] %v1984
        %2049 = vst [vmem:[#allocation2 + $0xa0] sm:$0xff] %v1985
        %2050 = vst [vmem:[#allocation2 + $0xa8] sm:$0xff] %v1986
        %2051 = vst [vmem:[#allocation2 + $0xb0] sm:$0xff] %v1987
        %2052 = vst [vmem:[#allocation2 + $0xb8] sm:$0xff] %v1988
        %2053 = vst [vmem:[#allocation2 + $0xc0] sm:$0xff] %v1989
        %2054 = vst [vmem:[#allocation2 + $0xc8] sm:$0xff] %v1990
        %2055 = vst [vmem:[#allocation2 + $0xd0] sm:$0xff] %v1991
        %2056 = vst [vmem:[#allocation2 + $0xd8] sm:$0xff] %v1992
        %2057 = vst [vmem:[#allocation2 + $0xe0] sm:$0xff] %v1993
        %2058 = vst [vmem:[#allocation2 + $0xe8] sm:$0xff] %v1994
        %2059 = vst [vmem:[#allocation2 + $0xf0] sm:$0xff] %v1995
        %2060 = vst [vmem:[#allocation2 + $0xf8] sm:$0xff] %v1996
        %2061 = vst [vmem:[#allocation2 + $0x100] sm:$0xff] %v1997
        %2062 = vst [vmem:[#allocation2 + $0x108] sm:$0xff] %v1998
        %2063 = vst [vmem:[#allocation2 + $0x110] sm:$0xff] %v1999
        %2064 = vst [vmem:[#allocation2 + $0x118] sm:$0xff] %v2000
        %2065 = vst [vmem:[#allocation2 + $0x120] sm:$0xff] %v2001
        %2066 = vst [vmem:[#allocation2 + $0x128] sm:$0xff] %v2002
        %2067 = vst [vmem:[#allocation2 + $0x130] sm:$0xff] %v2003
        %2068 = vst [vmem:[#allocation2 + $0x138] sm:$0xff] %v2004
        %2069 = vst [vmem:[#allocation2 + $0x140] sm:$0xff] %v2005
        %2070 = vst [vmem:[#allocation2 + $0x148] sm:$0xff] %v2006
        %2071 = vst [vmem:[#allocation2 + $0x150] sm:$0xff] %v2007
        %2072 = vst [vmem:[#allocation2 + $0x158] sm:$0xff] %v2008
        %2073 = vst [vmem:[#allocation2 + $0x160] sm:$0xff] %v2009
        %2074 = vst [vmem:[#allocation2 + $0x168] sm:$0xff] %v2010
        %2075 = vst [vmem:[#allocation2 + $0x170] sm:$0xff] %v2011
        %2076 = vst [vmem:[#allocation2 + $0x178] sm:$0xff] %v2012
        %2077 = vst [vmem:[#allocation2 + $0x180] sm:$0xff] %v2013
        %2078 = vst [vmem:[#allocation2 + $0x188] sm:$0xff] %v2014
        %2079 = vst [vmem:[#allocation2 + $0x190] sm:$0xff] %v2015
        %2080 = vst [vmem:[#allocation2 + $0x198] sm:$0xff] %v2016
        %2081 = vst [vmem:[#allocation2 + $0x1a0] sm:$0xff] %v2017
        %2082 = vst [vmem:[#allocation2 + $0x1a8] sm:$0xff] %v2018
        %2083 = vst [vmem:[#allocation2 + $0x1b0] sm:$0xff] %v2019
        %2084 = vst [vmem:[#allocation2 + $0x1b8] sm:$0xff] %v2020
        %2085 = vst [vmem:[#allocation2 + $0x1c0] sm:$0xff] %v2021
        %2086 = vst [vmem:[#allocation2 + $0x1c8] sm:$0xff] %v2022
        %2087 = vst [vmem:[#allocation2 + $0x1d0] sm:$0xff] %v2023
        %2088 = vst [vmem:[#allocation2 + $0x1d8] sm:$0xff] %v2024
        %2089 = vst [vmem:[#allocation2 + $0x1e0] sm:$0xff] %v2025
        %2090 = vst [vmem:[#allocation2 + $0x1e8] sm:$0xff] %v2026
        %2091 = vst [vmem:[#allocation2 + $0x1f0] sm:$0xff] %v2027
        %2092 = vst [vmem:[#allocation2 + $0x1f8] sm:$0xff] %v2028
        %p2093 = scmp.eq.s32.totalorder %s19, 1
        // Predicated region
        $region60: #{gcn_forward.3} parent=50 // pred_check
          %p2094 = pneg %p2093
        $region61: #{gcn_forward.3} parent=50 // pred_check_branch
          %2096 = sbr.rel (%p2094) target = $region63
        $region62: #{gcn_forward.3} parent=50 // pred_region
          %v2097 = vld [vmem:[#allocation2] sm:$0xff]
          %v2098 = vld [vmem:[#allocation2 + $0x8] sm:$0xff]
          %v2099 = vld [vmem:[#allocation2 + $0x10] sm:$0xff]
          %v2100 = vld [vmem:[#allocation2 + $0x18] sm:$0xff]
          %v2101 = vld [vmem:[#allocation2 + $0x20] sm:$0xff]
          %v2102 = vld [vmem:[#allocation2 + $0x28] sm:$0xff]
          %v2103 = vld [vmem:[#allocation2 + $0x30] sm:$0xff]
          %v2104 = vld [vmem:[#allocation2 + $0x38] sm:$0xff]
          %v2105 = vld [vmem:[#allocation2 + $0x40] sm:$0xff]
          %v2106 = vld [vmem:[#allocation2 + $0x48] sm:$0xff]
          %v2107 = vld [vmem:[#allocation2 + $0x50] sm:$0xff]
          %v2108 = vld [vmem:[#allocation2 + $0x58] sm:$0xff]
          %v2109 = vld [vmem:[#allocation2 + $0x60] sm:$0xff]
          %v2110 = vld [vmem:[#allocation2 + $0x68] sm:$0xff]
          %v2111 = vld [vmem:[#allocation2 + $0x70] sm:$0xff]
          %v2112 = vld [vmem:[#allocation2 + $0x78] sm:$0xff]
          %v2113 = vld [vmem:[#allocation2 + $0x80] sm:$0xff]
          %v2114 = vld [vmem:[#allocation2 + $0x88] sm:$0xff]
          %v2115 = vld [vmem:[#allocation2 + $0x90] sm:$0xff]
          %v2116 = vld [vmem:[#allocation2 + $0x98] sm:$0xff]
          %v2117 = vld [vmem:[#allocation2 + $0xa0] sm:$0xff]
          %v2118 = vld [vmem:[#allocation2 + $0xa8] sm:$0xff]
          %v2119 = vld [vmem:[#allocation2 + $0xb0] sm:$0xff]
          %v2120 = vld [vmem:[#allocation2 + $0xb8] sm:$0xff]
          %v2121 = vld [vmem:[#allocation2 + $0xc0] sm:$0xff]
          %v2122 = vld [vmem:[#allocation2 + $0xc8] sm:$0xff]
          %v2123 = vld [vmem:[#allocation2 + $0xd0] sm:$0xff]
          %v2124 = vld [vmem:[#allocation2 + $0xd8] sm:$0xff]
          %v2125 = vld [vmem:[#allocation2 + $0xe0] sm:$0xff]
          %v2126 = vld [vmem:[#allocation2 + $0xe8] sm:$0xff]
          %v2127 = vld [vmem:[#allocation2 + $0xf0] sm:$0xff]
          %v2128 = vld [vmem:[#allocation2 + $0xf8] sm:$0xff]
          %v2129 = vld [vmem:[#allocation2 + $0x100] sm:$0xff]
          %v2130 = vld [vmem:[#allocation2 + $0x108] sm:$0xff]
          %v2131 = vld [vmem:[#allocation2 + $0x110] sm:$0xff]
          %v2132 = vld [vmem:[#allocation2 + $0x118] sm:$0xff]
          %v2133 = vld [vmem:[#allocation2 + $0x120] sm:$0xff]
          %v2134 = vld [vmem:[#allocation2 + $0x128] sm:$0xff]
          %v2135 = vld [vmem:[#allocation2 + $0x130] sm:$0xff]
          %v2136 = vld [vmem:[#allocation2 + $0x138] sm:$0xff]
          %v2137 = vld [vmem:[#allocation2 + $0x140] sm:$0xff]
          %v2138 = vld [vmem:[#allocation2 + $0x148] sm:$0xff]
          %v2139 = vld [vmem:[#allocation2 + $0x150] sm:$0xff]
          %v2140 = vld [vmem:[#allocation2 + $0x158] sm:$0xff]
          %v2141 = vld [vmem:[#allocation2 + $0x160] sm:$0xff]
          %v2142 = vld [vmem:[#allocation2 + $0x168] sm:$0xff]
          %v2143 = vld [vmem:[#allocation2 + $0x170] sm:$0xff]
          %v2144 = vld [vmem:[#allocation2 + $0x178] sm:$0xff]
          %v2145 = vld [vmem:[#allocation2 + $0x180] sm:$0xff]
          %v2146 = vld [vmem:[#allocation2 + $0x188] sm:$0xff]
          %v2147 = vld [vmem:[#allocation2 + $0x190] sm:$0xff]
          %v2148 = vld [vmem:[#allocation2 + $0x198] sm:$0xff]
          %v2149 = vld [vmem:[#allocation2 + $0x1a0] sm:$0xff]
          %v2150 = vld [vmem:[#allocation2 + $0x1a8] sm:$0xff]
          %v2151 = vld [vmem:[#allocation2 + $0x1b0] sm:$0xff]
          %v2152 = vld [vmem:[#allocation2 + $0x1b8] sm:$0xff]
          %v2153 = vld [vmem:[#allocation2 + $0x1c0] sm:$0xff]
          %v2154 = vld [vmem:[#allocation2 + $0x1c8] sm:$0xff]
          %v2155 = vld [vmem:[#allocation2 + $0x1d0] sm:$0xff]
          %v2156 = vld [vmem:[#allocation2 + $0x1d8] sm:$0xff]
          %v2157 = vld [vmem:[#allocation2 + $0x1e0] sm:$0xff]
          %v2158 = vld [vmem:[#allocation2 + $0x1e8] sm:$0xff]
          %v2159 = vld [vmem:[#allocation2 + $0x1f0] sm:$0xff]
          %v2160 = vld [vmem:[#allocation2 + $0x1f8] sm:$0xff]
          %v2161 = vld [vmem:[%s2] sm:$0x1]
          %v2163 = vlaneseq
          %v2164 = vshrl.u32 %v2163, 7
          %v2165 = vsub.s32 0, %v2164
          %v2166 = vrot.slane %v2161, %v2165
          %v2168 = vadd.f32 %v2097, %v2166
          %v2169 = vadd.f32 %v2098, %v2166
          %v2170 = vadd.f32 %v2099, %v2166
          %v2171 = vadd.f32 %v2100, %v2166
          %v2172 = vadd.f32 %v2101, %v2166
          %v2173 = vadd.f32 %v2102, %v2166
          %v2174 = vadd.f32 %v2103, %v2166
          %v2175 = vadd.f32 %v2104, %v2166
          %v2176 = vadd.f32 %v2105, %v2166
          %v2177 = vadd.f32 %v2106, %v2166
          %v2178 = vadd.f32 %v2107, %v2166
          %v2179 = vadd.f32 %v2108, %v2166
          %v2180 = vadd.f32 %v2109, %v2166
          %v2181 = vadd.f32 %v2110, %v2166
          %v2182 = vadd.f32 %v2111, %v2166
          %v2183 = vadd.f32 %v2112, %v2166
          %v2184 = vadd.f32 %v2113, %v2166
          %v2185 = vadd.f32 %v2114, %v2166
          %v2186 = vadd.f32 %v2115, %v2166
          %v2187 = vadd.f32 %v2116, %v2166
          %v2188 = vadd.f32 %v2117, %v2166
          %v2189 = vadd.f32 %v2118, %v2166
          %v2190 = vadd.f32 %v2119, %v2166
          %v2191 = vadd.f32 %v2120, %v2166
          %v2192 = vadd.f32 %v2121, %v2166
          %v2193 = vadd.f32 %v2122, %v2166
          %v2194 = vadd.f32 %v2123, %v2166
          %v2195 = vadd.f32 %v2124, %v2166
          %v2196 = vadd.f32 %v2125, %v2166
          %v2197 = vadd.f32 %v2126, %v2166
          %v2198 = vadd.f32 %v2127, %v2166
          %v2199 = vadd.f32 %v2128, %v2166
          %v2200 = vadd.f32 %v2129, %v2166
          %v2201 = vadd.f32 %v2130, %v2166
          %v2202 = vadd.f32 %v2131, %v2166
          %v2203 = vadd.f32 %v2132, %v2166
          %v2204 = vadd.f32 %v2133, %v2166
          %v2205 = vadd.f32 %v2134, %v2166
          %v2206 = vadd.f32 %v2135, %v2166
          %v2207 = vadd.f32 %v2136, %v2166
          %v2208 = vadd.f32 %v2137, %v2166
          %v2209 = vadd.f32 %v2138, %v2166
          %v2210 = vadd.f32 %v2139, %v2166
          %v2211 = vadd.f32 %v2140, %v2166
          %v2212 = vadd.f32 %v2141, %v2166
          %v2213 = vadd.f32 %v2142, %v2166
          %v2214 = vadd.f32 %v2143, %v2166
          %v2215 = vadd.f32 %v2144, %v2166
          %v2216 = vadd.f32 %v2145, %v2166
          %v2217 = vadd.f32 %v2146, %v2166
          %v2218 = vadd.f32 %v2147, %v2166
          %v2219 = vadd.f32 %v2148, %v2166
          %v2220 = vadd.f32 %v2149, %v2166
          %v2221 = vadd.f32 %v2150, %v2166
          %v2222 = vadd.f32 %v2151, %v2166
          %v2223 = vadd.f32 %v2152, %v2166
          %v2224 = vadd.f32 %v2153, %v2166
          %v2225 = vadd.f32 %v2154, %v2166
          %v2226 = vadd.f32 %v2155, %v2166
          %v2227 = vadd.f32 %v2156, %v2166
          %v2228 = vadd.f32 %v2157, %v2166
          %v2229 = vadd.f32 %v2158, %v2166
          %v2230 = vadd.f32 %v2159, %v2166
          %v2231 = vadd.f32 %v2160, %v2166
          %2232 = vst [vmem:[%s741] sm:$0xff] %v2168
          %2233 = vst [vmem:[%s741 + $0x8] sm:$0xff] %v2169
          %2234 = vst [vmem:[%s741 + $0x10] sm:$0xff] %v2170
          %2235 = vst [vmem:[%s741 + $0x18] sm:$0xff] %v2171
          %2236 = vst [vmem:[%s741 + $0x20] sm:$0xff] %v2172
          %2237 = vst [vmem:[%s741 + $0x28] sm:$0xff] %v2173
          %2238 = vst [vmem:[%s741 + $0x30] sm:$0xff] %v2174
          %2239 = vst [vmem:[%s741 + $0x38] sm:$0xff] %v2175
          %2240 = vst [vmem:[%s741 + $0x40] sm:$0xff] %v2176
          %2241 = vst [vmem:[%s741 + $0x48] sm:$0xff] %v2177
          %2242 = vst [vmem:[%s741 + $0x50] sm:$0xff] %v2178
          %2243 = vst [vmem:[%s741 + $0x58] sm:$0xff] %v2179
          %2244 = vst [vmem:[%s741 + $0x60] sm:$0xff] %v2180
          %2245 = vst [vmem:[%s741 + $0x68] sm:$0xff] %v2181
          %2246 = vst [vmem:[%s741 + $0x70] sm:$0xff] %v2182
          %2247 = vst [vmem:[%s741 + $0x78] sm:$0xff] %v2183
          %2248 = vst [vmem:[%s741 + $0x80] sm:$0xff] %v2184
          %2249 = vst [vmem:[%s741 + $0x88] sm:$0xff] %v2185
          %2250 = vst [vmem:[%s741 + $0x90] sm:$0xff] %v2186
          %2251 = vst [vmem:[%s741 + $0x98] sm:$0xff] %v2187
          %2252 = vst [vmem:[%s741 + $0xa0] sm:$0xff] %v2188
          %2253 = vst [vmem:[%s741 + $0xa8] sm:$0xff] %v2189
          %2254 = vst [vmem:[%s741 + $0xb0] sm:$0xff] %v2190
          %2255 = vst [vmem:[%s741 + $0xb8] sm:$0xff] %v2191
          %2256 = vst [vmem:[%s741 + $0xc0] sm:$0xff] %v2192
          %2257 = vst [vmem:[%s741 + $0xc8] sm:$0xff] %v2193
          %2258 = vst [vmem:[%s741 + $0xd0] sm:$0xff] %v2194
          %2259 = vst [vmem:[%s741 + $0xd8] sm:$0xff] %v2195
          %2260 = vst [vmem:[%s741 + $0xe0] sm:$0xff] %v2196
          %2261 = vst [vmem:[%s741 + $0xe8] sm:$0xff] %v2197
          %2262 = vst [vmem:[%s741 + $0xf0] sm:$0xff] %v2198
          %2263 = vst [vmem:[%s741 + $0xf8] sm:$0xff] %v2199
          %2264 = vst [vmem:[%s741 + $0x100] sm:$0xff] %v2200
          %2265 = vst [vmem:[%s741 + $0x108] sm:$0xff] %v2201
          %2266 = vst [vmem:[%s741 + $0x110] sm:$0xff] %v2202
          %2267 = vst [vmem:[%s741 + $0x118] sm:$0xff] %v2203
          %2268 = vst [vmem:[%s741 + $0x120] sm:$0xff] %v2204
          %2269 = vst [vmem:[%s741 + $0x128] sm:$0xff] %v2205
          %2270 = vst [vmem:[%s741 + $0x130] sm:$0xff] %v2206
          %2271 = vst [vmem:[%s741 + $0x138] sm:$0xff] %v2207
          %2272 = vst [vmem:[%s741 + $0x140] sm:$0xff] %v2208
          %2273 = vst [vmem:[%s741 + $0x148] sm:$0xff] %v2209
          %2274 = vst [vmem:[%s741 + $0x150] sm:$0xff] %v2210
          %2275 = vst [vmem:[%s741 + $0x158] sm:$0xff] %v2211
          %2276 = vst [vmem:[%s741 + $0x160] sm:$0xff] %v2212
          %2277 = vst [vmem:[%s741 + $0x168] sm:$0xff] %v2213
          %2278 = vst [vmem:[%s741 + $0x170] sm:$0xff] %v2214
          %2279 = vst [vmem:[%s741 + $0x178] sm:$0xff] %v2215
          %2280 = vst [vmem:[%s741 + $0x180] sm:$0xff] %v2216
          %2281 = vst [vmem:[%s741 + $0x188] sm:$0xff] %v2217
          %2282 = vst [vmem:[%s741 + $0x190] sm:$0xff] %v2218
          %2283 = vst [vmem:[%s741 + $0x198] sm:$0xff] %v2219
          %2284 = vst [vmem:[%s741 + $0x1a0] sm:$0xff] %v2220
          %2285 = vst [vmem:[%s741 + $0x1a8] sm:$0xff] %v2221
          %2286 = vst [vmem:[%s741 + $0x1b0] sm:$0xff] %v2222
          %2287 = vst [vmem:[%s741 + $0x1b8] sm:$0xff] %v2223
          %2288 = vst [vmem:[%s741 + $0x1c0] sm:$0xff] %v2224
          %2289 = vst [vmem:[%s741 + $0x1c8] sm:$0xff] %v2225
          %2290 = vst [vmem:[%s741 + $0x1d0] sm:$0xff] %v2226
          %2291 = vst [vmem:[%s741 + $0x1d8] sm:$0xff] %v2227
          %2292 = vst [vmem:[%s741 + $0x1e0] sm:$0xff] %v2228
          %2293 = vst [vmem:[%s741 + $0x1e8] sm:$0xff] %v2229
          %2294 = vst [vmem:[%s741 + $0x1f0] sm:$0xff] %v2230
          %2295 = vst [vmem:[%s741 + $0x1f8] sm:$0xff] %v2231
        $region63: #{gcn_forward.3} parent=50 // pred_fallthru
          _
        %s2296 = smul.u32 64, %s18
        %p2297 = scmp.lt.s32.totalorder %s2296, 127
        %s2298 = scalar_select %p2297, %s2296, 127
        %s2299 = smul.addr %s2298, 8
        %s2300 = scalar_lea.vmem %s3, %s2299
        // Predicated region
        $region64: #{gcn_forward.3} parent=50 // pred_check
          %p2301 = pneg %p119
        $region65: #{gcn_forward.3} parent=50 // pred_check_branch
          %2303 = sbr.rel (%p2301) target = $region67
        $region66: #{gcn_forward.3} parent=50 // pred_region
          %s2304 = smul.u32 64, %s18
        $region67: #{gcn_forward.3} parent=50 // pred_fallthru
          _
      $region51: #{gcn_forward.3} parent=5 // pred_fallthru
        _
      %p2305 = scmp.le.s32.totalorder 2, %s9
      // Predicated region
      $region68: #{gcn_forward.3} parent=5 // pred_check
        %p2306 = pneg %p2305
      $region69: #{gcn_forward.3} parent=5 // pred_check_branch
        %2308 = sbr.rel (%p2306) target = $region71
      $region70: #{gcn_forward.3} parent=5 // pred_region
        %s2309 = ssub.s32 %s9, 2
        // Predicated region
        $region72: #{gcn_forward.3} parent=70 // pred_check
          %p2310 = pneg %p125
        $region73: #{gcn_forward.3} parent=70 // pred_check_branch
          %2312 = sbr.rel (%p2310) target = $region75
        $region74: #{gcn_forward.3} parent=70 // pred_region
          %s2313 = smul.u32 64, %s20
          %p2314 = scmp.lt.s32.totalorder %s2313, 127
          %s2315 = scalar_select %p2314, %s2313, 127
          %s2316 = smul.addr %s2315, 8
          %s2317 = scalar_lea.vmem %s3, %s2316
        $region75: #{gcn_forward.3} parent=70 // pred_fallthru
          _
      $region71: #{gcn_forward.3} parent=5 // pred_fallthru
        _
    $region6: #{gcn_forward.3} parent=1 // loop_footer
      %s13 = sadd.s32 1, %s9
    $region7: #{gcn_forward.3} parent=1 // loop_footer_branch
      %8 = sbr.rel target = $region3
    $region8: #{gcn_forward.3} parent=1 // loop_exit
      _

</llo_original>
